<compile_context>
chip_gen: v7x
topology: tpu7x:2x2x1
jax: 0.10.0
libtpu: 0.0.40
codegen_flags: <defaults>
</compile_context>

<pallas_src>
import functools

import jax
import jax.numpy as jnp
from jax.experimental import pallas as pl
from jax.experimental.pallas import tpu as pltpu

BN_EPS = 1e-5


def _round_up(x, m):
    return ((x + m - 1) // m) * m


# ----------------------- Pallas kernels -----------------------

def _mm_single_kernel(x_ref, w_ref, sc_ref, sh_ref, *rest, relu, has_res):
    """Single-K-step fused matmul: o = act((x @ w) * sc + sh [+ r])."""
    if has_res:
        r_ref, o_ref = rest
    else:
        (o_ref,) = rest
    acc = jnp.dot(x_ref[...], w_ref[...], preferred_element_type=jnp.float32)
    y = acc * sc_ref[...] + sh_ref[...]
    if has_res:
        y = y + r_ref[...].astype(jnp.float32)
    if relu:
        y = jnp.maximum(y, 0.0)
    o_ref[...] = y.astype(o_ref.dtype)


def _mm_multi_kernel(x_ref, w_ref, sc_ref, sh_ref, *rest, relu, has_res):
    """K-tiled fused matmul with f32 VMEM accumulator."""
    if has_res:
        r_ref, o_ref, acc_ref = rest
    else:
        o_ref, acc_ref = rest
    k = pl.program_id(2)

    @pl.when(k == 0)
    def _():
        acc_ref[...] = jnp.zeros_like(acc_ref)

    acc_ref[...] += jnp.dot(x_ref[...], w_ref[...],
                            preferred_element_type=jnp.float32)

    @pl.when(k == pl.num_programs(2) - 1)
    def _():
        y = acc_ref[...] * sc_ref[...] + sh_ref[...]
        if has_res:
            y = y + r_ref[...].astype(jnp.float32)
        if relu:
            y = jnp.maximum(y, 0.0)
        o_ref[...] = y.astype(o_ref.dtype)


# ----------------------- Pallas wrapper -----------------------

def matmul_bn_act(x, w, scale, shift, *, relu, residual=None,
                  out_dtype=jnp.bfloat16):
    """y = act((x @ w) * scale + shift [+ residual]).

    x: (M, K) bf16 im2col patches.  w: (K, N) bf16, N % 128 == 0 (pre-packed).
    scale/shift: (1, N) f32 folded BatchNorm.  residual: (M, N) bf16 or None.
    """
    M, K = x.shape
    Kw, N = w.shape
    assert K == Kw and N % 128 == 0

    # Tile selection: 256-wide tiles fill the v6e/v7x 256x256 MXU; fall back to
    # 128 (v5e MXU / small shapes).  N is a multiple of 128 by construction.
    tn = 256 if (N % 256 == 0 and M >= 256) else 128
    if M >= 256:
        tm = 256
    elif M >= 128:
        tm = 128
    else:
        tm = _round_up(M, 8)
    Mp = _round_up(M, tm)

    xp = x if Mp == M else jnp.pad(x, ((0, Mp - M), (0, 0)))
    has_res = residual is not None
    rp = None
    if has_res:
        rp = residual if Mp == M else jnp.pad(residual, ((0, Mp - M), (0, 0)))

    if K <= 2048:
        # Whole contraction in one step: no accumulator scratch needed.
        grid = (Mp // tm, N // tn)
        in_specs = [pl.BlockSpec((tm, K), lambda i, j: (i, 0)),
                    pl.BlockSpec((K, tn), lambda i, j: (0, j)),
                    pl.BlockSpec((1, tn), lambda i, j: (0, j)),
                    pl.BlockSpec((1, tn), lambda i, j: (0, j))]
        operands = [xp, w, scale, shift]
        if has_res:
            in_specs.append(pl.BlockSpec((tm, tn), lambda i, j: (i, j)))
            operands.append(rp)
        out = pl.pallas_call(
            functools.partial(_mm_single_kernel, relu=relu, has_res=has_res),
            out_shape=jax.ShapeDtypeStruct((Mp, N), out_dtype),
            grid=grid,
            in_specs=in_specs,
            out_specs=pl.BlockSpec((tm, tn), lambda i, j: (i, j)),
            compiler_params=pltpu.CompilerParams(
                dimension_semantics=("parallel", "parallel")),
        )(*operands)
    else:
        # K is always a multiple of 128 here (channels padded to 128).
        tk = 128
        for cand in (2048, 1536, 1152, 1024, 768, 512, 384, 256):
            if K % cand == 0:
                tk = cand
                break
        grid = (Mp // tm, N // tn, K // tk)
        in_specs = [pl.BlockSpec((tm, tk), lambda i, j, k: (i, k)),
                    pl.BlockSpec((tk, tn), lambda i, j, k: (k, j)),
                    pl.BlockSpec((1, tn), lambda i, j, k: (0, j)),
                    pl.BlockSpec((1, tn), lambda i, j, k: (0, j))]
        operands = [xp, w, scale, shift]
        if has_res:
            in_specs.append(pl.BlockSpec((tm, tn), lambda i, j, k: (i, j)))
            operands.append(rp)
        out = pl.pallas_call(
            functools.partial(_mm_multi_kernel, relu=relu, has_res=has_res),
            out_shape=jax.ShapeDtypeStruct((Mp, N), out_dtype),
            grid=grid,
            in_specs=in_specs,
            out_specs=pl.BlockSpec((tm, tn), lambda i, j, k: (i, j)),
            scratch_shapes=[pltpu.VMEM((tm, tn), jnp.float32)],
            compiler_params=pltpu.CompilerParams(
                dimension_semantics=("parallel", "parallel", "arbitrary")),
        )(*operands)

    if Mp != M:
        out = out[:M]
    return out


# ----------------------- conv glue (plain JAX: strided slicing only) ---------

def im2col(x, k, stride, pad):
    """bf16 im2col patches, layout (dh, dw, channel) to match packed weights."""
    B, H, W, C = x.shape
    Ho = (H + 2 * pad - k) // stride + 1
    Wo = (W + 2 * pad - k) // stride + 1
    xp = x if pad == 0 else jnp.pad(x, ((0, 0), (pad, pad), (pad, pad), (0, 0)))
    cols = [xp[:, dh:dh + stride * Ho:stride, dw:dw + stride * Wo:stride, :]
            for dh in range(k) for dw in range(k)]
    patches = cols[0] if len(cols) == 1 else jnp.concatenate(cols, axis=-1)
    return patches.reshape(B * Ho * Wo, k * k * C), Ho, Wo


def conv_bn(x, params, *, k, stride, pad, relu, residual=None,
            out_dtype=jnp.bfloat16):
    w, scale, shift = params
    B = x.shape[0]
    cols, Ho, Wo = im2col(x, k, stride, pad)
    res2d = residual.reshape(B * Ho * Wo, -1) if residual is not None else None
    y = matmul_bn_act(cols, w, scale, shift, relu=relu, residual=res2d,
                      out_dtype=out_dtype)
    return y.reshape(B, Ho, Wo, -1)


# ----------------------- BasicBlock -----------------------

def basic_block_forward(params, x_nchw):
    """BasicBlock.forward: conv3x3-BN-ReLU, conv3x3-BN, (+downsample), +id, ReLU."""
    stride = params["stride"]
    planes = params["planes"]
    x = jnp.transpose(x_nchw, (0, 2, 3, 1)).astype(jnp.bfloat16)  # NCHW->NHWC
    cin = x.shape[-1]
    cin_p = _round_up(cin, 128)
    if cin_p != cin:
        x = jnp.pad(x, ((0, 0), (0, 0), (0, 0), (0, cin_p - cin)))

    out = conv_bn(x, params["conv1"], k=3, stride=stride, pad=1, relu=True)
    if "down" in params:
        identity = conv_bn(x, params["down"], k=1, stride=stride, pad=0,
                           relu=False)
    else:
        identity = x
    # second conv: BN + residual add + final ReLU fused in the matmul epilogue
    out = conv_bn(out, params["conv2"], k=3, stride=1, pad=1, relu=True,
                  residual=identity, out_dtype=jnp.float32)

    out = out[..., :planes]                       # strip channel padding
    return jnp.transpose(out, (0, 3, 1, 2))       # NHWC -> NCHW


# ----------------------- parameter init (packed once, deterministic) ---------

def init_conv_bn(key, k, cin, cout, cin_p, cout_p):
    kw, kg, kb, km, kv = jax.random.split(key, 5)
    fan_in = k * k * cin
    w = jax.random.normal(kw, (k, k, cin, cout), jnp.float32) * \
        jnp.sqrt(2.0 / fan_in)
    gamma = 1.0 + 0.1 * jax.random.normal(kg, (cout,), jnp.float32)
    beta = 0.1 * jax.random.normal(kb, (cout,), jnp.float32)
    mean = 0.1 * jax.random.normal(km, (cout,), jnp.float32)
    var = 1.0 + 0.1 * jax.random.uniform(kv, (cout,), jnp.float32)
    scale = gamma / jnp.sqrt(var + BN_EPS)        # eval-mode BN folded
    shift = beta - mean * scale
    # Pre-pad + pre-cast once: (k*k*cin_p, cout_p) bf16, scale/shift (1,cout_p).
    wp = jnp.zeros((k, k, cin_p, cout_p), jnp.float32)
    wp = wp.at[:, :, :cin, :cout].set(w)
    wp = wp.reshape(k * k * cin_p, cout_p).astype(jnp.bfloat16)
    sc = jnp.zeros((1, cout_p), jnp.float32).at[0, :cout].set(scale)
    sh = jnp.zeros((1, cout_p), jnp.float32).at[0, :cout].set(shift)
    return (wp, sc, sh)


def init_basic_block(key, inplanes, planes, stride):
    cin_p = _round_up(inplanes, 128)
    cp = _round_up(planes, 128)
    k1, k2, k3 = jax.random.split(key, 3)
    params = {
        "stride": stride,
        "planes": planes,
        "conv1": init_conv_bn(k1, 3, inplanes, planes, cin_p, cp),
        "conv2": init_conv_bn(k2, 3, planes, planes, cp, cp),
    }
    if stride != 1 or inplanes != planes:
        params["down"] = init_conv_bn(k3, 1, inplanes, planes, cin_p, cp)
    return params


if __name__ == "__main__":
    key = jax.random.PRNGKey(0)
    pkey, xkey = jax.random.split(key)

    inplanes, planes, stride = 4, 8, 2          # exercises the downsample path
    params = init_basic_block(pkey, inplanes, planes, stride)
    x = jax.random.normal(xkey, (2, inplanes, 16, 16), jnp.float32)  # NCHW

    fwd = jax.jit(lambda xx: basic_block_forward(params, xx))
    out = fwd(x)
    out = jax.block_until_ready(out)

    assert out.shape == (2, planes, 8, 8), out.shape
    assert bool(jnp.all(jnp.isfinite(out)))
    print("KERNEL_OK")
</pallas_src>

<mosaic_0001>
module attributes {stable_mosaic.version = 11 : i64} {
  func.func @_mm_single_kernel(%arg0: i32, %arg1: i32, %arg2: memref<128x128xbf16, #tpu.memory_space<vmem>>, %arg3: memref<128x128xbf16, #tpu.memory_space<vmem>>, %arg4: memref<1x128xf32, #tpu.memory_space<vmem>>, %arg5: memref<1x128xf32, #tpu.memory_space<vmem>>, %arg6: memref<128x128xbf16, #tpu.memory_space<vmem>>) attributes {dimension_semantics = [#tpu.dimension_semantics<parallel>, #tpu.dimension_semantics<parallel>], iteration_bounds = array<i64: 1, 1>, scalar_prefetch = 0 : i64, scratch_operands = 0 : i64, tpu.core_type = #tpu.core_type<tc>, window_params = [{transform_indices = @transform_0, window_bounds = array<i64: 128, 128>}, {transform_indices = @transform_1, window_bounds = array<i64: 128, 128>}, {transform_indices = @transform_2, window_bounds = array<i64: 1, 128>}, {transform_indices = @transform_3, window_bounds = array<i64: 1, 128>}, {transform_indices = @transform_4, window_bounds = array<i64: 128, 128>}]} {
    %c0 = arith.constant 0 : index
    %c0_0 = arith.constant 0 : index
    %0 = vector.load %arg2[%c0, %c0_0] : memref<128x128xbf16, #tpu.memory_space<vmem>>, vector<128x128xbf16>
    %c0_1 = arith.constant 0 : index
    %c0_2 = arith.constant 0 : index
    %1 = vector.load %arg3[%c0_1, %c0_2] : memref<128x128xbf16, #tpu.memory_space<vmem>>, vector<128x128xbf16>
    %cst = arith.constant dense<0.000000e+00> : vector<128x128xf32>
    %2 = tpu.matmul %0, %1, %cst {dimension_numbers = #tpu.dot_dimension_numbers<[1], [0], [0], [1], [0, 0, 1, 1], [], []>} : vector<128x128xbf16>, vector<128x128xbf16>, vector<128x128xf32> -> vector<128x128xf32>
    %c0_3 = arith.constant 0 : index
    %c0_4 = arith.constant 0 : index
    %3 = vector.load %arg4[%c0_3, %c0_4] : memref<1x128xf32, #tpu.memory_space<vmem>>, vector<1x128xf32>
    %4 = vector.broadcast %3 : vector<1x128xf32> to vector<128x128xf32>
    %5 = arith.mulf %2, %4 : vector<128x128xf32>
    %c0_5 = arith.constant 0 : index
    %c0_6 = arith.constant 0 : index
    %6 = vector.load %arg5[%c0_5, %c0_6] : memref<1x128xf32, #tpu.memory_space<vmem>>, vector<1x128xf32>
    %7 = vector.broadcast %6 : vector<1x128xf32> to vector<128x128xf32>
    %8 = arith.addf %5, %7 : vector<128x128xf32>
    %9 = arith.truncf %8 : vector<128x128xf32> to vector<128x128xbf16>
    %c0_7 = arith.constant 0 : index
    %c0_8 = arith.constant 0 : index
    %10 = vector.load %arg6[%c0_7, %c0_8] : memref<128x128xbf16, #tpu.memory_space<vmem>>, vector<128x128xbf16>
    tpu.vector_store %arg6[%c0_7, %c0_8], %9 {strides = array<i32>} : memref<128x128xbf16, #tpu.memory_space<vmem>>, vector<128x128xbf16>,
    return
  }
  func.func @transform_0(%arg0: i32, %arg1: i32) -> (i32, i32) {
    %c0_i32 = arith.constant 0 : i32
    %c0_i32_0 = arith.constant 0 : i32
    return %arg0, %c0_i32 : i32, i32
  }
  func.func @transform_1(%arg0: i32, %arg1: i32) -> (i32, i32) {
    %c0_i32 = arith.constant 0 : i32
    %c0_i32_0 = arith.constant 0 : i32
    return %c0_i32, %arg1 : i32, i32
  }
  func.func @transform_2(%arg0: i32, %arg1: i32) -> (i32, i32) {
    %c0_i32 = arith.constant 0 : i32
    %c0_i32_0 = arith.constant 0 : i32
    return %c0_i32, %arg1 : i32, i32
  }
  func.func @transform_3(%arg0: i32, %arg1: i32) -> (i32, i32) {
    %c0_i32 = arith.constant 0 : i32
    %c0_i32_0 = arith.constant 0 : i32
    return %c0_i32, %arg1 : i32, i32
  }
  func.func @transform_4(%arg0: i32, %arg1: i32) -> (i32, i32) {
    %c0_i32 = arith.constant 0 : i32
    return %arg0, %arg1 : i32, i32
  }
}

module attributes {stable_mosaic.version = 11 : i64} {
  func.func @_mm_single_kernel(%arg0: i32, %arg1: i32, %arg2: memref<128x1152xbf16, #tpu.memory_space<vmem>>, %arg3: memref<1152x128xbf16, #tpu.memory_space<vmem>>, %arg4: memref<1x128xf32, #tpu.memory_space<vmem>>, %arg5: memref<1x128xf32, #tpu.memory_space<vmem>>, %arg6: memref<128x128xbf16, #tpu.memory_space<vmem>>) attributes {dimension_semantics = [#tpu.dimension_semantics<parallel>, #tpu.dimension_semantics<parallel>], iteration_bounds = array<i64: 1, 1>, scalar_prefetch = 0 : i64, scratch_operands = 0 : i64, tpu.core_type = #tpu.core_type<tc>, window_params = [{transform_indices = @transform_0, window_bounds = array<i64: 128, 1152>}, {transform_indices = @transform_1, window_bounds = array<i64: 1152, 128>}, {transform_indices = @transform_2, window_bounds = array<i64: 1, 128>}, {transform_indices = @transform_3, window_bounds = array<i64: 1, 128>}, {transform_indices = @transform_4, window_bounds = array<i64: 128, 128>}]} {
    %c0 = arith.constant 0 : index
    %c0_0 = arith.constant 0 : index
    %0 = vector.load %arg2[%c0, %c0_0] : memref<128x1152xbf16, #tpu.memory_space<vmem>>, vector<128x1152xbf16>
    %c0_1 = arith.constant 0 : index
    %c0_2 = arith.constant 0 : index
    %1 = vector.load %arg3[%c0_1, %c0_2] : memref<1152x128xbf16, #tpu.memory_space<vmem>>, vector<1152x128xbf16>
    %cst = arith.constant dense<0.000000e+00> : vector<128x128xf32>
    %2 = tpu.matmul %0, %1, %cst {dimension_numbers = #tpu.dot_dimension_numbers<[1], [0], [0], [1], [0, 0, 1, 1], [], []>} : vector<128x1152xbf16>, vector<1152x128xbf16>, vector<128x128xf32> -> vector<128x128xf32>
    %c0_3 = arith.constant 0 : index
    %c0_4 = arith.constant 0 : index
    %3 = vector.load %arg4[%c0_3, %c0_4] : memref<1x128xf32, #tpu.memory_space<vmem>>, vector<1x128xf32>
    %4 = vector.broadcast %3 : vector<1x128xf32> to vector<128x128xf32>
    %5 = arith.mulf %2, %4 : vector<128x128xf32>
    %c0_5 = arith.constant 0 : index
    %c0_6 = arith.constant 0 : index
    %6 = vector.load %arg5[%c0_5, %c0_6] : memref<1x128xf32, #tpu.memory_space<vmem>>, vector<1x128xf32>
    %7 = vector.broadcast %6 : vector<1x128xf32> to vector<128x128xf32>
    %8 = arith.addf %5, %7 : vector<128x128xf32>
    %cst_7 = arith.constant 0.000000e+00 : f32
    %9 = vector.broadcast %cst_7 : f32 to vector<128x128xf32>
    %10 = arith.maximumf %8, %9 : vector<128x128xf32>
    %11 = arith.truncf %10 : vector<128x128xf32> to vector<128x128xbf16>
    %c0_8 = arith.constant 0 : index
    %c0_9 = arith.constant 0 : index
    %12 = vector.load %arg6[%c0_8, %c0_9] : memref<128x128xbf16, #tpu.memory_space<vmem>>, vector<128x128xbf16>
    tpu.vector_store %arg6[%c0_8, %c0_9], %11 {strides = array<i32>} : memref<128x128xbf16, #tpu.memory_space<vmem>>, vector<128x128xbf16>,
    return
  }
  func.func @transform_0(%arg0: i32, %arg1: i32) -> (i32, i32) {
    %c0_i32 = arith.constant 0 : i32
    %c0_i32_0 = arith.constant 0 : i32
    return %arg0, %c0_i32 : i32, i32
  }
  func.func @transform_1(%arg0: i32, %arg1: i32) -> (i32, i32) {
    %c0_i32 = arith.constant 0 : i32
    %c0_i32_0 = arith.constant 0 : i32
    return %c0_i32, %arg1 : i32, i32
  }
  func.func @transform_2(%arg0: i32, %arg1: i32) -> (i32, i32) {
    %c0_i32 = arith.constant 0 : i32
    %c0_i32_0 = arith.constant 0 : i32
    return %c0_i32, %arg1 : i32, i32
  }
  func.func @transform_3(%arg0: i32, %arg1: i32) -> (i32, i32) {
    %c0_i32 = arith.constant 0 : i32
    %c0_i32_0 = arith.constant 0 : i32
    return %c0_i32, %arg1 : i32, i32
  }
  func.func @transform_4(%arg0: i32, %arg1: i32) -> (i32, i32) {
    %c0_i32 = arith.constant 0 : i32
    return %arg0, %arg1 : i32, i32
  }
}

module attributes {stable_mosaic.version = 11 : i64} {
  func.func @_mm_single_kernel(%arg0: i32, %arg1: i32, %arg2: memref<128x1152xbf16, #tpu.memory_space<vmem>>, %arg3: memref<1152x128xbf16, #tpu.memory_space<vmem>>, %arg4: memref<1x128xf32, #tpu.memory_space<vmem>>, %arg5: memref<1x128xf32, #tpu.memory_space<vmem>>, %arg6: memref<128x128xbf16, #tpu.memory_space<vmem>>, %arg7: memref<128x128xf32, #tpu.memory_space<vmem>>) attributes {dimension_semantics = [#tpu.dimension_semantics<parallel>, #tpu.dimension_semantics<parallel>], iteration_bounds = array<i64: 1, 1>, scalar_prefetch = 0 : i64, scratch_operands = 0 : i64, tpu.core_type = #tpu.core_type<tc>, window_params = [{transform_indices = @transform_0, window_bounds = array<i64: 128, 1152>}, {transform_indices = @transform_1, window_bounds = array<i64: 1152, 128>}, {transform_indices = @transform_2, window_bounds = array<i64: 1, 128>}, {transform_indices = @transform_3, window_bounds = array<i64: 1, 128>}, {transform_indices = @transform_4, window_bounds = array<i64: 128, 128>}, {transform_indices = @transform_5, window_bounds = array<i64: 128, 128>}]} {
    %c0 = arith.constant 0 : index
    %c0_0 = arith.constant 0 : index
    %0 = vector.load %arg2[%c0, %c0_0] : memref<128x1152xbf16, #tpu.memory_space<vmem>>, vector<128x1152xbf16>
    %c0_1 = arith.constant 0 : index
    %c0_2 = arith.constant 0 : index
    %1 = vector.load %arg3[%c0_1, %c0_2] : memref<1152x128xbf16, #tpu.memory_space<vmem>>, vector<1152x128xbf16>
    %cst = arith.constant dense<0.000000e+00> : vector<128x128xf32>
    %2 = tpu.matmul %0, %1, %cst {dimension_numbers = #tpu.dot_dimension_numbers<[1], [0], [0], [1], [0, 0, 1, 1], [], []>} : vector<128x1152xbf16>, vector<1152x128xbf16>, vector<128x128xf32> -> vector<128x128xf32>
    %c0_3 = arith.constant 0 : index
    %c0_4 = arith.constant 0 : index
    %3 = vector.load %arg4[%c0_3, %c0_4] : memref<1x128xf32, #tpu.memory_space<vmem>>, vector<1x128xf32>
    %4 = vector.broadcast %3 : vector<1x128xf32> to vector<128x128xf32>
    %5 = arith.mulf %2, %4 : vector<128x128xf32>
    %c0_5 = arith.constant 0 : index
    %c0_6 = arith.constant 0 : index
    %6 = vector.load %arg5[%c0_5, %c0_6] : memref<1x128xf32, #tpu.memory_space<vmem>>, vector<1x128xf32>
    %7 = vector.broadcast %6 : vector<1x128xf32> to vector<128x128xf32>
    %8 = arith.addf %5, %7 : vector<128x128xf32>
    %c0_7 = arith.constant 0 : index
    %c0_8 = arith.constant 0 : index
    %9 = vector.load %arg6[%c0_7, %c0_8] : memref<128x128xbf16, #tpu.memory_space<vmem>>, vector<128x128xbf16>
    %10 = arith.extf %9 : vector<128x128xbf16> to vector<128x128xf32>
    %11 = arith.addf %8, %10 : vector<128x128xf32>
    %cst_9 = arith.constant 0.000000e+00 : f32
    %12 = vector.broadcast %cst_9 : f32 to vector<128x128xf32>
    %13 = arith.maximumf %11, %12 : vector<128x128xf32>
    %c0_10 = arith.constant 0 : index
    %c0_11 = arith.constant 0 : index
    %14 = vector.load %arg7[%c0_10, %c0_11] : memref<128x128xf32, #tpu.memory_space<vmem>>, vector<128x128xf32>
    tpu.vector_store %arg7[%c0_10, %c0_11], %13 {strides = array<i32>} : memref<128x128xf32, #tpu.memory_space<vmem>>, vector<128x128xf32>,
    return
  }
  func.func @transform_0(%arg0: i32, %arg1: i32) -> (i32, i32) {
    %c0_i32 = arith.constant 0 : i32
    %c0_i32_0 = arith.constant 0 : i32
    return %arg0, %c0_i32 : i32, i32
  }
  func.func @transform_1(%arg0: i32, %arg1: i32) -> (i32, i32) {
    %c0_i32 = arith.constant 0 : i32
    %c0_i32_0 = arith.constant 0 : i32
    return %c0_i32, %arg1 : i32, i32
  }
  func.func @transform_2(%arg0: i32, %arg1: i32) -> (i32, i32) {
    %c0_i32 = arith.constant 0 : i32
    %c0_i32_0 = arith.constant 0 : i32
    return %c0_i32, %arg1 : i32, i32
  }
  func.func @transform_3(%arg0: i32, %arg1: i32) -> (i32, i32) {
    %c0_i32 = arith.constant 0 : i32
    %c0_i32_0 = arith.constant 0 : i32
    return %c0_i32, %arg1 : i32, i32
  }
  func.func @transform_4(%arg0: i32, %arg1: i32) -> (i32, i32) {
    %c0_i32 = arith.constant 0 : i32
    return %arg0, %arg1 : i32, i32
  }
  func.func @transform_5(%arg0: i32, %arg1: i32) -> (i32, i32) {
    %c0_i32 = arith.constant 0 : i32
    return %arg0, %arg1 : i32, i32
  }
}

</mosaic_0001>

<llo_original>
// kernel: _lambda_.4
$region0: #{_lambda_.4}
  #allocation0 [shape = 'u32[]', space=smem, size = 0x4, offset = 0x4, fixed_abs, tag = 'smem constant byte address 0x4 - core index']
  #allocation1 [shape = 'u32[144,128]{1,0:T(1,128)}', space=vmem, size = 0x12000, scoped, tag = 'internal scratch']
  %s0 = inlined_call_operand.vmem [shape: bf16[128,128], index: 0, kind: input, shape index: {}]
  %s1 = inlined_call_operand.vmem [shape: bf16[128,128], index: 1, kind: input, shape index: {}]
  %s2 = inlined_call_operand.vmem [shape: f32[1,128], index: 2, kind: input, shape index: {}]
  %s3 = inlined_call_operand.vmem [shape: f32[1,128], index: 3, kind: input, shape index: {}]
  %s4 = inlined_call_operand.vmem [shape: bf16[128,128], index: 4, kind: output, shape index: {}]
  %s5 = sld [smem:[#allocation0]]
  $region26: #{_lambda_.4} parent=0
    _
  %s7 = ssub.s32 1, %s5
  %s8 = scalar_select 0, %s7, %s5
  // Predicated region
  $region2: #{_lambda_.4} parent=0 // pred_check
    _
  $region3: #{_lambda_.4} parent=0 // pred_check_branch
    %10 = sbr.rel (0) target = $region5
  $region4: #{_lambda_.4} parent=0 // pred_region
    _
  $region5: #{_lambda_.4} parent=0 // pred_fallthru
    _
  // Predicated region
  $region6: #{_lambda_.4} parent=0 // pred_check
    _
  $region7: #{_lambda_.4} parent=0 // pred_check_branch
    %12 = sbr.rel (0) target = $region9
  $region8: #{_lambda_.4} parent=0 // pred_region
    _
  $region9: #{_lambda_.4} parent=0 // pred_fallthru
    _
  // Predicated region
  $region10: #{_lambda_.4} parent=0 // pred_check
    _
  $region11: #{_lambda_.4} parent=0 // pred_check_branch
    %14 = sbr.rel (0) target = $region13
  $region12: #{_lambda_.4} parent=0 // pred_region
    _
  $region13: #{_lambda_.4} parent=0 // pred_fallthru
    _
  // Predicated region
  $region14: #{_lambda_.4} parent=0 // pred_check
    _
  $region15: #{_lambda_.4} parent=0 // pred_check_branch
    %16 = sbr.rel (0) target = $region17
  $region16: #{_lambda_.4} parent=0 // pred_region
    _
  $region17: #{_lambda_.4} parent=0 // pred_fallthru
    _
  %v18 = vld [vmem:[%s0] sm:$0xf]
  %v19 = vld [vmem:[%s0 + $0x4] sm:$0xf]
  %v20 = vld [vmem:[%s0 + $0x8] sm:$0xf]
  %v21 = vld [vmem:[%s0 + $0xc] sm:$0xf]
  %v22 = vld [vmem:[%s0 + $0x10] sm:$0xf]
  %v23 = vld [vmem:[%s0 + $0x14] sm:$0xf]
  %v24 = vld [vmem:[%s0 + $0x18] sm:$0xf]
  %v25 = vld [vmem:[%s0 + $0x1c] sm:$0xf]
  %v26 = vld [vmem:[%s0 + $0x20] sm:$0xf]
  %v27 = vld [vmem:[%s0 + $0x24] sm:$0xf]
  %v28 = vld [vmem:[%s0 + $0x28] sm:$0xf]
  %v29 = vld [vmem:[%s0 + $0x2c] sm:$0xf]
  %v30 = vld [vmem:[%s0 + $0x30] sm:$0xf]
  %v31 = vld [vmem:[%s0 + $0x34] sm:$0xf]
  %v32 = vld [vmem:[%s0 + $0x38] sm:$0xf]
  %v33 = vld [vmem:[%s0 + $0x3c] sm:$0xf]
  %v34 = vld [vmem:[%s1] sm:$0xf]
  %v35 = vld [vmem:[%s1 + $0x4] sm:$0xf]
  %v36 = vld [vmem:[%s1 + $0x8] sm:$0xf]
  %v37 = vld [vmem:[%s1 + $0xc] sm:$0xf]
  %v38 = vld [vmem:[%s1 + $0x10] sm:$0xf]
  %v39 = vld [vmem:[%s1 + $0x14] sm:$0xf]
  %v40 = vld [vmem:[%s1 + $0x18] sm:$0xf]
  %v41 = vld [vmem:[%s1 + $0x1c] sm:$0xf]
  %v42 = vld [vmem:[%s1 + $0x20] sm:$0xf]
  %v43 = vld [vmem:[%s1 + $0x24] sm:$0xf]
  %v44 = vld [vmem:[%s1 + $0x28] sm:$0xf]
  %v45 = vld [vmem:[%s1 + $0x2c] sm:$0xf]
  %v46 = vld [vmem:[%s1 + $0x30] sm:$0xf]
  %v47 = vld [vmem:[%s1 + $0x34] sm:$0xf]
  %v48 = vld [vmem:[%s1 + $0x38] sm:$0xf]
  %v49 = vld [vmem:[%s1 + $0x3c] sm:$0xf]
  %v66 = vunpack.c.l.b16 %v18
  %v67 = vunpack.c.l.b16 %v19
  %v68 = vunpack.c.l.b16 %v20
  %v69 = vunpack.c.l.b16 %v21
  %v70 = vunpack.c.l.b16 %v22
  %v71 = vunpack.c.l.b16 %v23
  %v72 = vunpack.c.l.b16 %v24
  %v73 = vunpack.c.l.b16 %v25
  %v74 = vunpack.c.l.b16 %v26
  %v75 = vunpack.c.l.b16 %v27
  %v76 = vunpack.c.l.b16 %v28
  %v77 = vunpack.c.l.b16 %v29
  %v78 = vunpack.c.l.b16 %v30
  %v79 = vunpack.c.l.b16 %v31
  %v80 = vunpack.c.l.b16 %v32
  %v81 = vunpack.c.l.b16 %v33
  %v82 = vpack.c.b16 %v67, %v66
  %v83 = vpack.c.b16 %v69, %v68
  %v84 = vpack.c.b16 %v71, %v70
  %v85 = vpack.c.b16 %v73, %v72
  %v86 = vpack.c.b16 %v75, %v74
  %v87 = vpack.c.b16 %v77, %v76
  %v88 = vpack.c.b16 %v79, %v78
  %v89 = vpack.c.b16 %v81, %v80
  %v114 = vunpack.c.l.b16 %v34
  %v115 = vunpack.c.l.b16 %v35
  %v116 = vunpack.c.l.b16 %v36
  %v117 = vunpack.c.l.b16 %v37
  %v118 = vunpack.c.l.b16 %v38
  %v119 = vunpack.c.l.b16 %v39
  %v120 = vunpack.c.l.b16 %v40
  %v121 = vunpack.c.l.b16 %v41
  %v122 = vunpack.c.l.b16 %v42
  %v123 = vunpack.c.l.b16 %v43
  %v124 = vunpack.c.l.b16 %v44
  %v125 = vunpack.c.l.b16 %v45
  %v126 = vunpack.c.l.b16 %v46
  %v127 = vunpack.c.l.b16 %v47
  %v128 = vunpack.c.l.b16 %v48
  %v129 = vunpack.c.l.b16 %v49
  %v130 = vpack.c.b16 %v115, %v114
  %v131 = vpack.c.b16 %v117, %v116
  %v132 = vpack.c.b16 %v119, %v118
  %v133 = vpack.c.b16 %v121, %v120
  %v134 = vpack.c.b16 %v123, %v122
  %v135 = vpack.c.b16 %v125, %v124
  %v136 = vpack.c.b16 %v127, %v126
  %v137 = vpack.c.b16 %v129, %v128
  %146 = vmatprep.subr.bf16.mxu0 0
  %147 = vmatpush1.bf16.msra.mxu0 %v130
  %148 = vmatprep.subr.bf16.mxu0 0
  %149 = vmatpush1.bf16.msra.mxu0 %v131
  %150 = vmatprep.subr.bf16.mxu0 0
  %151 = vmatpush1.bf16.msra.mxu0 %v132
  %152 = vmatprep.subr.bf16.mxu0 0
  %153 = vmatpush1.bf16.msra.mxu0 %v133
  %154 = vmatprep.subr.bf16.mxu0 0
  %155 = vmatpush1.bf16.msra.mxu0 %v134
  %156 = vmatprep.subr.bf16.mxu0 0
  %157 = vmatpush1.bf16.msra.mxu0 %v135
  %158 = vmatprep.subr.bf16.mxu0 0
  %159 = vmatpush1.bf16.msra.mxu0 %v136
  %160 = vmatprep.subr.bf16.mxu0 0
  %161 = vmatpush1.bf16.msra.mxu0 %v137
  %162 = vmatprep.subr.bf16.mxu0 0
  %163 = vmatpush1.bf16.msra.mxu0 0
  %164 = vmatprep.subr.bf16.mxu0 0
  %165 = vmatpush1.bf16.msra.mxu0 0
  %166 = vmatprep.subr.bf16.mxu0 0
  %167 = vmatpush1.bf16.msra.mxu0 0
  %168 = vmatprep.subr.bf16.mxu0 0
  %169 = vmatpush1.bf16.msra.mxu0 0
  %170 = vmatprep.subr.bf16.mxu0 0
  %171 = vmatpush1.bf16.msra.mxu0 0
  %172 = vmatprep.subr.bf16.mxu0 0
  %173 = vmatpush1.bf16.msra.mxu0 0
  %174 = vmatprep.subr.bf16.mxu0 0
  %175 = vmatpush1.bf16.msra.mxu0 0
  %176 = vmatprep.subr.bf16.mxu0 0
  %177 = vmatpush1.bf16.msra.mxu0 0
  %178 = vmatprep.mubr.bf16.mxu0 0
  %179 = vmatmul.mubr.bf16.gmra.mrb[0].mxu0 %v82
  %v180 = vpop.f32.mrb[0].mxu0
  %v181 = vadd.f32 0.0, %v180
  %v182 = vpop.f32.mrb[0].mxu0
  %v183 = vpop.f32.mrb[0].mxu0
  %v184 = vadd.f32 0.0, %v183
  %v185 = vpop.f32.mrb[0].mxu0
  %186 = vmatprep.mubr.bf16.mxu0 0
  %187 = vmatmul.mubr.bf16.gmra.mrb[0].mxu0 %v83
  %v188 = vpop.f32.mrb[0].mxu0
  %v189 = vadd.f32 0.0, %v188
  %v190 = vpop.f32.mrb[0].mxu0
  %v191 = vpop.f32.mrb[0].mxu0
  %v192 = vadd.f32 0.0, %v191
  %v193 = vpop.f32.mrb[0].mxu0
  %194 = vmatprep.mubr.bf16.mxu0 0
  %195 = vmatmul.mubr.bf16.gmra.mrb[0].mxu0 %v84
  %v196 = vpop.f32.mrb[0].mxu0
  %v197 = vadd.f32 0.0, %v196
  %v198 = vpop.f32.mrb[0].mxu0
  %v199 = vpop.f32.mrb[0].mxu0
  %v200 = vadd.f32 0.0, %v199
  %v201 = vpop.f32.mrb[0].mxu0
  %202 = vmatprep.mubr.bf16.mxu0 0
  %203 = vmatmul.mubr.bf16.gmra.mrb[0].mxu0 %v85
  %v204 = vpop.f32.mrb[0].mxu0
  %v205 = vadd.f32 0.0, %v204
  %v206 = vpop.f32.mrb[0].mxu0
  %v207 = vpop.f32.mrb[0].mxu0
  %v208 = vadd.f32 0.0, %v207
  %v209 = vpop.f32.mrb[0].mxu0
  %210 = vmatprep.mubr.bf16.mxu0 0
  %211 = vmatmul.mubr.bf16.gmra.mrb[0].mxu0 %v86
  %v212 = vpop.f32.mrb[0].mxu0
  %v213 = vadd.f32 0.0, %v212
  %v214 = vpop.f32.mrb[0].mxu0
  %v215 = vpop.f32.mrb[0].mxu0
  %v216 = vadd.f32 0.0, %v215
  %v217 = vpop.f32.mrb[0].mxu0
  %218 = vmatprep.mubr.bf16.mxu0 0
  %219 = vmatmul.mubr.bf16.gmra.mrb[0].mxu0 %v87
  %v220 = vpop.f32.mrb[0].mxu0
  %v221 = vadd.f32 0.0, %v220
  %v222 = vpop.f32.mrb[0].mxu0
  %v223 = vpop.f32.mrb[0].mxu0
  %v224 = vadd.f32 0.0, %v223
  %v225 = vpop.f32.mrb[0].mxu0
  %226 = vmatprep.mubr.bf16.mxu0 0
  %227 = vmatmul.mubr.bf16.gmra.mrb[0].mxu0 %v88
  %v228 = vpop.f32.mrb[0].mxu0
  %v229 = vadd.f32 0.0, %v228
  %v230 = vpop.f32.mrb[0].mxu0
  %v231 = vpop.f32.mrb[0].mxu0
  %v232 = vadd.f32 0.0, %v231
  %v233 = vpop.f32.mrb[0].mxu0
  %234 = vmatprep.mubr.bf16.mxu0 0
  %235 = vmatmul.mubr.bf16.gmra.mrb[0].mxu0 %v89
  %v236 = vpop.f32.mrb[0].mxu0
  %v237 = vadd.f32 0.0, %v236
  %v238 = vpop.f32.mrb[0].mxu0
  %v239 = vpop.f32.mrb[0].mxu0
  %v240 = vadd.f32 0.0, %v239
  %v241 = vpop.f32.mrb[0].mxu0
  %242 = vdwg.mxu0
  %v243 = vld [vmem:[%s2] sm:$0x1]
  %v245 = vlaneseq
  %v246 = vshrl.u32 %v245, 7
  %v247 = vsub.s32 0, %v246
  %v248 = vrot.slane %v243, %v247
  %v250 = vmul.f32 %v181, %v248
  %v251 = vmul.f32 %v184, %v248
  %v252 = vmul.f32 %v189, %v248
  %v253 = vmul.f32 %v192, %v248
  %v254 = vmul.f32 %v197, %v248
  %v255 = vmul.f32 %v200, %v248
  %v256 = vmul.f32 %v205, %v248
  %v257 = vmul.f32 %v208, %v248
  %v258 = vmul.f32 %v213, %v248
  %v259 = vmul.f32 %v216, %v248
  %v260 = vmul.f32 %v221, %v248
  %v261 = vmul.f32 %v224, %v248
  %v262 = vmul.f32 %v229, %v248
  %v263 = vmul.f32 %v232, %v248
  %v264 = vmul.f32 %v237, %v248
  %v265 = vmul.f32 %v240, %v248
  %v266 = vld [vmem:[%s3] sm:$0x1]
  %v268 = vlaneseq
  %v269 = vshrl.u32 %v268, 7
  %v270 = vsub.s32 0, %v269
  %v271 = vrot.slane %v266, %v270
  %v273 = vadd.f32 %v250, %v271
  %v274 = vadd.f32 %v251, %v271
  %v275 = vadd.f32 %v252, %v271
  %v276 = vadd.f32 %v253, %v271
  %v277 = vadd.f32 %v254, %v271
  %v278 = vadd.f32 %v255, %v271
  %v279 = vadd.f32 %v256, %v271
  %v280 = vadd.f32 %v257, %v271
  %v281 = vadd.f32 %v258, %v271
  %v282 = vadd.f32 %v259, %v271
  %v283 = vadd.f32 %v260, %v271
  %v284 = vadd.f32 %v261, %v271
  %v285 = vadd.f32 %v262, %v271
  %v286 = vadd.f32 %v263, %v271
  %v287 = vadd.f32 %v264, %v271
  %v288 = vadd.f32 %v265, %v271
  %v289 = vpack.c.bf16 %v274, %v273
  %v290 = vpack.c.bf16 %v276, %v275
  %v291 = vpack.c.bf16 %v278, %v277
  %v292 = vpack.c.bf16 %v280, %v279
  %v293 = vpack.c.bf16 %v282, %v281
  %v294 = vpack.c.bf16 %v284, %v283
  %v295 = vpack.c.bf16 %v286, %v285
  %v296 = vpack.c.bf16 %v288, %v287
  %v305 = vunpack.c.l.b16 %v289
  %v306 = vunpack.c.h.b16 %v289
  %v307 = vunpack.c.l.b16 %v290
  %v308 = vunpack.c.h.b16 %v290
  %v309 = vunpack.c.l.b16 %v291
  %v310 = vunpack.c.h.b16 %v291
  %v311 = vunpack.c.l.b16 %v292
  %v312 = vunpack.c.h.b16 %v292
  %v313 = vunpack.c.l.b16 %v293
  %v314 = vunpack.c.h.b16 %v293
  %v315 = vunpack.c.l.b16 %v294
  %v316 = vunpack.c.h.b16 %v294
  %v317 = vunpack.c.l.b16 %v295
  %v318 = vunpack.c.h.b16 %v295
  %v319 = vunpack.c.l.b16 %v296
  %v320 = vunpack.c.h.b16 %v296
  %v321 = vpack.c.b16 %v305, %v305
  %v322 = vpack.c.b16 %v306, %v306
  %v323 = vpack.c.b16 %v307, %v307
  %v324 = vpack.c.b16 %v308, %v308
  %v325 = vpack.c.b16 %v309, %v309
  %v326 = vpack.c.b16 %v310, %v310
  %v327 = vpack.c.b16 %v311, %v311
  %v328 = vpack.c.b16 %v312, %v312
  %v329 = vpack.c.b16 %v313, %v313
  %v330 = vpack.c.b16 %v314, %v314
  %v331 = vpack.c.b16 %v315, %v315
  %v332 = vpack.c.b16 %v316, %v316
  %v333 = vpack.c.b16 %v317, %v317
  %v334 = vpack.c.b16 %v318, %v318
  %v335 = vpack.c.b16 %v319, %v319
  %v336 = vpack.c.b16 %v320, %v320
  %353 = vst [vmem:[%s4] sm:$0xf] %v321
  %354 = vst [vmem:[%s4 + $0x4] sm:$0xf] %v322
  %355 = vst [vmem:[%s4 + $0x8] sm:$0xf] %v323
  %356 = vst [vmem:[%s4 + $0xc] sm:$0xf] %v324
  %357 = vst [vmem:[%s4 + $0x10] sm:$0xf] %v325
  %358 = vst [vmem:[%s4 + $0x14] sm:$0xf] %v326
  %359 = vst [vmem:[%s4 + $0x18] sm:$0xf] %v327
  %360 = vst [vmem:[%s4 + $0x1c] sm:$0xf] %v328
  %361 = vst [vmem:[%s4 + $0x20] sm:$0xf] %v329
  %362 = vst [vmem:[%s4 + $0x24] sm:$0xf] %v330
  %363 = vst [vmem:[%s4 + $0x28] sm:$0xf] %v331
  %364 = vst [vmem:[%s4 + $0x2c] sm:$0xf] %v332
  %365 = vst [vmem:[%s4 + $0x30] sm:$0xf] %v333
  %366 = vst [vmem:[%s4 + $0x34] sm:$0xf] %v334
  %367 = vst [vmem:[%s4 + $0x38] sm:$0xf] %v335
  %368 = vst [vmem:[%s4 + $0x3c] sm:$0xf] %v336
  // Predicated region
  $region18: #{_lambda_.4} parent=0 // pred_check
    _
  $region19: #{_lambda_.4} parent=0 // pred_check_branch
    %370 = sbr.rel (0) target = $region21
  $region20: #{_lambda_.4} parent=0 // pred_region
    _
  $region21: #{_lambda_.4} parent=0 // pred_fallthru
    _
  // Predicated region
  $region22: #{_lambda_.4} parent=0 // pred_check
    _
  $region23: #{_lambda_.4} parent=0 // pred_check_branch
    %372 = sbr.rel (0) target = $region25
  $region24: #{_lambda_.4} parent=0 // pred_region
    _
  $region25: #{_lambda_.4} parent=0 // pred_fallthru
    _

// kernel: _lambda_.3
$region0: #{_lambda_.3}
  #allocation0 [shape = 'u32[]', space=smem, size = 0x4, offset = 0x4, fixed_abs, tag = 'smem constant byte address 0x4 - core index']
  #allocation1 [shape = 'u32[144,128]{1,0:T(1,128)}', space=vmem, size = 0x12000, scoped, tag = 'internal scratch']
  %s0 = inlined_call_operand.vmem [shape: bf16[128,1152], index: 0, kind: input, shape index: {}]
  %s1 = inlined_call_operand.vmem [shape: bf16[1152,128], index: 1, kind: input, shape index: {}]
  %s2 = inlined_call_operand.vmem [shape: f32[1,128], index: 2, kind: input, shape index: {}]
  %s3 = inlined_call_operand.vmem [shape: f32[1,128], index: 3, kind: input, shape index: {}]
  %s4 = inlined_call_operand.vmem [shape: bf16[128,128], index: 4, kind: output, shape index: {}]
  %s5 = sld [smem:[#allocation0]]
  $region26: #{_lambda_.3} parent=0
    _
  %s7 = ssub.s32 1, %s5
  %s8 = scalar_select 0, %s7, %s5
  // Predicated region
  $region2: #{_lambda_.3} parent=0 // pred_check
    _
  $region3: #{_lambda_.3} parent=0 // pred_check_branch
    %10 = sbr.rel (0) target = $region5
  $region4: #{_lambda_.3} parent=0 // pred_region
    _
  $region5: #{_lambda_.3} parent=0 // pred_fallthru
    _
  // Predicated region
  $region6: #{_lambda_.3} parent=0 // pred_check
    _
  $region7: #{_lambda_.3} parent=0 // pred_check_branch
    %12 = sbr.rel (0) target = $region9
  $region8: #{_lambda_.3} parent=0 // pred_region
    _
  $region9: #{_lambda_.3} parent=0 // pred_fallthru
    _
  // Predicated region
  $region10: #{_lambda_.3} parent=0 // pred_check
    _
  $region11: #{_lambda_.3} parent=0 // pred_check_branch
    %14 = sbr.rel (0) target = $region13
  $region12: #{_lambda_.3} parent=0 // pred_region
    _
  $region13: #{_lambda_.3} parent=0 // pred_fallthru
    _
  // Predicated region
  $region14: #{_lambda_.3} parent=0 // pred_check
    _
  $region15: #{_lambda_.3} parent=0 // pred_check_branch
    %16 = sbr.rel (0) target = $region17
  $region16: #{_lambda_.3} parent=0 // pred_region
    _
  $region17: #{_lambda_.3} parent=0 // pred_fallthru
    _
  %v18 = vld [vmem:[%s0] sm:$0xff]
  %v19 = vld [vmem:[%s0 + $0x8] sm:$0xff]
  %v20 = vld [vmem:[%s0 + $0x10] sm:$0xff]
  %v21 = vld [vmem:[%s0 + $0x18] sm:$0xff]
  %v22 = vld [vmem:[%s0 + $0x20] sm:$0xf]
  %v23 = vld [vmem:[%s0 + $0x24] sm:$0xff]
  %v24 = vld [vmem:[%s0 + $0x2c] sm:$0xff]
  %v25 = vld [vmem:[%s0 + $0x34] sm:$0xff]
  %v26 = vld [vmem:[%s0 + $0x3c] sm:$0xff]
  %v27 = vld [vmem:[%s0 + $0x44] sm:$0xf]
  %v28 = vld [vmem:[%s0 + $0x48] sm:$0xff]
  %v29 = vld [vmem:[%s0 + $0x50] sm:$0xff]
  %v30 = vld [vmem:[%s0 + $0x58] sm:$0xff]
  %v31 = vld [vmem:[%s0 + $0x60] sm:$0xff]
  %v32 = vld [vmem:[%s0 + $0x68] sm:$0xf]
  %v33 = vld [vmem:[%s0 + $0x6c] sm:$0xff]
  %v34 = vld [vmem:[%s0 + $0x74] sm:$0xff]
  %v35 = vld [vmem:[%s0 + $0x7c] sm:$0xff]
  %v36 = vld [vmem:[%s0 + $0x84] sm:$0xff]
  %v37 = vld [vmem:[%s0 + $0x8c] sm:$0xf]
  %v38 = vld [vmem:[%s0 + $0x90] sm:$0xff]
  %v39 = vld [vmem:[%s0 + $0x98] sm:$0xff]
  %v40 = vld [vmem:[%s0 + $0xa0] sm:$0xff]
  %v41 = vld [vmem:[%s0 + $0xa8] sm:$0xff]
  %v42 = vld [vmem:[%s0 + $0xb0] sm:$0xf]
  %v43 = vld [vmem:[%s0 + $0xb4] sm:$0xff]
  %v44 = vld [vmem:[%s0 + $0xbc] sm:$0xff]
  %v45 = vld [vmem:[%s0 + $0xc4] sm:$0xff]
  %v46 = vld [vmem:[%s0 + $0xcc] sm:$0xff]
  %v47 = vld [vmem:[%s0 + $0xd4] sm:$0xf]
  %v48 = vld [vmem:[%s0 + $0xd8] sm:$0xff]
  %v49 = vld [vmem:[%s0 + $0xe0] sm:$0xff]
  %v50 = vld [vmem:[%s0 + $0xe8] sm:$0xff]
  %v51 = vld [vmem:[%s0 + $0xf0] sm:$0xff]
  %v52 = vld [vmem:[%s0 + $0xf8] sm:$0xf]
  %v53 = vld [vmem:[%s0 + $0xfc] sm:$0xff]
  %v54 = vld [vmem:[%s0 + $0x104] sm:$0xff]
  %v55 = vld [vmem:[%s0 + $0x10c] sm:$0xff]
  %v56 = vld [vmem:[%s0 + $0x114] sm:$0xff]
  %v57 = vld [vmem:[%s0 + $0x11c] sm:$0xf]
  %v58 = vld [vmem:[%s0 + $0x120] sm:$0xff]
  %v59 = vld [vmem:[%s0 + $0x128] sm:$0xff]
  %v60 = vld [vmem:[%s0 + $0x130] sm:$0xff]
  %v61 = vld [vmem:[%s0 + $0x138] sm:$0xff]
  %v62 = vld [vmem:[%s0 + $0x140] sm:$0xf]
  %v63 = vld [vmem:[%s0 + $0x144] sm:$0xff]
  %v64 = vld [vmem:[%s0 + $0x14c] sm:$0xff]
  %v65 = vld [vmem:[%s0 + $0x154] sm:$0xff]
  %v66 = vld [vmem:[%s0 + $0x15c] sm:$0xff]
  %v67 = vld [vmem:[%s0 + $0x164] sm:$0xf]
  %v68 = vld [vmem:[%s0 + $0x168] sm:$0xff]
  %v69 = vld [vmem:[%s0 + $0x170] sm:$0xff]
  %v70 = vld [vmem:[%s0 + $0x178] sm:$0xff]
  %v71 = vld [vmem:[%s0 + $0x180] sm:$0xff]
  %v72 = vld [vmem:[%s0 + $0x188] sm:$0xf]
  %v73 = vld [vmem:[%s0 + $0x18c] sm:$0xff]
  %v74 = vld [vmem:[%s0 + $0x194] sm:$0xff]
  %v75 = vld [vmem:[%s0 + $0x19c] sm:$0xff]
  %v76 = vld [vmem:[%s0 + $0x1a4] sm:$0xff]
  %v77 = vld [vmem:[%s0 + $0x1ac] sm:$0xf]
  %v78 = vld [vmem:[%s0 + $0x1b0] sm:$0xff]
  %v79 = vld [vmem:[%s0 + $0x1b8] sm:$0xff]
  %v80 = vld [vmem:[%s0 + $0x1c0] sm:$0xff]
  %v81 = vld [vmem:[%s0 + $0x1c8] sm:$0xff]
  %v82 = vld [vmem:[%s0 + $0x1d0] sm:$0xf]
  %v83 = vld [vmem:[%s0 + $0x1d4] sm:$0xff]
  %v84 = vld [vmem:[%s0 + $0x1dc] sm:$0xff]
  %v85 = vld [vmem:[%s0 + $0x1e4] sm:$0xff]
  %v86 = vld [vmem:[%s0 + $0x1ec] sm:$0xff]
  %v87 = vld [vmem:[%s0 + $0x1f4] sm:$0xf]
  %v88 = vld [vmem:[%s0 + $0x1f8] sm:$0xff]
  %v89 = vld [vmem:[%s0 + $0x200] sm:$0xff]
  %v90 = vld [vmem:[%s0 + $0x208] sm:$0xff]
  %v91 = vld [vmem:[%s0 + $0x210] sm:$0xff]
  %v92 = vld [vmem:[%s0 + $0x218] sm:$0xf]
  %v93 = vld [vmem:[%s0 + $0x21c] sm:$0xff]
  %v94 = vld [vmem:[%s0 + $0x224] sm:$0xff]
  %v95 = vld [vmem:[%s0 + $0x22c] sm:$0xff]
  %v96 = vld [vmem:[%s0 + $0x234] sm:$0xff]
  %v97 = vld [vmem:[%s0 + $0x23c] sm:$0xf]
  %v98 = vld [vmem:[%s1] sm:$0xf]
  %v99 = vld [vmem:[%s1 + $0x4] sm:$0xf]
  %v100 = vld [vmem:[%s1 + $0x8] sm:$0xf]
  %v101 = vld [vmem:[%s1 + $0xc] sm:$0xf]
  %v102 = vld [vmem:[%s1 + $0x10] sm:$0xf]
  %v103 = vld [vmem:[%s1 + $0x14] sm:$0xf]
  %v104 = vld [vmem:[%s1 + $0x18] sm:$0xf]
  %v105 = vld [vmem:[%s1 + $0x1c] sm:$0xf]
  %v106 = vld [vmem:[%s1 + $0x20] sm:$0xf]
  %v107 = vld [vmem:[%s1 + $0x24] sm:$0xf]
  %v108 = vld [vmem:[%s1 + $0x28] sm:$0xf]
  %v109 = vld [vmem:[%s1 + $0x2c] sm:$0xf]
  %v110 = vld [vmem:[%s1 + $0x30] sm:$0xf]
  %v111 = vld [vmem:[%s1 + $0x34] sm:$0xf]
  %v112 = vld [vmem:[%s1 + $0x38] sm:$0xf]
  %v113 = vld [vmem:[%s1 + $0x3c] sm:$0xf]
  %v114 = vld [vmem:[%s1 + $0x40] sm:$0xf]
  %v115 = vld [vmem:[%s1 + $0x44] sm:$0xf]
  %v116 = vld [vmem:[%s1 + $0x48] sm:$0xf]
  %v117 = vld [vmem:[%s1 + $0x4c] sm:$0xf]
  %v118 = vld [vmem:[%s1 + $0x50] sm:$0xf]
  %v119 = vld [vmem:[%s1 + $0x54] sm:$0xf]
  %v120 = vld [vmem:[%s1 + $0x58] sm:$0xf]
  %v121 = vld [vmem:[%s1 + $0x5c] sm:$0xf]
  %v122 = vld [vmem:[%s1 + $0x60] sm:$0xf]
  %v123 = vld [vmem:[%s1 + $0x64] sm:$0xf]
  %v124 = vld [vmem:[%s1 + $0x68] sm:$0xf]
  %v125 = vld [vmem:[%s1 + $0x6c] sm:$0xf]
  %v126 = vld [vmem:[%s1 + $0x70] sm:$0xf]
  %v127 = vld [vmem:[%s1 + $0x74] sm:$0xf]
  %v128 = vld [vmem:[%s1 + $0x78] sm:$0xf]
  %v129 = vld [vmem:[%s1 + $0x7c] sm:$0xf]
  %v130 = vld [vmem:[%s1 + $0x80] sm:$0xf]
  %v131 = vld [vmem:[%s1 + $0x84] sm:$0xf]
  %v132 = vld [vmem:[%s1 + $0x88] sm:$0xf]
  %v133 = vld [vmem:[%s1 + $0x8c] sm:$0xf]
  %v134 = vld [vmem:[%s1 + $0x90] sm:$0xf]
  %v135 = vld [vmem:[%s1 + $0x94] sm:$0xf]
  %v136 = vld [vmem:[%s1 + $0x98] sm:$0xf]
  %v137 = vld [vmem:[%s1 + $0x9c] sm:$0xf]
  %v138 = vld [vmem:[%s1 + $0xa0] sm:$0xf]
  %v139 = vld [vmem:[%s1 + $0xa4] sm:$0xf]
  %v140 = vld [vmem:[%s1 + $0xa8] sm:$0xf]
  %v141 = vld [vmem:[%s1 + $0xac] sm:$0xf]
  %v142 = vld [vmem:[%s1 + $0xb0] sm:$0xf]
  %v143 = vld [vmem:[%s1 + $0xb4] sm:$0xf]
  %v144 = vld [vmem:[%s1 + $0xb8] sm:$0xf]
  %v145 = vld [vmem:[%s1 + $0xbc] sm:$0xf]
  %v146 = vld [vmem:[%s1 + $0xc0] sm:$0xf]
  %v147 = vld [vmem:[%s1 + $0xc4] sm:$0xf]
  %v148 = vld [vmem:[%s1 + $0xc8] sm:$0xf]
  %v149 = vld [vmem:[%s1 + $0xcc] sm:$0xf]
  %v150 = vld [vmem:[%s1 + $0xd0] sm:$0xf]
  %v151 = vld [vmem:[%s1 + $0xd4] sm:$0xf]
  %v152 = vld [vmem:[%s1 + $0xd8] sm:$0xf]
  %v153 = vld [vmem:[%s1 + $0xdc] sm:$0xf]
  %v154 = vld [vmem:[%s1 + $0xe0] sm:$0xf]
  %v155 = vld [vmem:[%s1 + $0xe4] sm:$0xf]
  %v156 = vld [vmem:[%s1 + $0xe8] sm:$0xf]
  %v157 = vld [vmem:[%s1 + $0xec] sm:$0xf]
  %v158 = vld [vmem:[%s1 + $0xf0] sm:$0xf]
  %v159 = vld [vmem:[%s1 + $0xf4] sm:$0xf]
  %v160 = vld [vmem:[%s1 + $0xf8] sm:$0xf]
  %v161 = vld [vmem:[%s1 + $0xfc] sm:$0xf]
  %v162 = vld [vmem:[%s1 + $0x100] sm:$0xf]
  %v163 = vld [vmem:[%s1 + $0x104] sm:$0xf]
  %v164 = vld [vmem:[%s1 + $0x108] sm:$0xf]
  %v165 = vld [vmem:[%s1 + $0x10c] sm:$0xf]
  %v166 = vld [vmem:[%s1 + $0x110] sm:$0xf]
  %v167 = vld [vmem:[%s1 + $0x114] sm:$0xf]
  %v168 = vld [vmem:[%s1 + $0x118] sm:$0xf]
  %v169 = vld [vmem:[%s1 + $0x11c] sm:$0xf]
  %v170 = vld [vmem:[%s1 + $0x120] sm:$0xf]
  %v171 = vld [vmem:[%s1 + $0x124] sm:$0xf]
  %v172 = vld [vmem:[%s1 + $0x128] sm:$0xf]
  %v173 = vld [vmem:[%s1 + $0x12c] sm:$0xf]
  %v174 = vld [vmem:[%s1 + $0x130] sm:$0xf]
  %v175 = vld [vmem:[%s1 + $0x134] sm:$0xf]
  %v176 = vld [vmem:[%s1 + $0x138] sm:$0xf]
  %v177 = vld [vmem:[%s1 + $0x13c] sm:$0xf]
  %v178 = vld [vmem:[%s1 + $0x140] sm:$0xf]
  %v179 = vld [vmem:[%s1 + $0x144] sm:$0xf]
  %v180 = vld [vmem:[%s1 + $0x148] sm:$0xf]
  %v181 = vld [vmem:[%s1 + $0x14c] sm:$0xf]
  %v182 = vld [vmem:[%s1 + $0x150] sm:$0xf]
  %v183 = vld [vmem:[%s1 + $0x154] sm:$0xf]
  %v184 = vld [vmem:[%s1 + $0x158] sm:$0xf]
  %v185 = vld [vmem:[%s1 + $0x15c] sm:$0xf]
  %v186 = vld [vmem:[%s1 + $0x160] sm:$0xf]
  %v187 = vld [vmem:[%s1 + $0x164] sm:$0xf]
  %v188 = vld [vmem:[%s1 + $0x168] sm:$0xf]
  %v189 = vld [vmem:[%s1 + $0x16c] sm:$0xf]
  %v190 = vld [vmem:[%s1 + $0x170] sm:$0xf]
  %v191 = vld [vmem:[%s1 + $0x174] sm:$0xf]
  %v192 = vld [vmem:[%s1 + $0x178] sm:$0xf]
  %v193 = vld [vmem:[%s1 + $0x17c] sm:$0xf]
  %v194 = vld [vmem:[%s1 + $0x180] sm:$0xf]
  %v195 = vld [vmem:[%s1 + $0x184] sm:$0xf]
  %v196 = vld [vmem:[%s1 + $0x188] sm:$0xf]
  %v197 = vld [vmem:[%s1 + $0x18c] sm:$0xf]
  %v198 = vld [vmem:[%s1 + $0x190] sm:$0xf]
  %v199 = vld [vmem:[%s1 + $0x194] sm:$0xf]
  %v200 = vld [vmem:[%s1 + $0x198] sm:$0xf]
  %v201 = vld [vmem:[%s1 + $0x19c] sm:$0xf]
  %v202 = vld [vmem:[%s1 + $0x1a0] sm:$0xf]
  %v203 = vld [vmem:[%s1 + $0x1a4] sm:$0xf]
  %v204 = vld [vmem:[%s1 + $0x1a8] sm:$0xf]
  %v205 = vld [vmem:[%s1 + $0x1ac] sm:$0xf]
  %v206 = vld [vmem:[%s1 + $0x1b0] sm:$0xf]
  %v207 = vld [vmem:[%s1 + $0x1b4] sm:$0xf]
  %v208 = vld [vmem:[%s1 + $0x1b8] sm:$0xf]
  %v209 = vld [vmem:[%s1 + $0x1bc] sm:$0xf]
  %v210 = vld [vmem:[%s1 + $0x1c0] sm:$0xf]
  %v211 = vld [vmem:[%s1 + $0x1c4] sm:$0xf]
  %v212 = vld [vmem:[%s1 + $0x1c8] sm:$0xf]
  %v213 = vld [vmem:[%s1 + $0x1cc] sm:$0xf]
  %v214 = vld [vmem:[%s1 + $0x1d0] sm:$0xf]
  %v215 = vld [vmem:[%s1 + $0x1d4] sm:$0xf]
  %v216 = vld [vmem:[%s1 + $0x1d8] sm:$0xf]
  %v217 = vld [vmem:[%s1 + $0x1dc] sm:$0xf]
  %v218 = vld [vmem:[%s1 + $0x1e0] sm:$0xf]
  %v219 = vld [vmem:[%s1 + $0x1e4] sm:$0xf]
  %v220 = vld [vmem:[%s1 + $0x1e8] sm:$0xf]
  %v221 = vld [vmem:[%s1 + $0x1ec] sm:$0xf]
  %v222 = vld [vmem:[%s1 + $0x1f0] sm:$0xf]
  %v223 = vld [vmem:[%s1 + $0x1f4] sm:$0xf]
  %v224 = vld [vmem:[%s1 + $0x1f8] sm:$0xf]
  %v225 = vld [vmem:[%s1 + $0x1fc] sm:$0xf]
  %v226 = vld [vmem:[%s1 + $0x200] sm:$0xf]
  %v227 = vld [vmem:[%s1 + $0x204] sm:$0xf]
  %v228 = vld [vmem:[%s1 + $0x208] sm:$0xf]
  %v229 = vld [vmem:[%s1 + $0x20c] sm:$0xf]
  %v230 = vld [vmem:[%s1 + $0x210] sm:$0xf]
  %v231 = vld [vmem:[%s1 + $0x214] sm:$0xf]
  %v232 = vld [vmem:[%s1 + $0x218] sm:$0xf]
  %v233 = vld [vmem:[%s1 + $0x21c] sm:$0xf]
  %v234 = vld [vmem:[%s1 + $0x220] sm:$0xf]
  %v235 = vld [vmem:[%s1 + $0x224] sm:$0xf]
  %v236 = vld [vmem:[%s1 + $0x228] sm:$0xf]
  %v237 = vld [vmem:[%s1 + $0x22c] sm:$0xf]
  %v238 = vld [vmem:[%s1 + $0x230] sm:$0xf]
  %v239 = vld [vmem:[%s1 + $0x234] sm:$0xf]
  %v240 = vld [vmem:[%s1 + $0x238] sm:$0xf]
  %v241 = vld [vmem:[%s1 + $0x23c] sm:$0xf]
  %v322 = vunpack.c.l.b16 %v18
  %v323 = vunpack.c.h.b16 %v18
  %v324 = vunpack.c.l.b16 %v19
  %v325 = vunpack.c.h.b16 %v19
  %v326 = vunpack.c.l.b16 %v20
  %v327 = vunpack.c.h.b16 %v20
  %v328 = vunpack.c.l.b16 %v21
  %v329 = vunpack.c.h.b16 %v21
  %v330 = vunpack.c.l.b16 %v22
  %v331 = vunpack.c.l.b16 %v23
  %v332 = vunpack.c.h.b16 %v23
  %v333 = vunpack.c.l.b16 %v24
  %v334 = vunpack.c.h.b16 %v24
  %v335 = vunpack.c.l.b16 %v25
  %v336 = vunpack.c.h.b16 %v25
  %v337 = vunpack.c.l.b16 %v26
  %v338 = vunpack.c.h.b16 %v26
  %v339 = vunpack.c.l.b16 %v27
  %v340 = vunpack.c.l.b16 %v28
  %v341 = vunpack.c.h.b16 %v28
  %v342 = vunpack.c.l.b16 %v29
  %v343 = vunpack.c.h.b16 %v29
  %v344 = vunpack.c.l.b16 %v30
  %v345 = vunpack.c.h.b16 %v30
  %v346 = vunpack.c.l.b16 %v31
  %v347 = vunpack.c.h.b16 %v31
  %v348 = vunpack.c.l.b16 %v32
  %v349 = vunpack.c.l.b16 %v33
  %v350 = vunpack.c.h.b16 %v33
  %v351 = vunpack.c.l.b16 %v34
  %v352 = vunpack.c.h.b16 %v34
  %v353 = vunpack.c.l.b16 %v35
  %v354 = vunpack.c.h.b16 %v35
  %v355 = vunpack.c.l.b16 %v36
  %v356 = vunpack.c.h.b16 %v36
  %v357 = vunpack.c.l.b16 %v37
  %v358 = vunpack.c.l.b16 %v38
  %v359 = vunpack.c.h.b16 %v38
  %v360 = vunpack.c.l.b16 %v39
  %v361 = vunpack.c.h.b16 %v39
  %v362 = vunpack.c.l.b16 %v40
  %v363 = vunpack.c.h.b16 %v40
  %v364 = vunpack.c.l.b16 %v41
  %v365 = vunpack.c.h.b16 %v41
  %v366 = vunpack.c.l.b16 %v42
  %v367 = vunpack.c.l.b16 %v43
  %v368 = vunpack.c.h.b16 %v43
  %v369 = vunpack.c.l.b16 %v44
  %v370 = vunpack.c.h.b16 %v44
  %v371 = vunpack.c.l.b16 %v45
  %v372 = vunpack.c.h.b16 %v45
  %v373 = vunpack.c.l.b16 %v46
  %v374 = vunpack.c.h.b16 %v46
  %v375 = vunpack.c.l.b16 %v47
  %v376 = vunpack.c.l.b16 %v48
  %v377 = vunpack.c.h.b16 %v48
  %v378 = vunpack.c.l.b16 %v49
  %v379 = vunpack.c.h.b16 %v49
  %v380 = vunpack.c.l.b16 %v50
  %v381 = vunpack.c.h.b16 %v50
  %v382 = vunpack.c.l.b16 %v51
  %v383 = vunpack.c.h.b16 %v51
  %v384 = vunpack.c.l.b16 %v52
  %v385 = vunpack.c.l.b16 %v53
  %v386 = vunpack.c.h.b16 %v53
  %v387 = vunpack.c.l.b16 %v54
  %v388 = vunpack.c.h.b16 %v54
  %v389 = vunpack.c.l.b16 %v55
  %v390 = vunpack.c.h.b16 %v55
  %v391 = vunpack.c.l.b16 %v56
  %v392 = vunpack.c.h.b16 %v56
  %v393 = vunpack.c.l.b16 %v57
  %v394 = vunpack.c.l.b16 %v58
  %v395 = vunpack.c.h.b16 %v58
  %v396 = vunpack.c.l.b16 %v59
  %v397 = vunpack.c.h.b16 %v59
  %v398 = vunpack.c.l.b16 %v60
  %v399 = vunpack.c.h.b16 %v60
  %v400 = vunpack.c.l.b16 %v61
  %v401 = vunpack.c.h.b16 %v61
  %v402 = vunpack.c.l.b16 %v62
  %v403 = vunpack.c.l.b16 %v63
  %v404 = vunpack.c.h.b16 %v63
  %v405 = vunpack.c.l.b16 %v64
  %v406 = vunpack.c.h.b16 %v64
  %v407 = vunpack.c.l.b16 %v65
  %v408 = vunpack.c.h.b16 %v65
  %v409 = vunpack.c.l.b16 %v66
  %v410 = vunpack.c.h.b16 %v66
  %v411 = vunpack.c.l.b16 %v67
  %v412 = vunpack.c.l.b16 %v68
  %v413 = vunpack.c.h.b16 %v68
  %v414 = vunpack.c.l.b16 %v69
  %v415 = vunpack.c.h.b16 %v69
  %v416 = vunpack.c.l.b16 %v70
  %v417 = vunpack.c.h.b16 %v70
  %v418 = vunpack.c.l.b16 %v71
  %v419 = vunpack.c.h.b16 %v71
  %v420 = vunpack.c.l.b16 %v72
  %v421 = vunpack.c.l.b16 %v73
  %v422 = vunpack.c.h.b16 %v73
  %v423 = vunpack.c.l.b16 %v74
  %v424 = vunpack.c.h.b16 %v74
  %v425 = vunpack.c.l.b16 %v75
  %v426 = vunpack.c.h.b16 %v75
  %v427 = vunpack.c.l.b16 %v76
  %v428 = vunpack.c.h.b16 %v76
  %v429 = vunpack.c.l.b16 %v77
  %v430 = vunpack.c.l.b16 %v78
  %v431 = vunpack.c.h.b16 %v78
  %v432 = vunpack.c.l.b16 %v79
  %v433 = vunpack.c.h.b16 %v79
  %v434 = vunpack.c.l.b16 %v80
  %v435 = vunpack.c.h.b16 %v80
  %v436 = vunpack.c.l.b16 %v81
  %v437 = vunpack.c.h.b16 %v81
  %v438 = vunpack.c.l.b16 %v82
  %v439 = vunpack.c.l.b16 %v83
  %v440 = vunpack.c.h.b16 %v83
  %v441 = vunpack.c.l.b16 %v84
  %v442 = vunpack.c.h.b16 %v84
  %v443 = vunpack.c.l.b16 %v85
  %v444 = vunpack.c.h.b16 %v85
  %v445 = vunpack.c.l.b16 %v86
  %v446 = vunpack.c.h.b16 %v86
  %v447 = vunpack.c.l.b16 %v87
  %v448 = vunpack.c.l.b16 %v88
  %v449 = vunpack.c.h.b16 %v88
  %v450 = vunpack.c.l.b16 %v89
  %v451 = vunpack.c.h.b16 %v89
  %v452 = vunpack.c.l.b16 %v90
  %v453 = vunpack.c.h.b16 %v90
  %v454 = vunpack.c.l.b16 %v91
  %v455 = vunpack.c.h.b16 %v91
  %v456 = vunpack.c.l.b16 %v92
  %v457 = vunpack.c.l.b16 %v93
  %v458 = vunpack.c.h.b16 %v93
  %v459 = vunpack.c.l.b16 %v94
  %v460 = vunpack.c.h.b16 %v94
  %v461 = vunpack.c.l.b16 %v95
  %v462 = vunpack.c.h.b16 %v95
  %v463 = vunpack.c.l.b16 %v96
  %v464 = vunpack.c.h.b16 %v96
  %v465 = vunpack.c.l.b16 %v97
  %v466 = vpack.c.b16 %v331, %v322
  %v467 = vpack.c.b16 %v332, %v323
  %v468 = vpack.c.b16 %v333, %v324
  %v469 = vpack.c.b16 %v334, %v325
  %v470 = vpack.c.b16 %v335, %v326
  %v471 = vpack.c.b16 %v336, %v327
  %v472 = vpack.c.b16 %v337, %v328
  %v473 = vpack.c.b16 %v338, %v329
  %v474 = vpack.c.b16 %v339, %v330
  %v475 = vpack.c.b16 %v349, %v340
  %v476 = vpack.c.b16 %v350, %v341
  %v477 = vpack.c.b16 %v351, %v342
  %v478 = vpack.c.b16 %v352, %v343
  %v479 = vpack.c.b16 %v353, %v344
  %v480 = vpack.c.b16 %v354, %v345
  %v481 = vpack.c.b16 %v355, %v346
  %v482 = vpack.c.b16 %v356, %v347
  %v483 = vpack.c.b16 %v357, %v348
  %v484 = vpack.c.b16 %v367, %v358
  %v485 = vpack.c.b16 %v368, %v359
  %v486 = vpack.c.b16 %v369, %v360
  %v487 = vpack.c.b16 %v370, %v361
  %v488 = vpack.c.b16 %v371, %v362
  %v489 = vpack.c.b16 %v372, %v363
  %v490 = vpack.c.b16 %v373, %v364
  %v491 = vpack.c.b16 %v374, %v365
  %v492 = vpack.c.b16 %v375, %v366
  %v493 = vpack.c.b16 %v385, %v376
  %v494 = vpack.c.b16 %v386, %v377
  %v495 = vpack.c.b16 %v387, %v378
  %v496 = vpack.c.b16 %v388, %v379
  %v497 = vpack.c.b16 %v389, %v380
  %v498 = vpack.c.b16 %v390, %v381
  %v499 = vpack.c.b16 %v391, %v382
  %v500 = vpack.c.b16 %v392, %v383
  %v501 = vpack.c.b16 %v393, %v384
  %v502 = vpack.c.b16 %v403, %v394
  %v503 = vpack.c.b16 %v404, %v395
  %v504 = vpack.c.b16 %v405, %v396
  %v505 = vpack.c.b16 %v406, %v397
  %v506 = vpack.c.b16 %v407, %v398
  %v507 = vpack.c.b16 %v408, %v399
  %v508 = vpack.c.b16 %v409, %v400
  %v509 = vpack.c.b16 %v410, %v401
  %v510 = vpack.c.b16 %v411, %v402
  %v511 = vpack.c.b16 %v421, %v412
  %v512 = vpack.c.b16 %v422, %v413
  %v513 = vpack.c.b16 %v423, %v414
  %v514 = vpack.c.b16 %v424, %v415
  %v515 = vpack.c.b16 %v425, %v416
  %v516 = vpack.c.b16 %v426, %v417
  %v517 = vpack.c.b16 %v427, %v418
  %v518 = vpack.c.b16 %v428, %v419
  %v519 = vpack.c.b16 %v429, %v420
  %v520 = vpack.c.b16 %v439, %v430
  %v521 = vpack.c.b16 %v440, %v431
  %v522 = vpack.c.b16 %v441, %v432
  %v523 = vpack.c.b16 %v442, %v433
  %v524 = vpack.c.b16 %v443, %v434
  %v525 = vpack.c.b16 %v444, %v435
  %v526 = vpack.c.b16 %v445, %v436
  %v527 = vpack.c.b16 %v446, %v437
  %v528 = vpack.c.b16 %v447, %v438
  %v529 = vpack.c.b16 %v457, %v448
  %v530 = vpack.c.b16 %v458, %v449
  %v531 = vpack.c.b16 %v459, %v450
  %v532 = vpack.c.b16 %v460, %v451
  %v533 = vpack.c.b16 %v461, %v452
  %v534 = vpack.c.b16 %v462, %v453
  %v535 = vpack.c.b16 %v463, %v454
  %v536 = vpack.c.b16 %v464, %v455
  %v537 = vpack.c.b16 %v465, %v456
  %v754 = vunpack.c.l.b16 %v98
  %v755 = vunpack.c.l.b16 %v99
  %v756 = vunpack.c.l.b16 %v100
  %v757 = vunpack.c.l.b16 %v101
  %v758 = vunpack.c.l.b16 %v102
  %v759 = vunpack.c.l.b16 %v103
  %v760 = vunpack.c.l.b16 %v104
  %v761 = vunpack.c.l.b16 %v105
  %v762 = vunpack.c.l.b16 %v106
  %v763 = vunpack.c.l.b16 %v107
  %v764 = vunpack.c.l.b16 %v108
  %v765 = vunpack.c.l.b16 %v109
  %v766 = vunpack.c.l.b16 %v110
  %v767 = vunpack.c.l.b16 %v111
  %v768 = vunpack.c.l.b16 %v112
  %v769 = vunpack.c.l.b16 %v113
  %v770 = vunpack.c.l.b16 %v114
  %v771 = vunpack.c.l.b16 %v115
  %v772 = vunpack.c.l.b16 %v116
  %v773 = vunpack.c.l.b16 %v117
  %v774 = vunpack.c.l.b16 %v118
  %v775 = vunpack.c.l.b16 %v119
  %v776 = vunpack.c.l.b16 %v120
  %v777 = vunpack.c.l.b16 %v121
  %v778 = vunpack.c.l.b16 %v122
  %v779 = vunpack.c.l.b16 %v123
  %v780 = vunpack.c.l.b16 %v124
  %v781 = vunpack.c.l.b16 %v125
  %v782 = vunpack.c.l.b16 %v126
  %v783 = vunpack.c.l.b16 %v127
  %v784 = vunpack.c.l.b16 %v128
  %v785 = vunpack.c.l.b16 %v129
  %v786 = vunpack.c.l.b16 %v130
  %v787 = vunpack.c.l.b16 %v131
  %v788 = vunpack.c.l.b16 %v132
  %v789 = vunpack.c.l.b16 %v133
  %v790 = vunpack.c.l.b16 %v134
  %v791 = vunpack.c.l.b16 %v135
  %v792 = vunpack.c.l.b16 %v136
  %v793 = vunpack.c.l.b16 %v137
  %v794 = vunpack.c.l.b16 %v138
  %v795 = vunpack.c.l.b16 %v139
  %v796 = vunpack.c.l.b16 %v140
  %v797 = vunpack.c.l.b16 %v141
  %v798 = vunpack.c.l.b16 %v142
  %v799 = vunpack.c.l.b16 %v143
  %v800 = vunpack.c.l.b16 %v144
  %v801 = vunpack.c.l.b16 %v145
  %v802 = vunpack.c.l.b16 %v146
  %v803 = vunpack.c.l.b16 %v147
  %v804 = vunpack.c.l.b16 %v148
  %v805 = vunpack.c.l.b16 %v149
  %v806 = vunpack.c.l.b16 %v150
  %v807 = vunpack.c.l.b16 %v151
  %v808 = vunpack.c.l.b16 %v152
  %v809 = vunpack.c.l.b16 %v153
  %v810 = vunpack.c.l.b16 %v154
  %v811 = vunpack.c.l.b16 %v155
  %v812 = vunpack.c.l.b16 %v156
  %v813 = vunpack.c.l.b16 %v157
  %v814 = vunpack.c.l.b16 %v158
  %v815 = vunpack.c.l.b16 %v159
  %v816 = vunpack.c.l.b16 %v160
  %v817 = vunpack.c.l.b16 %v161
  %v818 = vunpack.c.l.b16 %v162
  %v819 = vunpack.c.l.b16 %v163
  %v820 = vunpack.c.l.b16 %v164
  %v821 = vunpack.c.l.b16 %v165
  %v822 = vunpack.c.l.b16 %v166
  %v823 = vunpack.c.l.b16 %v167
  %v824 = vunpack.c.l.b16 %v168
  %v825 = vunpack.c.l.b16 %v169
  %v826 = vunpack.c.l.b16 %v170
  %v827 = vunpack.c.l.b16 %v171
  %v828 = vunpack.c.l.b16 %v172
  %v829 = vunpack.c.l.b16 %v173
  %v830 = vunpack.c.l.b16 %v174
  %v831 = vunpack.c.l.b16 %v175
  %v832 = vunpack.c.l.b16 %v176
  %v833 = vunpack.c.l.b16 %v177
  %v834 = vunpack.c.l.b16 %v178
  %v835 = vunpack.c.l.b16 %v179
  %v836 = vunpack.c.l.b16 %v180
  %v837 = vunpack.c.l.b16 %v181
  %v838 = vunpack.c.l.b16 %v182
  %v839 = vunpack.c.l.b16 %v183
  %v840 = vunpack.c.l.b16 %v184
  %v841 = vunpack.c.l.b16 %v185
  %v842 = vunpack.c.l.b16 %v186
  %v843 = vunpack.c.l.b16 %v187
  %v844 = vunpack.c.l.b16 %v188
  %v845 = vunpack.c.l.b16 %v189
  %v846 = vunpack.c.l.b16 %v190
  %v847 = vunpack.c.l.b16 %v191
  %v848 = vunpack.c.l.b16 %v192
  %v849 = vunpack.c.l.b16 %v193
  %v850 = vunpack.c.l.b16 %v194
  %v851 = vunpack.c.l.b16 %v195
  %v852 = vunpack.c.l.b16 %v196
  %v853 = vunpack.c.l.b16 %v197
  %v854 = vunpack.c.l.b16 %v198
  %v855 = vunpack.c.l.b16 %v199
  %v856 = vunpack.c.l.b16 %v200
  %v857 = vunpack.c.l.b16 %v201
  %v858 = vunpack.c.l.b16 %v202
  %v859 = vunpack.c.l.b16 %v203
  %v860 = vunpack.c.l.b16 %v204
  %v861 = vunpack.c.l.b16 %v205
  %v862 = vunpack.c.l.b16 %v206
  %v863 = vunpack.c.l.b16 %v207
  %v864 = vunpack.c.l.b16 %v208
  %v865 = vunpack.c.l.b16 %v209
  %v866 = vunpack.c.l.b16 %v210
  %v867 = vunpack.c.l.b16 %v211
  %v868 = vunpack.c.l.b16 %v212
  %v869 = vunpack.c.l.b16 %v213
  %v870 = vunpack.c.l.b16 %v214
  %v871 = vunpack.c.l.b16 %v215
  %v872 = vunpack.c.l.b16 %v216
  %v873 = vunpack.c.l.b16 %v217
  %v874 = vunpack.c.l.b16 %v218
  %v875 = vunpack.c.l.b16 %v219
  %v876 = vunpack.c.l.b16 %v220
  %v877 = vunpack.c.l.b16 %v221
  %v878 = vunpack.c.l.b16 %v222
  %v879 = vunpack.c.l.b16 %v223
  %v880 = vunpack.c.l.b16 %v224
  %v881 = vunpack.c.l.b16 %v225
  %v882 = vunpack.c.l.b16 %v226
  %v883 = vunpack.c.l.b16 %v227
  %v884 = vunpack.c.l.b16 %v228
  %v885 = vunpack.c.l.b16 %v229
  %v886 = vunpack.c.l.b16 %v230
  %v887 = vunpack.c.l.b16 %v231
  %v888 = vunpack.c.l.b16 %v232
  %v889 = vunpack.c.l.b16 %v233
  %v890 = vunpack.c.l.b16 %v234
  %v891 = vunpack.c.l.b16 %v235
  %v892 = vunpack.c.l.b16 %v236
  %v893 = vunpack.c.l.b16 %v237
  %v894 = vunpack.c.l.b16 %v238
  %v895 = vunpack.c.l.b16 %v239
  %v896 = vunpack.c.l.b16 %v240
  %v897 = vunpack.c.l.b16 %v241
  %v898 = vpack.c.b16 %v755, %v754
  %v899 = vpack.c.b16 %v757, %v756
  %v900 = vpack.c.b16 %v759, %v758
  %v901 = vpack.c.b16 %v761, %v760
  %v902 = vpack.c.b16 %v763, %v762
  %v903 = vpack.c.b16 %v765, %v764
  %v904 = vpack.c.b16 %v767, %v766
  %v905 = vpack.c.b16 %v769, %v768
  %v906 = vpack.c.b16 %v771, %v770
  %v907 = vpack.c.b16 %v773, %v772
  %v908 = vpack.c.b16 %v775, %v774
  %v909 = vpack.c.b16 %v777, %v776
  %v910 = vpack.c.b16 %v779, %v778
  %v911 = vpack.c.b16 %v781, %v780
  %v912 = vpack.c.b16 %v783, %v782
  %v913 = vpack.c.b16 %v785, %v784
  %v914 = vpack.c.b16 %v787, %v786
  %v915 = vpack.c.b16 %v789, %v788
  %v916 = vpack.c.b16 %v791, %v790
  %v917 = vpack.c.b16 %v793, %v792
  %v918 = vpack.c.b16 %v795, %v794
  %v919 = vpack.c.b16 %v797, %v796
  %v920 = vpack.c.b16 %v799, %v798
  %v921 = vpack.c.b16 %v801, %v800
  %v922 = vpack.c.b16 %v803, %v802
  %v923 = vpack.c.b16 %v805, %v804
  %v924 = vpack.c.b16 %v807, %v806
  %v925 = vpack.c.b16 %v809, %v808
  %v926 = vpack.c.b16 %v811, %v810
  %v927 = vpack.c.b16 %v813, %v812
  %v928 = vpack.c.b16 %v815, %v814
  %v929 = vpack.c.b16 %v817, %v816
  %v930 = vpack.c.b16 %v819, %v818
  %v931 = vpack.c.b16 %v821, %v820
  %v932 = vpack.c.b16 %v823, %v822
  %v933 = vpack.c.b16 %v825, %v824
  %v934 = vpack.c.b16 %v827, %v826
  %v935 = vpack.c.b16 %v829, %v828
  %v936 = vpack.c.b16 %v831, %v830
  %v937 = vpack.c.b16 %v833, %v832
  %v938 = vpack.c.b16 %v835, %v834
  %v939 = vpack.c.b16 %v837, %v836
  %v940 = vpack.c.b16 %v839, %v838
  %v941 = vpack.c.b16 %v841, %v840
  %v942 = vpack.c.b16 %v843, %v842
  %v943 = vpack.c.b16 %v845, %v844
  %v944 = vpack.c.b16 %v847, %v846
  %v945 = vpack.c.b16 %v849, %v848
  %v946 = vpack.c.b16 %v851, %v850
  %v947 = vpack.c.b16 %v853, %v852
  %v948 = vpack.c.b16 %v855, %v854
  %v949 = vpack.c.b16 %v857, %v856
  %v950 = vpack.c.b16 %v859, %v858
  %v951 = vpack.c.b16 %v861, %v860
  %v952 = vpack.c.b16 %v863, %v862
  %v953 = vpack.c.b16 %v865, %v864
  %v954 = vpack.c.b16 %v867, %v866
  %v955 = vpack.c.b16 %v869, %v868
  %v956 = vpack.c.b16 %v871, %v870
  %v957 = vpack.c.b16 %v873, %v872
  %v958 = vpack.c.b16 %v875, %v874
  %v959 = vpack.c.b16 %v877, %v876
  %v960 = vpack.c.b16 %v879, %v878
  %v961 = vpack.c.b16 %v881, %v880
  %v962 = vpack.c.b16 %v883, %v882
  %v963 = vpack.c.b16 %v885, %v884
  %v964 = vpack.c.b16 %v887, %v886
  %v965 = vpack.c.b16 %v889, %v888
  %v966 = vpack.c.b16 %v891, %v890
  %v967 = vpack.c.b16 %v893, %v892
  %v968 = vpack.c.b16 %v895, %v894
  %v969 = vpack.c.b16 %v897, %v896
  %1042 = vmatprep.subr.bf16.mxu0 0
  %1043 = vmatpush1.bf16.msra.mxu0 %v898
  %1044 = vmatprep.subr.bf16.mxu0 0
  %1045 = vmatpush1.bf16.msra.mxu0 %v899
  %1046 = vmatprep.subr.bf16.mxu0 0
  %1047 = vmatpush1.bf16.msra.mxu0 %v900
  %1048 = vmatprep.subr.bf16.mxu0 0
  %1049 = vmatpush1.bf16.msra.mxu0 %v901
  %1050 = vmatprep.subr.bf16.mxu0 0
  %1051 = vmatpush1.bf16.msra.mxu0 %v902
  %1052 = vmatprep.subr.bf16.mxu0 0
  %1053 = vmatpush1.bf16.msra.mxu0 %v903
  %1054 = vmatprep.subr.bf16.mxu0 0
  %1055 = vmatpush1.bf16.msra.mxu0 %v904
  %1056 = vmatprep.subr.bf16.mxu0 0
  %1057 = vmatpush1.bf16.msra.mxu0 %v905
  %1058 = vmatprep.subr.bf16.mxu0 0
  %1059 = vmatpush1.bf16.msra.mxu0 %v906
  %1060 = vmatprep.subr.bf16.mxu0 0
  %1061 = vmatpush1.bf16.msra.mxu0 %v907
  %1062 = vmatprep.subr.bf16.mxu0 0
  %1063 = vmatpush1.bf16.msra.mxu0 %v908
  %1064 = vmatprep.subr.bf16.mxu0 0
  %1065 = vmatpush1.bf16.msra.mxu0 %v909
  %1066 = vmatprep.subr.bf16.mxu0 0
  %1067 = vmatpush1.bf16.msra.mxu0 %v910
  %1068 = vmatprep.subr.bf16.mxu0 0
  %1069 = vmatpush1.bf16.msra.mxu0 %v911
  %1070 = vmatprep.subr.bf16.mxu0 0
  %1071 = vmatpush1.bf16.msra.mxu0 %v912
  %1072 = vmatprep.subr.bf16.mxu0 0
  %1073 = vmatpush1.bf16.msra.mxu0 %v913
  %1074 = vmatprep.mubr.bf16.mxu0 %v467
  %1075 = vmatmul.mubr.bf16.gmra.mrb[0].mxu0 %v466
  %v1076 = vpop.f32.mrb[0].mxu0
  %v1077 = vadd.f32 0.0, %v1076
  %v1078 = vpop.f32.mrb[0].mxu0
  %v1079 = vpop.f32.mrb[0].mxu0
  %v1080 = vadd.f32 0.0, %v1079
  %v1081 = vpop.f32.mrb[0].mxu0
  %1082 = vmatprep.mubr.bf16.mxu0 %v476
  %1083 = vmatmul.mubr.bf16.gmra.mrb[0].mxu0 %v475
  %v1084 = vpop.f32.mrb[0].mxu0
  %v1085 = vadd.f32 0.0, %v1084
  %v1086 = vpop.f32.mrb[0].mxu0
  %v1087 = vpop.f32.mrb[0].mxu0
  %v1088 = vadd.f32 0.0, %v1087
  %v1089 = vpop.f32.mrb[0].mxu0
  %1090 = vmatprep.mubr.bf16.mxu0 %v485
  %1091 = vmatmul.mubr.bf16.gmra.mrb[0].mxu0 %v484
  %v1092 = vpop.f32.mrb[0].mxu0
  %v1093 = vadd.f32 0.0, %v1092
  %v1094 = vpop.f32.mrb[0].mxu0
  %v1095 = vpop.f32.mrb[0].mxu0
  %v1096 = vadd.f32 0.0, %v1095
  %v1097 = vpop.f32.mrb[0].mxu0
  %1098 = vmatprep.mubr.bf16.mxu0 %v494
  %1099 = vmatmul.mubr.bf16.gmra.mrb[0].mxu0 %v493
  %v1100 = vpop.f32.mrb[0].mxu0
  %v1101 = vadd.f32 0.0, %v1100
  %v1102 = vpop.f32.mrb[0].mxu0
  %v1103 = vpop.f32.mrb[0].mxu0
  %v1104 = vadd.f32 0.0, %v1103
  %v1105 = vpop.f32.mrb[0].mxu0
  %1106 = vmatprep.mubr.bf16.mxu0 %v503
  %1107 = vmatmul.mubr.bf16.gmra.mrb[0].mxu0 %v502
  %v1108 = vpop.f32.mrb[0].mxu0
  %v1109 = vadd.f32 0.0, %v1108
  %v1110 = vpop.f32.mrb[0].mxu0
  %v1111 = vpop.f32.mrb[0].mxu0
  %v1112 = vadd.f32 0.0, %v1111
  %v1113 = vpop.f32.mrb[0].mxu0
  %1114 = vmatprep.mubr.bf16.mxu0 %v512
  %1115 = vmatmul.mubr.bf16.gmra.mrb[0].mxu0 %v511
  %v1116 = vpop.f32.mrb[0].mxu0
  %v1117 = vadd.f32 0.0, %v1116
  %v1118 = vpop.f32.mrb[0].mxu0
  %v1119 = vpop.f32.mrb[0].mxu0
  %v1120 = vadd.f32 0.0, %v1119
  %v1121 = vpop.f32.mrb[0].mxu0
  %1122 = vmatprep.mubr.bf16.mxu0 %v521
  %1123 = vmatmul.mubr.bf16.gmra.mrb[0].mxu0 %v520
  %v1124 = vpop.f32.mrb[0].mxu0
  %v1125 = vadd.f32 0.0, %v1124
  %v1126 = vpop.f32.mrb[0].mxu0
  %v1127 = vpop.f32.mrb[0].mxu0
  %v1128 = vadd.f32 0.0, %v1127
  %v1129 = vpop.f32.mrb[0].mxu0
  %1130 = vmatprep.mubr.bf16.mxu0 %v530
  %1131 = vmatmul.mubr.bf16.gmra.mrb[0].mxu0 %v529
  %v1132 = vpop.f32.mrb[0].mxu0
  %v1133 = vadd.f32 0.0, %v1132
  %v1134 = vpop.f32.mrb[0].mxu0
  %v1135 = vpop.f32.mrb[0].mxu0
  %v1136 = vadd.f32 0.0, %v1135
  %v1137 = vpop.f32.mrb[0].mxu0
  %1138 = vdwg.mxu0
  %1139 = vmatprep.subr.bf16.mxu0 0
  %1140 = vmatpush1.bf16.msra.mxu0 %v914
  %1141 = vmatprep.subr.bf16.mxu0 0
  %1142 = vmatpush1.bf16.msra.mxu0 %v915
  %1143 = vmatprep.subr.bf16.mxu0 0
  %1144 = vmatpush1.bf16.msra.mxu0 %v916
  %1145 = vmatprep.subr.bf16.mxu0 0
  %1146 = vmatpush1.bf16.msra.mxu0 %v917
  %1147 = vmatprep.subr.bf16.mxu0 0
  %1148 = vmatpush1.bf16.msra.mxu0 %v918
  %1149 = vmatprep.subr.bf16.mxu0 0
  %1150 = vmatpush1.bf16.msra.mxu0 %v919
  %1151 = vmatprep.subr.bf16.mxu0 0
  %1152 = vmatpush1.bf16.msra.mxu0 %v920
  %1153 = vmatprep.subr.bf16.mxu0 0
  %1154 = vmatpush1.bf16.msra.mxu0 %v921
  %1155 = vmatprep.subr.bf16.mxu0 0
  %1156 = vmatpush1.bf16.msra.mxu0 %v922
  %1157 = vmatprep.subr.bf16.mxu0 0
  %1158 = vmatpush1.bf16.msra.mxu0 %v923
  %1159 = vmatprep.subr.bf16.mxu0 0
  %1160 = vmatpush1.bf16.msra.mxu0 %v924
  %1161 = vmatprep.subr.bf16.mxu0 0
  %1162 = vmatpush1.bf16.msra.mxu0 %v925
  %1163 = vmatprep.subr.bf16.mxu0 0
  %1164 = vmatpush1.bf16.msra.mxu0 %v926
  %1165 = vmatprep.subr.bf16.mxu0 0
  %1166 = vmatpush1.bf16.msra.mxu0 %v927
  %1167 = vmatprep.subr.bf16.mxu0 0
  %1168 = vmatpush1.bf16.msra.mxu0 %v928
  %1169 = vmatprep.subr.bf16.mxu0 0
  %1170 = vmatpush1.bf16.msra.mxu0 %v929
  %1171 = vmatprep.mubr.bf16.mxu0 %v469
  %1172 = vmatmul.mubr.bf16.gmra.mrb[0].mxu0 %v468
  %v1173 = vpop.f32.mrb[0].mxu0
  %v1174 = vadd.f32 %v1077, %v1173
  %v1175 = vpop.f32.mrb[0].mxu0
  %v1176 = vpop.f32.mrb[0].mxu0
  %v1177 = vadd.f32 %v1080, %v1176
  %v1178 = vpop.f32.mrb[0].mxu0
  %1179 = vmatprep.mubr.bf16.mxu0 %v478
  %1180 = vmatmul.mubr.bf16.gmra.mrb[0].mxu0 %v477
  %v1181 = vpop.f32.mrb[0].mxu0
  %v1182 = vadd.f32 %v1085, %v1181
  %v1183 = vpop.f32.mrb[0].mxu0
  %v1184 = vpop.f32.mrb[0].mxu0
  %v1185 = vadd.f32 %v1088, %v1184
  %v1186 = vpop.f32.mrb[0].mxu0
  %1187 = vmatprep.mubr.bf16.mxu0 %v487
  %1188 = vmatmul.mubr.bf16.gmra.mrb[0].mxu0 %v486
  %v1189 = vpop.f32.mrb[0].mxu0
  %v1190 = vadd.f32 %v1093, %v1189
  %v1191 = vpop.f32.mrb[0].mxu0
  %v1192 = vpop.f32.mrb[0].mxu0
  %v1193 = vadd.f32 %v1096, %v1192
  %v1194 = vpop.f32.mrb[0].mxu0
  %1195 = vmatprep.mubr.bf16.mxu0 %v496
  %1196 = vmatmul.mubr.bf16.gmra.mrb[0].mxu0 %v495
  %v1197 = vpop.f32.mrb[0].mxu0
  %v1198 = vadd.f32 %v1101, %v1197
  %v1199 = vpop.f32.mrb[0].mxu0
  %v1200 = vpop.f32.mrb[0].mxu0
  %v1201 = vadd.f32 %v1104, %v1200
  %v1202 = vpop.f32.mrb[0].mxu0
  %1203 = vmatprep.mubr.bf16.mxu0 %v505
  %1204 = vmatmul.mubr.bf16.gmra.mrb[0].mxu0 %v504
  %v1205 = vpop.f32.mrb[0].mxu0
  %v1206 = vadd.f32 %v1109, %v1205
  %v1207 = vpop.f32.mrb[0].mxu0
  %v1208 = vpop.f32.mrb[0].mxu0
  %v1209 = vadd.f32 %v1112, %v1208
  %v1210 = vpop.f32.mrb[0].mxu0
  %1211 = vmatprep.mubr.bf16.mxu0 %v514
  %1212 = vmatmul.mubr.bf16.gmra.mrb[0].mxu0 %v513
  %v1213 = vpop.f32.mrb[0].mxu0
  %v1214 = vadd.f32 %v1117, %v1213
  %v1215 = vpop.f32.mrb[0].mxu0
  %v1216 = vpop.f32.mrb[0].mxu0
  %v1217 = vadd.f32 %v1120, %v1216
  %v1218 = vpop.f32.mrb[0].mxu0
  %1219 = vmatprep.mubr.bf16.mxu0 %v523
  %1220 = vmatmul.mubr.bf16.gmra.mrb[0].mxu0 %v522
  %v1221 = vpop.f32.mrb[0].mxu0
  %v1222 = vadd.f32 %v1125, %v1221
  %v1223 = vpop.f32.mrb[0].mxu0
  %v1224 = vpop.f32.mrb[0].mxu0
  %v1225 = vadd.f32 %v1128, %v1224
  %v1226 = vpop.f32.mrb[0].mxu0
  %1227 = vmatprep.mubr.bf16.mxu0 %v532
  %1228 = vmatmul.mubr.bf16.gmra.mrb[0].mxu0 %v531
  %v1229 = vpop.f32.mrb[0].mxu0
  %v1230 = vadd.f32 %v1133, %v1229
  %v1231 = vpop.f32.mrb[0].mxu0
  %v1232 = vpop.f32.mrb[0].mxu0
  %v1233 = vadd.f32 %v1136, %v1232
  %v1234 = vpop.f32.mrb[0].mxu0
  %1235 = vdwg.mxu0
  %1236 = vmatprep.subr.bf16.mxu0 0
  %1237 = vmatpush1.bf16.msra.mxu0 %v930
  %1238 = vmatprep.subr.bf16.mxu0 0
  %1239 = vmatpush1.bf16.msra.mxu0 %v931
  %1240 = vmatprep.subr.bf16.mxu0 0
  %1241 = vmatpush1.bf16.msra.mxu0 %v932
  %1242 = vmatprep.subr.bf16.mxu0 0
  %1243 = vmatpush1.bf16.msra.mxu0 %v933
  %1244 = vmatprep.subr.bf16.mxu0 0
  %1245 = vmatpush1.bf16.msra.mxu0 %v934
  %1246 = vmatprep.subr.bf16.mxu0 0
  %1247 = vmatpush1.bf16.msra.mxu0 %v935
  %1248 = vmatprep.subr.bf16.mxu0 0
  %1249 = vmatpush1.bf16.msra.mxu0 %v936
  %1250 = vmatprep.subr.bf16.mxu0 0
  %1251 = vmatpush1.bf16.msra.mxu0 %v937
  %1252 = vmatprep.subr.bf16.mxu0 0
  %1253 = vmatpush1.bf16.msra.mxu0 %v938
  %1254 = vmatprep.subr.bf16.mxu0 0
  %1255 = vmatpush1.bf16.msra.mxu0 %v939
  %1256 = vmatprep.subr.bf16.mxu0 0
  %1257 = vmatpush1.bf16.msra.mxu0 %v940
  %1258 = vmatprep.subr.bf16.mxu0 0
  %1259 = vmatpush1.bf16.msra.mxu0 %v941
  %1260 = vmatprep.subr.bf16.mxu0 0
  %1261 = vmatpush1.bf16.msra.mxu0 %v942
  %1262 = vmatprep.subr.bf16.mxu0 0
  %1263 = vmatpush1.bf16.msra.mxu0 %v943
  %1264 = vmatprep.subr.bf16.mxu0 0
  %1265 = vmatpush1.bf16.msra.mxu0 %v944
  %1266 = vmatprep.subr.bf16.mxu0 0
  %1267 = vmatpush1.bf16.msra.mxu0 %v945
  %1268 = vmatprep.mubr.bf16.mxu0 %v471
  %1269 = vmatmul.mubr.bf16.gmra.mrb[0].mxu0 %v470
  %v1270 = vpop.f32.mrb[0].mxu0
  %v1271 = vadd.f32 %v1174, %v1270
  %v1272 = vpop.f32.mrb[0].mxu0
  %v1273 = vpop.f32.mrb[0].mxu0
  %v1274 = vadd.f32 %v1177, %v1273
  %v1275 = vpop.f32.mrb[0].mxu0
  %1276 = vmatprep.mubr.bf16.mxu0 %v480
  %1277 = vmatmul.mubr.bf16.gmra.mrb[0].mxu0 %v479
  %v1278 = vpop.f32.mrb[0].mxu0
  %v1279 = vadd.f32 %v1182, %v1278
  %v1280 = vpop.f32.mrb[0].mxu0
  %v1281 = vpop.f32.mrb[0].mxu0
  %v1282 = vadd.f32 %v1185, %v1281
  %v1283 = vpop.f32.mrb[0].mxu0
  %1284 = vmatprep.mubr.bf16.mxu0 %v489
  %1285 = vmatmul.mubr.bf16.gmra.mrb[0].mxu0 %v488
  %v1286 = vpop.f32.mrb[0].mxu0
  %v1287 = vadd.f32 %v1190, %v1286
  %v1288 = vpop.f32.mrb[0].mxu0
  %v1289 = vpop.f32.mrb[0].mxu0
  %v1290 = vadd.f32 %v1193, %v1289
  %v1291 = vpop.f32.mrb[0].mxu0
  %1292 = vmatprep.mubr.bf16.mxu0 %v498
  %1293 = vmatmul.mubr.bf16.gmra.mrb[0].mxu0 %v497
  %v1294 = vpop.f32.mrb[0].mxu0
  %v1295 = vadd.f32 %v1198, %v1294
  %v1296 = vpop.f32.mrb[0].mxu0
  %v1297 = vpop.f32.mrb[0].mxu0
  %v1298 = vadd.f32 %v1201, %v1297
  %v1299 = vpop.f32.mrb[0].mxu0
  %1300 = vmatprep.mubr.bf16.mxu0 %v507
  %1301 = vmatmul.mubr.bf16.gmra.mrb[0].mxu0 %v506
  %v1302 = vpop.f32.mrb[0].mxu0
  %v1303 = vadd.f32 %v1206, %v1302
  %v1304 = vpop.f32.mrb[0].mxu0
  %v1305 = vpop.f32.mrb[0].mxu0
  %v1306 = vadd.f32 %v1209, %v1305
  %v1307 = vpop.f32.mrb[0].mxu0
  %1308 = vmatprep.mubr.bf16.mxu0 %v516
  %1309 = vmatmul.mubr.bf16.gmra.mrb[0].mxu0 %v515
  %v1310 = vpop.f32.mrb[0].mxu0
  %v1311 = vadd.f32 %v1214, %v1310
  %v1312 = vpop.f32.mrb[0].mxu0
  %v1313 = vpop.f32.mrb[0].mxu0
  %v1314 = vadd.f32 %v1217, %v1313
  %v1315 = vpop.f32.mrb[0].mxu0
  %1316 = vmatprep.mubr.bf16.mxu0 %v525
  %1317 = vmatmul.mubr.bf16.gmra.mrb[0].mxu0 %v524
  %v1318 = vpop.f32.mrb[0].mxu0
  %v1319 = vadd.f32 %v1222, %v1318
  %v1320 = vpop.f32.mrb[0].mxu0
  %v1321 = vpop.f32.mrb[0].mxu0
  %v1322 = vadd.f32 %v1225, %v1321
  %v1323 = vpop.f32.mrb[0].mxu0
  %1324 = vmatprep.mubr.bf16.mxu0 %v534
  %1325 = vmatmul.mubr.bf16.gmra.mrb[0].mxu0 %v533
  %v1326 = vpop.f32.mrb[0].mxu0
  %v1327 = vadd.f32 %v1230, %v1326
  %v1328 = vpop.f32.mrb[0].mxu0
  %v1329 = vpop.f32.mrb[0].mxu0
  %v1330 = vadd.f32 %v1233, %v1329
  %v1331 = vpop.f32.mrb[0].mxu0
  %1332 = vdwg.mxu0
  %1333 = vmatprep.subr.bf16.mxu0 0
  %1334 = vmatpush1.bf16.msra.mxu0 %v946
  %1335 = vmatprep.subr.bf16.mxu0 0
  %1336 = vmatpush1.bf16.msra.mxu0 %v947
  %1337 = vmatprep.subr.bf16.mxu0 0
  %1338 = vmatpush1.bf16.msra.mxu0 %v948
  %1339 = vmatprep.subr.bf16.mxu0 0
  %1340 = vmatpush1.bf16.msra.mxu0 %v949
  %1341 = vmatprep.subr.bf16.mxu0 0
  %1342 = vmatpush1.bf16.msra.mxu0 %v950
  %1343 = vmatprep.subr.bf16.mxu0 0
  %1344 = vmatpush1.bf16.msra.mxu0 %v951
  %1345 = vmatprep.subr.bf16.mxu0 0
  %1346 = vmatpush1.bf16.msra.mxu0 %v952
  %1347 = vmatprep.subr.bf16.mxu0 0
  %1348 = vmatpush1.bf16.msra.mxu0 %v953
  %1349 = vmatprep.subr.bf16.mxu0 0
  %1350 = vmatpush1.bf16.msra.mxu0 %v954
  %1351 = vmatprep.subr.bf16.mxu0 0
  %1352 = vmatpush1.bf16.msra.mxu0 %v955
  %1353 = vmatprep.subr.bf16.mxu0 0
  %1354 = vmatpush1.bf16.msra.mxu0 %v956
  %1355 = vmatprep.subr.bf16.mxu0 0
  %1356 = vmatpush1.bf16.msra.mxu0 %v957
  %1357 = vmatprep.subr.bf16.mxu0 0
  %1358 = vmatpush1.bf16.msra.mxu0 %v958
  %1359 = vmatprep.subr.bf16.mxu0 0
  %1360 = vmatpush1.bf16.msra.mxu0 %v959
  %1361 = vmatprep.subr.bf16.mxu0 0
  %1362 = vmatpush1.bf16.msra.mxu0 %v960
  %1363 = vmatprep.subr.bf16.mxu0 0
  %1364 = vmatpush1.bf16.msra.mxu0 %v961
  %1365 = vmatprep.mubr.bf16.mxu0 %v473
  %1366 = vmatmul.mubr.bf16.gmra.mrb[0].mxu0 %v472
  %v1367 = vpop.f32.mrb[0].mxu0
  %v1368 = vadd.f32 %v1271, %v1367
  %v1369 = vpop.f32.mrb[0].mxu0
  %v1370 = vpop.f32.mrb[0].mxu0
  %v1371 = vadd.f32 %v1274, %v1370
  %v1372 = vpop.f32.mrb[0].mxu0
  %1373 = vmatprep.mubr.bf16.mxu0 %v482
  %1374 = vmatmul.mubr.bf16.gmra.mrb[0].mxu0 %v481
  %v1375 = vpop.f32.mrb[0].mxu0
  %v1376 = vadd.f32 %v1279, %v1375
  %v1377 = vpop.f32.mrb[0].mxu0
  %v1378 = vpop.f32.mrb[0].mxu0
  %v1379 = vadd.f32 %v1282, %v1378
  %v1380 = vpop.f32.mrb[0].mxu0
  %1381 = vmatprep.mubr.bf16.mxu0 %v491
  %1382 = vmatmul.mubr.bf16.gmra.mrb[0].mxu0 %v490
  %v1383 = vpop.f32.mrb[0].mxu0
  %v1384 = vadd.f32 %v1287, %v1383
  %v1385 = vpop.f32.mrb[0].mxu0
  %v1386 = vpop.f32.mrb[0].mxu0
  %v1387 = vadd.f32 %v1290, %v1386
  %v1388 = vpop.f32.mrb[0].mxu0
  %1389 = vmatprep.mubr.bf16.mxu0 %v500
  %1390 = vmatmul.mubr.bf16.gmra.mrb[0].mxu0 %v499
  %v1391 = vpop.f32.mrb[0].mxu0
  %v1392 = vadd.f32 %v1295, %v1391
  %v1393 = vpop.f32.mrb[0].mxu0
  %v1394 = vpop.f32.mrb[0].mxu0
  %v1395 = vadd.f32 %v1298, %v1394
  %v1396 = vpop.f32.mrb[0].mxu0
  %1397 = vmatprep.mubr.bf16.mxu0 %v509
  %1398 = vmatmul.mubr.bf16.gmra.mrb[0].mxu0 %v508
  %v1399 = vpop.f32.mrb[0].mxu0
  %v1400 = vadd.f32 %v1303, %v1399
  %v1401 = vpop.f32.mrb[0].mxu0
  %v1402 = vpop.f32.mrb[0].mxu0
  %v1403 = vadd.f32 %v1306, %v1402
  %v1404 = vpop.f32.mrb[0].mxu0
  %1405 = vmatprep.mubr.bf16.mxu0 %v518
  %1406 = vmatmul.mubr.bf16.gmra.mrb[0].mxu0 %v517
  %v1407 = vpop.f32.mrb[0].mxu0
  %v1408 = vadd.f32 %v1311, %v1407
  %v1409 = vpop.f32.mrb[0].mxu0
  %v1410 = vpop.f32.mrb[0].mxu0
  %v1411 = vadd.f32 %v1314, %v1410
  %v1412 = vpop.f32.mrb[0].mxu0
  %1413 = vmatprep.mubr.bf16.mxu0 %v527
  %1414 = vmatmul.mubr.bf16.gmra.mrb[0].mxu0 %v526
  %v1415 = vpop.f32.mrb[0].mxu0
  %v1416 = vadd.f32 %v1319, %v1415
  %v1417 = vpop.f32.mrb[0].mxu0
  %v1418 = vpop.f32.mrb[0].mxu0
  %v1419 = vadd.f32 %v1322, %v1418
  %v1420 = vpop.f32.mrb[0].mxu0
  %1421 = vmatprep.mubr.bf16.mxu0 %v536
  %1422 = vmatmul.mubr.bf16.gmra.mrb[0].mxu0 %v535
  %v1423 = vpop.f32.mrb[0].mxu0
  %v1424 = vadd.f32 %v1327, %v1423
  %v1425 = vpop.f32.mrb[0].mxu0
  %v1426 = vpop.f32.mrb[0].mxu0
  %v1427 = vadd.f32 %v1330, %v1426
  %v1428 = vpop.f32.mrb[0].mxu0
  %1429 = vdwg.mxu0
  %1430 = vmatprep.subr.bf16.mxu0 0
  %1431 = vmatpush1.bf16.msra.mxu0 %v962
  %1432 = vmatprep.subr.bf16.mxu0 0
  %1433 = vmatpush1.bf16.msra.mxu0 %v963
  %1434 = vmatprep.subr.bf16.mxu0 0
  %1435 = vmatpush1.bf16.msra.mxu0 %v964
  %1436 = vmatprep.subr.bf16.mxu0 0
  %1437 = vmatpush1.bf16.msra.mxu0 %v965
  %1438 = vmatprep.subr.bf16.mxu0 0
  %1439 = vmatpush1.bf16.msra.mxu0 %v966
  %1440 = vmatprep.subr.bf16.mxu0 0
  %1441 = vmatpush1.bf16.msra.mxu0 %v967
  %1442 = vmatprep.subr.bf16.mxu0 0
  %1443 = vmatpush1.bf16.msra.mxu0 %v968
  %1444 = vmatprep.subr.bf16.mxu0 0
  %1445 = vmatpush1.bf16.msra.mxu0 %v969
  %1446 = vmatprep.subr.bf16.mxu0 0
  %1447 = vmatpush1.bf16.msra.mxu0 0
  %1448 = vmatprep.subr.bf16.mxu0 0
  %1449 = vmatpush1.bf16.msra.mxu0 0
  %1450 = vmatprep.subr.bf16.mxu0 0
  %1451 = vmatpush1.bf16.msra.mxu0 0
  %1452 = vmatprep.subr.bf16.mxu0 0
  %1453 = vmatpush1.bf16.msra.mxu0 0
  %1454 = vmatprep.subr.bf16.mxu0 0
  %1455 = vmatpush1.bf16.msra.mxu0 0
  %1456 = vmatprep.subr.bf16.mxu0 0
  %1457 = vmatpush1.bf16.msra.mxu0 0
  %1458 = vmatprep.subr.bf16.mxu0 0
  %1459 = vmatpush1.bf16.msra.mxu0 0
  %1460 = vmatprep.subr.bf16.mxu0 0
  %1461 = vmatpush1.bf16.msra.mxu0 0
  %1462 = vmatprep.mubr.bf16.mxu0 0
  %1463 = vmatmul.mubr.bf16.gmra.mrb[0].mxu0 %v474
  %v1464 = vpop.f32.mrb[0].mxu0
  %v1465 = vadd.f32 %v1368, %v1464
  %v1466 = vpop.f32.mrb[0].mxu0
  %v1467 = vpop.f32.mrb[0].mxu0
  %v1468 = vadd.f32 %v1371, %v1467
  %v1469 = vpop.f32.mrb[0].mxu0
  %1470 = vmatprep.mubr.bf16.mxu0 0
  %1471 = vmatmul.mubr.bf16.gmra.mrb[0].mxu0 %v483
  %v1472 = vpop.f32.mrb[0].mxu0
  %v1473 = vadd.f32 %v1376, %v1472
  %v1474 = vpop.f32.mrb[0].mxu0
  %v1475 = vpop.f32.mrb[0].mxu0
  %v1476 = vadd.f32 %v1379, %v1475
  %v1477 = vpop.f32.mrb[0].mxu0
  %1478 = vmatprep.mubr.bf16.mxu0 0
  %1479 = vmatmul.mubr.bf16.gmra.mrb[0].mxu0 %v492
  %v1480 = vpop.f32.mrb[0].mxu0
  %v1481 = vadd.f32 %v1384, %v1480
  %v1482 = vpop.f32.mrb[0].mxu0
  %v1483 = vpop.f32.mrb[0].mxu0
  %v1484 = vadd.f32 %v1387, %v1483
  %v1485 = vpop.f32.mrb[0].mxu0
  %1486 = vmatprep.mubr.bf16.mxu0 0
  %1487 = vmatmul.mubr.bf16.gmra.mrb[0].mxu0 %v501
  %v1488 = vpop.f32.mrb[0].mxu0
  %v1489 = vadd.f32 %v1392, %v1488
  %v1490 = vpop.f32.mrb[0].mxu0
  %v1491 = vpop.f32.mrb[0].mxu0
  %v1492 = vadd.f32 %v1395, %v1491
  %v1493 = vpop.f32.mrb[0].mxu0
  %1494 = vmatprep.mubr.bf16.mxu0 0
  %1495 = vmatmul.mubr.bf16.gmra.mrb[0].mxu0 %v510
  %v1496 = vpop.f32.mrb[0].mxu0
  %v1497 = vadd.f32 %v1400, %v1496
  %v1498 = vpop.f32.mrb[0].mxu0
  %v1499 = vpop.f32.mrb[0].mxu0
  %v1500 = vadd.f32 %v1403, %v1499
  %v1501 = vpop.f32.mrb[0].mxu0
  %1502 = vmatprep.mubr.bf16.mxu0 0
  %1503 = vmatmul.mubr.bf16.gmra.mrb[0].mxu0 %v519
  %v1504 = vpop.f32.mrb[0].mxu0
  %v1505 = vadd.f32 %v1408, %v1504
  %v1506 = vpop.f32.mrb[0].mxu0
  %v1507 = vpop.f32.mrb[0].mxu0
  %v1508 = vadd.f32 %v1411, %v1507
  %v1509 = vpop.f32.mrb[0].mxu0
  %1510 = vmatprep.mubr.bf16.mxu0 0
  %1511 = vmatmul.mubr.bf16.gmra.mrb[0].mxu0 %v528
  %v1512 = vpop.f32.mrb[0].mxu0
  %v1513 = vadd.f32 %v1416, %v1512
  %v1514 = vpop.f32.mrb[0].mxu0
  %v1515 = vpop.f32.mrb[0].mxu0
  %v1516 = vadd.f32 %v1419, %v1515
  %v1517 = vpop.f32.mrb[0].mxu0
  %1518 = vmatprep.mubr.bf16.mxu0 0
  %1519 = vmatmul.mubr.bf16.gmra.mrb[0].mxu0 %v537
  %v1520 = vpop.f32.mrb[0].mxu0
  %v1521 = vadd.f32 %v1424, %v1520
  %v1522 = vpop.f32.mrb[0].mxu0
  %v1523 = vpop.f32.mrb[0].mxu0
  %v1524 = vadd.f32 %v1427, %v1523
  %v1525 = vpop.f32.mrb[0].mxu0
  %1526 = vdwg.mxu0
  %v1527 = vld [vmem:[%s2] sm:$0x1]
  %v1529 = vlaneseq
  %v1530 = vshrl.u32 %v1529, 7
  %v1531 = vsub.s32 0, %v1530
  %v1532 = vrot.slane %v1527, %v1531
  %v1534 = vmul.f32 %v1465, %v1532
  %v1535 = vmul.f32 %v1468, %v1532
  %v1536 = vmul.f32 %v1473, %v1532
  %v1537 = vmul.f32 %v1476, %v1532
  %v1538 = vmul.f32 %v1481, %v1532
  %v1539 = vmul.f32 %v1484, %v1532
  %v1540 = vmul.f32 %v1489, %v1532
  %v1541 = vmul.f32 %v1492, %v1532
  %v1542 = vmul.f32 %v1497, %v1532
  %v1543 = vmul.f32 %v1500, %v1532
  %v1544 = vmul.f32 %v1505, %v1532
  %v1545 = vmul.f32 %v1508, %v1532
  %v1546 = vmul.f32 %v1513, %v1532
  %v1547 = vmul.f32 %v1516, %v1532
  %v1548 = vmul.f32 %v1521, %v1532
  %v1549 = vmul.f32 %v1524, %v1532
  %v1550 = vld [vmem:[%s3] sm:$0x1]
  %v1552 = vlaneseq
  %v1553 = vshrl.u32 %v1552, 7
  %v1554 = vsub.s32 0, %v1553
  %v1555 = vrot.slane %v1550, %v1554
  %v1557 = vadd.f32 %v1534, %v1555
  %v1558 = vadd.f32 %v1535, %v1555
  %v1559 = vadd.f32 %v1536, %v1555
  %v1560 = vadd.f32 %v1537, %v1555
  %v1561 = vadd.f32 %v1538, %v1555
  %v1562 = vadd.f32 %v1539, %v1555
  %v1563 = vadd.f32 %v1540, %v1555
  %v1564 = vadd.f32 %v1541, %v1555
  %v1565 = vadd.f32 %v1542, %v1555
  %v1566 = vadd.f32 %v1543, %v1555
  %v1567 = vadd.f32 %v1544, %v1555
  %v1568 = vadd.f32 %v1545, %v1555
  %v1569 = vadd.f32 %v1546, %v1555
  %v1570 = vadd.f32 %v1547, %v1555
  %v1571 = vadd.f32 %v1548, %v1555
  %v1572 = vadd.f32 %v1549, %v1555
  %v1573 = vmax.f32 %v1557, 0.0
  %v1574 = vmax.f32 %v1558, 0.0
  %v1575 = vmax.f32 %v1559, 0.0
  %v1576 = vmax.f32 %v1560, 0.0
  %v1577 = vmax.f32 %v1561, 0.0
  %v1578 = vmax.f32 %v1562, 0.0
  %v1579 = vmax.f32 %v1563, 0.0
  %v1580 = vmax.f32 %v1564, 0.0
  %v1581 = vmax.f32 %v1565, 0.0
  %v1582 = vmax.f32 %v1566, 0.0
  %v1583 = vmax.f32 %v1567, 0.0
  %v1584 = vmax.f32 %v1568, 0.0
  %v1585 = vmax.f32 %v1569, 0.0
  %v1586 = vmax.f32 %v1570, 0.0
  %v1587 = vmax.f32 %v1571, 0.0
  %v1588 = vmax.f32 %v1572, 0.0
  %v1589 = vpack.c.bf16 %v1574, %v1573
  %v1590 = vpack.c.bf16 %v1576, %v1575
  %v1591 = vpack.c.bf16 %v1578, %v1577
  %v1592 = vpack.c.bf16 %v1580, %v1579
  %v1593 = vpack.c.bf16 %v1582, %v1581
  %v1594 = vpack.c.bf16 %v1584, %v1583
  %v1595 = vpack.c.bf16 %v1586, %v1585
  %v1596 = vpack.c.bf16 %v1588, %v1587
  %v1605 = vunpack.c.l.b16 %v1589
  %v1606 = vunpack.c.h.b16 %v1589
  %v1607 = vunpack.c.l.b16 %v1590
  %v1608 = vunpack.c.h.b16 %v1590
  %v1609 = vunpack.c.l.b16 %v1591
  %v1610 = vunpack.c.h.b16 %v1591
  %v1611 = vunpack.c.l.b16 %v1592
  %v1612 = vunpack.c.h.b16 %v1592
  %v1613 = vunpack.c.l.b16 %v1593
  %v1614 = vunpack.c.h.b16 %v1593
  %v1615 = vunpack.c.l.b16 %v1594
  %v1616 = vunpack.c.h.b16 %v1594
  %v1617 = vunpack.c.l.b16 %v1595
  %v1618 = vunpack.c.h.b16 %v1595
  %v1619 = vunpack.c.l.b16 %v1596
  %v1620 = vunpack.c.h.b16 %v1596
  %v1621 = vpack.c.b16 %v1605, %v1605
  %v1622 = vpack.c.b16 %v1606, %v1606
  %v1623 = vpack.c.b16 %v1607, %v1607
  %v1624 = vpack.c.b16 %v1608, %v1608
  %v1625 = vpack.c.b16 %v1609, %v1609
  %v1626 = vpack.c.b16 %v1610, %v1610
  %v1627 = vpack.c.b16 %v1611, %v1611
  %v1628 = vpack.c.b16 %v1612, %v1612
  %v1629 = vpack.c.b16 %v1613, %v1613
  %v1630 = vpack.c.b16 %v1614, %v1614
  %v1631 = vpack.c.b16 %v1615, %v1615
  %v1632 = vpack.c.b16 %v1616, %v1616
  %v1633 = vpack.c.b16 %v1617, %v1617
  %v1634 = vpack.c.b16 %v1618, %v1618
  %v1635 = vpack.c.b16 %v1619, %v1619
  %v1636 = vpack.c.b16 %v1620, %v1620
  %1653 = vst [vmem:[%s4] sm:$0xf] %v1621
  %1654 = vst [vmem:[%s4 + $0x4] sm:$0xf] %v1622
  %1655 = vst [vmem:[%s4 + $0x8] sm:$0xf] %v1623
  %1656 = vst [vmem:[%s4 + $0xc] sm:$0xf] %v1624
  %1657 = vst [vmem:[%s4 + $0x10] sm:$0xf] %v1625
  %1658 = vst [vmem:[%s4 + $0x14] sm:$0xf] %v1626
  %1659 = vst [vmem:[%s4 + $0x18] sm:$0xf] %v1627
  %1660 = vst [vmem:[%s4 + $0x1c] sm:$0xf] %v1628
  %1661 = vst [vmem:[%s4 + $0x20] sm:$0xf] %v1629
  %1662 = vst [vmem:[%s4 + $0x24] sm:$0xf] %v1630
  %1663 = vst [vmem:[%s4 + $0x28] sm:$0xf] %v1631
  %1664 = vst [vmem:[%s4 + $0x2c] sm:$0xf] %v1632
  %1665 = vst [vmem:[%s4 + $0x30] sm:$0xf] %v1633
  %1666 = vst [vmem:[%s4 + $0x34] sm:$0xf] %v1634
  %1667 = vst [vmem:[%s4 + $0x38] sm:$0xf] %v1635
  %1668 = vst [vmem:[%s4 + $0x3c] sm:$0xf] %v1636
  // Predicated region
  $region18: #{_lambda_.3} parent=0 // pred_check
    _
  $region19: #{_lambda_.3} parent=0 // pred_check_branch
    %1670 = sbr.rel (0) target = $region21
  $region20: #{_lambda_.3} parent=0 // pred_region
    _
  $region21: #{_lambda_.3} parent=0 // pred_fallthru
    _
  // Predicated region
  $region22: #{_lambda_.3} parent=0 // pred_check
    _
  $region23: #{_lambda_.3} parent=0 // pred_check_branch
    %1672 = sbr.rel (0) target = $region25
  $region24: #{_lambda_.3} parent=0 // pred_region
    _
  $region25: #{_lambda_.3} parent=0 // pred_fallthru
    _

// kernel: _lambda_.5
$region0: #{_lambda_.5}
  #allocation0 [shape = 'u32[]', space=smem, size = 0x4, offset = 0x4, fixed_abs, tag = 'smem constant byte address 0x4 - core index']
  #allocation1 [shape = 'u32[144,128]{1,0:T(1,128)}', space=vmem, size = 0x12000, scoped, tag = 'internal scratch']
  %s0 = inlined_call_operand.vmem [shape: bf16[128,1152], index: 0, kind: input, shape index: {}]
  %s1 = inlined_call_operand.vmem [shape: bf16[1152,128], index: 1, kind: input, shape index: {}]
  %s2 = inlined_call_operand.vmem [shape: f32[1,128], index: 2, kind: input, shape index: {}]
  %s3 = inlined_call_operand.vmem [shape: f32[1,128], index: 3, kind: input, shape index: {}]
  %s4 = inlined_call_operand.vmem [shape: bf16[128,128], index: 4, kind: input, shape index: {}]
  %s5 = inlined_call_operand.vmem [shape: f32[128,128], index: 5, kind: output, shape index: {}]
  %s6 = sld [smem:[#allocation0]]
  $region30: #{_lambda_.5} parent=0
    _
  %s8 = ssub.s32 1, %s6
  %s9 = scalar_select 0, %s8, %s6
  // Predicated region
  $region2: #{_lambda_.5} parent=0 // pred_check
    _
  $region3: #{_lambda_.5} parent=0 // pred_check_branch
    %11 = sbr.rel (0) target = $region5
  $region4: #{_lambda_.5} parent=0 // pred_region
    _
  $region5: #{_lambda_.5} parent=0 // pred_fallthru
    _
  // Predicated region
  $region6: #{_lambda_.5} parent=0 // pred_check
    _
  $region7: #{_lambda_.5} parent=0 // pred_check_branch
    %13 = sbr.rel (0) target = $region9
  $region8: #{_lambda_.5} parent=0 // pred_region
    _
  $region9: #{_lambda_.5} parent=0 // pred_fallthru
    _
  // Predicated region
  $region10: #{_lambda_.5} parent=0 // pred_check
    _
  $region11: #{_lambda_.5} parent=0 // pred_check_branch
    %15 = sbr.rel (0) target = $region13
  $region12: #{_lambda_.5} parent=0 // pred_region
    _
  $region13: #{_lambda_.5} parent=0 // pred_fallthru
    _
  // Predicated region
  $region14: #{_lambda_.5} parent=0 // pred_check
    _
  $region15: #{_lambda_.5} parent=0 // pred_check_branch
    %17 = sbr.rel (0) target = $region17
  $region16: #{_lambda_.5} parent=0 // pred_region
    _
  $region17: #{_lambda_.5} parent=0 // pred_fallthru
    _
  // Predicated region
  $region18: #{_lambda_.5} parent=0 // pred_check
    _
  $region19: #{_lambda_.5} parent=0 // pred_check_branch
    %19 = sbr.rel (0) target = $region21
  $region20: #{_lambda_.5} parent=0 // pred_region
    _
  $region21: #{_lambda_.5} parent=0 // pred_fallthru
    _
  %v21 = vld [vmem:[%s0] sm:$0xff]
  %v22 = vld [vmem:[%s0 + $0x8] sm:$0xff]
  %v23 = vld [vmem:[%s0 + $0x10] sm:$0xff]
  %v24 = vld [vmem:[%s0 + $0x18] sm:$0xff]
  %v25 = vld [vmem:[%s0 + $0x20] sm:$0xf]
  %v26 = vld [vmem:[%s0 + $0x24] sm:$0xff]
  %v27 = vld [vmem:[%s0 + $0x2c] sm:$0xff]
  %v28 = vld [vmem:[%s0 + $0x34] sm:$0xff]
  %v29 = vld [vmem:[%s0 + $0x3c] sm:$0xff]
  %v30 = vld [vmem:[%s0 + $0x44] sm:$0xf]
  %v31 = vld [vmem:[%s0 + $0x48] sm:$0xff]
  %v32 = vld [vmem:[%s0 + $0x50] sm:$0xff]
  %v33 = vld [vmem:[%s0 + $0x58] sm:$0xff]
  %v34 = vld [vmem:[%s0 + $0x60] sm:$0xff]
  %v35 = vld [vmem:[%s0 + $0x68] sm:$0xf]
  %v36 = vld [vmem:[%s0 + $0x6c] sm:$0xff]
  %v37 = vld [vmem:[%s0 + $0x74] sm:$0xff]
  %v38 = vld [vmem:[%s0 + $0x7c] sm:$0xff]
  %v39 = vld [vmem:[%s0 + $0x84] sm:$0xff]
  %v40 = vld [vmem:[%s0 + $0x8c] sm:$0xf]
  %v41 = vld [vmem:[%s0 + $0x90] sm:$0xff]
  %v42 = vld [vmem:[%s0 + $0x98] sm:$0xff]
  %v43 = vld [vmem:[%s0 + $0xa0] sm:$0xff]
  %v44 = vld [vmem:[%s0 + $0xa8] sm:$0xff]
  %v45 = vld [vmem:[%s0 + $0xb0] sm:$0xf]
  %v46 = vld [vmem:[%s0 + $0xb4] sm:$0xff]
  %v47 = vld [vmem:[%s0 + $0xbc] sm:$0xff]
  %v48 = vld [vmem:[%s0 + $0xc4] sm:$0xff]
  %v49 = vld [vmem:[%s0 + $0xcc] sm:$0xff]
  %v50 = vld [vmem:[%s0 + $0xd4] sm:$0xf]
  %v51 = vld [vmem:[%s0 + $0xd8] sm:$0xff]
  %v52 = vld [vmem:[%s0 + $0xe0] sm:$0xff]
  %v53 = vld [vmem:[%s0 + $0xe8] sm:$0xff]
  %v54 = vld [vmem:[%s0 + $0xf0] sm:$0xff]
  %v55 = vld [vmem:[%s0 + $0xf8] sm:$0xf]
  %v56 = vld [vmem:[%s0 + $0xfc] sm:$0xff]
  %v57 = vld [vmem:[%s0 + $0x104] sm:$0xff]
  %v58 = vld [vmem:[%s0 + $0x10c] sm:$0xff]
  %v59 = vld [vmem:[%s0 + $0x114] sm:$0xff]
  %v60 = vld [vmem:[%s0 + $0x11c] sm:$0xf]
  %v61 = vld [vmem:[%s0 + $0x120] sm:$0xff]
  %v62 = vld [vmem:[%s0 + $0x128] sm:$0xff]
  %v63 = vld [vmem:[%s0 + $0x130] sm:$0xff]
  %v64 = vld [vmem:[%s0 + $0x138] sm:$0xff]
  %v65 = vld [vmem:[%s0 + $0x140] sm:$0xf]
  %v66 = vld [vmem:[%s0 + $0x144] sm:$0xff]
  %v67 = vld [vmem:[%s0 + $0x14c] sm:$0xff]
  %v68 = vld [vmem:[%s0 + $0x154] sm:$0xff]
  %v69 = vld [vmem:[%s0 + $0x15c] sm:$0xff]
  %v70 = vld [vmem:[%s0 + $0x164] sm:$0xf]
  %v71 = vld [vmem:[%s0 + $0x168] sm:$0xff]
  %v72 = vld [vmem:[%s0 + $0x170] sm:$0xff]
  %v73 = vld [vmem:[%s0 + $0x178] sm:$0xff]
  %v74 = vld [vmem:[%s0 + $0x180] sm:$0xff]
  %v75 = vld [vmem:[%s0 + $0x188] sm:$0xf]
  %v76 = vld [vmem:[%s0 + $0x18c] sm:$0xff]
  %v77 = vld [vmem:[%s0 + $0x194] sm:$0xff]
  %v78 = vld [vmem:[%s0 + $0x19c] sm:$0xff]
  %v79 = vld [vmem:[%s0 + $0x1a4] sm:$0xff]
  %v80 = vld [vmem:[%s0 + $0x1ac] sm:$0xf]
  %v81 = vld [vmem:[%s0 + $0x1b0] sm:$0xff]
  %v82 = vld [vmem:[%s0 + $0x1b8] sm:$0xff]
  %v83 = vld [vmem:[%s0 + $0x1c0] sm:$0xff]
  %v84 = vld [vmem:[%s0 + $0x1c8] sm:$0xff]
  %v85 = vld [vmem:[%s0 + $0x1d0] sm:$0xf]
  %v86 = vld [vmem:[%s0 + $0x1d4] sm:$0xff]
  %v87 = vld [vmem:[%s0 + $0x1dc] sm:$0xff]
  %v88 = vld [vmem:[%s0 + $0x1e4] sm:$0xff]
  %v89 = vld [vmem:[%s0 + $0x1ec] sm:$0xff]
  %v90 = vld [vmem:[%s0 + $0x1f4] sm:$0xf]
  %v91 = vld [vmem:[%s0 + $0x1f8] sm:$0xff]
  %v92 = vld [vmem:[%s0 + $0x200] sm:$0xff]
  %v93 = vld [vmem:[%s0 + $0x208] sm:$0xff]
  %v94 = vld [vmem:[%s0 + $0x210] sm:$0xff]
  %v95 = vld [vmem:[%s0 + $0x218] sm:$0xf]
  %v96 = vld [vmem:[%s0 + $0x21c] sm:$0xff]
  %v97 = vld [vmem:[%s0 + $0x224] sm:$0xff]
  %v98 = vld [vmem:[%s0 + $0x22c] sm:$0xff]
  %v99 = vld [vmem:[%s0 + $0x234] sm:$0xff]
  %v100 = vld [vmem:[%s0 + $0x23c] sm:$0xf]
  %v101 = vld [vmem:[%s1] sm:$0xf]
  %v102 = vld [vmem:[%s1 + $0x4] sm:$0xf]
  %v103 = vld [vmem:[%s1 + $0x8] sm:$0xf]
  %v104 = vld [vmem:[%s1 + $0xc] sm:$0xf]
  %v105 = vld [vmem:[%s1 + $0x10] sm:$0xf]
  %v106 = vld [vmem:[%s1 + $0x14] sm:$0xf]
  %v107 = vld [vmem:[%s1 + $0x18] sm:$0xf]
  %v108 = vld [vmem:[%s1 + $0x1c] sm:$0xf]
  %v109 = vld [vmem:[%s1 + $0x20] sm:$0xf]
  %v110 = vld [vmem:[%s1 + $0x24] sm:$0xf]
  %v111 = vld [vmem:[%s1 + $0x28] sm:$0xf]
  %v112 = vld [vmem:[%s1 + $0x2c] sm:$0xf]
  %v113 = vld [vmem:[%s1 + $0x30] sm:$0xf]
  %v114 = vld [vmem:[%s1 + $0x34] sm:$0xf]
  %v115 = vld [vmem:[%s1 + $0x38] sm:$0xf]
  %v116 = vld [vmem:[%s1 + $0x3c] sm:$0xf]
  %v117 = vld [vmem:[%s1 + $0x40] sm:$0xf]
  %v118 = vld [vmem:[%s1 + $0x44] sm:$0xf]
  %v119 = vld [vmem:[%s1 + $0x48] sm:$0xf]
  %v120 = vld [vmem:[%s1 + $0x4c] sm:$0xf]
  %v121 = vld [vmem:[%s1 + $0x50] sm:$0xf]
  %v122 = vld [vmem:[%s1 + $0x54] sm:$0xf]
  %v123 = vld [vmem:[%s1 + $0x58] sm:$0xf]
  %v124 = vld [vmem:[%s1 + $0x5c] sm:$0xf]
  %v125 = vld [vmem:[%s1 + $0x60] sm:$0xf]
  %v126 = vld [vmem:[%s1 + $0x64] sm:$0xf]
  %v127 = vld [vmem:[%s1 + $0x68] sm:$0xf]
  %v128 = vld [vmem:[%s1 + $0x6c] sm:$0xf]
  %v129 = vld [vmem:[%s1 + $0x70] sm:$0xf]
  %v130 = vld [vmem:[%s1 + $0x74] sm:$0xf]
  %v131 = vld [vmem:[%s1 + $0x78] sm:$0xf]
  %v132 = vld [vmem:[%s1 + $0x7c] sm:$0xf]
  %v133 = vld [vmem:[%s1 + $0x80] sm:$0xf]
  %v134 = vld [vmem:[%s1 + $0x84] sm:$0xf]
  %v135 = vld [vmem:[%s1 + $0x88] sm:$0xf]
  %v136 = vld [vmem:[%s1 + $0x8c] sm:$0xf]
  %v137 = vld [vmem:[%s1 + $0x90] sm:$0xf]
  %v138 = vld [vmem:[%s1 + $0x94] sm:$0xf]
  %v139 = vld [vmem:[%s1 + $0x98] sm:$0xf]
  %v140 = vld [vmem:[%s1 + $0x9c] sm:$0xf]
  %v141 = vld [vmem:[%s1 + $0xa0] sm:$0xf]
  %v142 = vld [vmem:[%s1 + $0xa4] sm:$0xf]
  %v143 = vld [vmem:[%s1 + $0xa8] sm:$0xf]
  %v144 = vld [vmem:[%s1 + $0xac] sm:$0xf]
  %v145 = vld [vmem:[%s1 + $0xb0] sm:$0xf]
  %v146 = vld [vmem:[%s1 + $0xb4] sm:$0xf]
  %v147 = vld [vmem:[%s1 + $0xb8] sm:$0xf]
  %v148 = vld [vmem:[%s1 + $0xbc] sm:$0xf]
  %v149 = vld [vmem:[%s1 + $0xc0] sm:$0xf]
  %v150 = vld [vmem:[%s1 + $0xc4] sm:$0xf]
  %v151 = vld [vmem:[%s1 + $0xc8] sm:$0xf]
  %v152 = vld [vmem:[%s1 + $0xcc] sm:$0xf]
  %v153 = vld [vmem:[%s1 + $0xd0] sm:$0xf]
  %v154 = vld [vmem:[%s1 + $0xd4] sm:$0xf]
  %v155 = vld [vmem:[%s1 + $0xd8] sm:$0xf]
  %v156 = vld [vmem:[%s1 + $0xdc] sm:$0xf]
  %v157 = vld [vmem:[%s1 + $0xe0] sm:$0xf]
  %v158 = vld [vmem:[%s1 + $0xe4] sm:$0xf]
  %v159 = vld [vmem:[%s1 + $0xe8] sm:$0xf]
  %v160 = vld [vmem:[%s1 + $0xec] sm:$0xf]
  %v161 = vld [vmem:[%s1 + $0xf0] sm:$0xf]
  %v162 = vld [vmem:[%s1 + $0xf4] sm:$0xf]
  %v163 = vld [vmem:[%s1 + $0xf8] sm:$0xf]
  %v164 = vld [vmem:[%s1 + $0xfc] sm:$0xf]
  %v165 = vld [vmem:[%s1 + $0x100] sm:$0xf]
  %v166 = vld [vmem:[%s1 + $0x104] sm:$0xf]
  %v167 = vld [vmem:[%s1 + $0x108] sm:$0xf]
  %v168 = vld [vmem:[%s1 + $0x10c] sm:$0xf]
  %v169 = vld [vmem:[%s1 + $0x110] sm:$0xf]
  %v170 = vld [vmem:[%s1 + $0x114] sm:$0xf]
  %v171 = vld [vmem:[%s1 + $0x118] sm:$0xf]
  %v172 = vld [vmem:[%s1 + $0x11c] sm:$0xf]
  %v173 = vld [vmem:[%s1 + $0x120] sm:$0xf]
  %v174 = vld [vmem:[%s1 + $0x124] sm:$0xf]
  %v175 = vld [vmem:[%s1 + $0x128] sm:$0xf]
  %v176 = vld [vmem:[%s1 + $0x12c] sm:$0xf]
  %v177 = vld [vmem:[%s1 + $0x130] sm:$0xf]
  %v178 = vld [vmem:[%s1 + $0x134] sm:$0xf]
  %v179 = vld [vmem:[%s1 + $0x138] sm:$0xf]
  %v180 = vld [vmem:[%s1 + $0x13c] sm:$0xf]
  %v181 = vld [vmem:[%s1 + $0x140] sm:$0xf]
  %v182 = vld [vmem:[%s1 + $0x144] sm:$0xf]
  %v183 = vld [vmem:[%s1 + $0x148] sm:$0xf]
  %v184 = vld [vmem:[%s1 + $0x14c] sm:$0xf]
  %v185 = vld [vmem:[%s1 + $0x150] sm:$0xf]
  %v186 = vld [vmem:[%s1 + $0x154] sm:$0xf]
  %v187 = vld [vmem:[%s1 + $0x158] sm:$0xf]
  %v188 = vld [vmem:[%s1 + $0x15c] sm:$0xf]
  %v189 = vld [vmem:[%s1 + $0x160] sm:$0xf]
  %v190 = vld [vmem:[%s1 + $0x164] sm:$0xf]
  %v191 = vld [vmem:[%s1 + $0x168] sm:$0xf]
  %v192 = vld [vmem:[%s1 + $0x16c] sm:$0xf]
  %v193 = vld [vmem:[%s1 + $0x170] sm:$0xf]
  %v194 = vld [vmem:[%s1 + $0x174] sm:$0xf]
  %v195 = vld [vmem:[%s1 + $0x178] sm:$0xf]
  %v196 = vld [vmem:[%s1 + $0x17c] sm:$0xf]
  %v197 = vld [vmem:[%s1 + $0x180] sm:$0xf]
  %v198 = vld [vmem:[%s1 + $0x184] sm:$0xf]
  %v199 = vld [vmem:[%s1 + $0x188] sm:$0xf]
  %v200 = vld [vmem:[%s1 + $0x18c] sm:$0xf]
  %v201 = vld [vmem:[%s1 + $0x190] sm:$0xf]
  %v202 = vld [vmem:[%s1 + $0x194] sm:$0xf]
  %v203 = vld [vmem:[%s1 + $0x198] sm:$0xf]
  %v204 = vld [vmem:[%s1 + $0x19c] sm:$0xf]
  %v205 = vld [vmem:[%s1 + $0x1a0] sm:$0xf]
  %v206 = vld [vmem:[%s1 + $0x1a4] sm:$0xf]
  %v207 = vld [vmem:[%s1 + $0x1a8] sm:$0xf]
  %v208 = vld [vmem:[%s1 + $0x1ac] sm:$0xf]
  %v209 = vld [vmem:[%s1 + $0x1b0] sm:$0xf]
  %v210 = vld [vmem:[%s1 + $0x1b4] sm:$0xf]
  %v211 = vld [vmem:[%s1 + $0x1b8] sm:$0xf]
  %v212 = vld [vmem:[%s1 + $0x1bc] sm:$0xf]
  %v213 = vld [vmem:[%s1 + $0x1c0] sm:$0xf]
  %v214 = vld [vmem:[%s1 + $0x1c4] sm:$0xf]
  %v215 = vld [vmem:[%s1 + $0x1c8] sm:$0xf]
  %v216 = vld [vmem:[%s1 + $0x1cc] sm:$0xf]
  %v217 = vld [vmem:[%s1 + $0x1d0] sm:$0xf]
  %v218 = vld [vmem:[%s1 + $0x1d4] sm:$0xf]
  %v219 = vld [vmem:[%s1 + $0x1d8] sm:$0xf]
  %v220 = vld [vmem:[%s1 + $0x1dc] sm:$0xf]
  %v221 = vld [vmem:[%s1 + $0x1e0] sm:$0xf]
  %v222 = vld [vmem:[%s1 + $0x1e4] sm:$0xf]
  %v223 = vld [vmem:[%s1 + $0x1e8] sm:$0xf]
  %v224 = vld [vmem:[%s1 + $0x1ec] sm:$0xf]
  %v225 = vld [vmem:[%s1 + $0x1f0] sm:$0xf]
  %v226 = vld [vmem:[%s1 + $0x1f4] sm:$0xf]
  %v227 = vld [vmem:[%s1 + $0x1f8] sm:$0xf]
  %v228 = vld [vmem:[%s1 + $0x1fc] sm:$0xf]
  %v229 = vld [vmem:[%s1 + $0x200] sm:$0xf]
  %v230 = vld [vmem:[%s1 + $0x204] sm:$0xf]
  %v231 = vld [vmem:[%s1 + $0x208] sm:$0xf]
  %v232 = vld [vmem:[%s1 + $0x20c] sm:$0xf]
  %v233 = vld [vmem:[%s1 + $0x210] sm:$0xf]
  %v234 = vld [vmem:[%s1 + $0x214] sm:$0xf]
  %v235 = vld [vmem:[%s1 + $0x218] sm:$0xf]
  %v236 = vld [vmem:[%s1 + $0x21c] sm:$0xf]
  %v237 = vld [vmem:[%s1 + $0x220] sm:$0xf]
  %v238 = vld [vmem:[%s1 + $0x224] sm:$0xf]
  %v239 = vld [vmem:[%s1 + $0x228] sm:$0xf]
  %v240 = vld [vmem:[%s1 + $0x22c] sm:$0xf]
  %v241 = vld [vmem:[%s1 + $0x230] sm:$0xf]
  %v242 = vld [vmem:[%s1 + $0x234] sm:$0xf]
  %v243 = vld [vmem:[%s1 + $0x238] sm:$0xf]
  %v244 = vld [vmem:[%s1 + $0x23c] sm:$0xf]
  %v325 = vunpack.c.l.b16 %v21
  %v326 = vunpack.c.h.b16 %v21
  %v327 = vunpack.c.l.b16 %v22
  %v328 = vunpack.c.h.b16 %v22
  %v329 = vunpack.c.l.b16 %v23
  %v330 = vunpack.c.h.b16 %v23
  %v331 = vunpack.c.l.b16 %v24
  %v332 = vunpack.c.h.b16 %v24
  %v333 = vunpack.c.l.b16 %v25
  %v334 = vunpack.c.l.b16 %v26
  %v335 = vunpack.c.h.b16 %v26
  %v336 = vunpack.c.l.b16 %v27
  %v337 = vunpack.c.h.b16 %v27
  %v338 = vunpack.c.l.b16 %v28
  %v339 = vunpack.c.h.b16 %v28
  %v340 = vunpack.c.l.b16 %v29
  %v341 = vunpack.c.h.b16 %v29
  %v342 = vunpack.c.l.b16 %v30
  %v343 = vunpack.c.l.b16 %v31
  %v344 = vunpack.c.h.b16 %v31
  %v345 = vunpack.c.l.b16 %v32
  %v346 = vunpack.c.h.b16 %v32
  %v347 = vunpack.c.l.b16 %v33
  %v348 = vunpack.c.h.b16 %v33
  %v349 = vunpack.c.l.b16 %v34
  %v350 = vunpack.c.h.b16 %v34
  %v351 = vunpack.c.l.b16 %v35
  %v352 = vunpack.c.l.b16 %v36
  %v353 = vunpack.c.h.b16 %v36
  %v354 = vunpack.c.l.b16 %v37
  %v355 = vunpack.c.h.b16 %v37
  %v356 = vunpack.c.l.b16 %v38
  %v357 = vunpack.c.h.b16 %v38
  %v358 = vunpack.c.l.b16 %v39
  %v359 = vunpack.c.h.b16 %v39
  %v360 = vunpack.c.l.b16 %v40
  %v361 = vunpack.c.l.b16 %v41
  %v362 = vunpack.c.h.b16 %v41
  %v363 = vunpack.c.l.b16 %v42
  %v364 = vunpack.c.h.b16 %v42
  %v365 = vunpack.c.l.b16 %v43
  %v366 = vunpack.c.h.b16 %v43
  %v367 = vunpack.c.l.b16 %v44
  %v368 = vunpack.c.h.b16 %v44
  %v369 = vunpack.c.l.b16 %v45
  %v370 = vunpack.c.l.b16 %v46
  %v371 = vunpack.c.h.b16 %v46
  %v372 = vunpack.c.l.b16 %v47
  %v373 = vunpack.c.h.b16 %v47
  %v374 = vunpack.c.l.b16 %v48
  %v375 = vunpack.c.h.b16 %v48
  %v376 = vunpack.c.l.b16 %v49
  %v377 = vunpack.c.h.b16 %v49
  %v378 = vunpack.c.l.b16 %v50
  %v379 = vunpack.c.l.b16 %v51
  %v380 = vunpack.c.h.b16 %v51
  %v381 = vunpack.c.l.b16 %v52
  %v382 = vunpack.c.h.b16 %v52
  %v383 = vunpack.c.l.b16 %v53
  %v384 = vunpack.c.h.b16 %v53
  %v385 = vunpack.c.l.b16 %v54
  %v386 = vunpack.c.h.b16 %v54
  %v387 = vunpack.c.l.b16 %v55
  %v388 = vunpack.c.l.b16 %v56
  %v389 = vunpack.c.h.b16 %v56
  %v390 = vunpack.c.l.b16 %v57
  %v391 = vunpack.c.h.b16 %v57
  %v392 = vunpack.c.l.b16 %v58
  %v393 = vunpack.c.h.b16 %v58
  %v394 = vunpack.c.l.b16 %v59
  %v395 = vunpack.c.h.b16 %v59
  %v396 = vunpack.c.l.b16 %v60
  %v397 = vunpack.c.l.b16 %v61
  %v398 = vunpack.c.h.b16 %v61
  %v399 = vunpack.c.l.b16 %v62
  %v400 = vunpack.c.h.b16 %v62
  %v401 = vunpack.c.l.b16 %v63
  %v402 = vunpack.c.h.b16 %v63
  %v403 = vunpack.c.l.b16 %v64
  %v404 = vunpack.c.h.b16 %v64
  %v405 = vunpack.c.l.b16 %v65
  %v406 = vunpack.c.l.b16 %v66
  %v407 = vunpack.c.h.b16 %v66
  %v408 = vunpack.c.l.b16 %v67
  %v409 = vunpack.c.h.b16 %v67
  %v410 = vunpack.c.l.b16 %v68
  %v411 = vunpack.c.h.b16 %v68
  %v412 = vunpack.c.l.b16 %v69
  %v413 = vunpack.c.h.b16 %v69
  %v414 = vunpack.c.l.b16 %v70
  %v415 = vunpack.c.l.b16 %v71
  %v416 = vunpack.c.h.b16 %v71
  %v417 = vunpack.c.l.b16 %v72
  %v418 = vunpack.c.h.b16 %v72
  %v419 = vunpack.c.l.b16 %v73
  %v420 = vunpack.c.h.b16 %v73
  %v421 = vunpack.c.l.b16 %v74
  %v422 = vunpack.c.h.b16 %v74
  %v423 = vunpack.c.l.b16 %v75
  %v424 = vunpack.c.l.b16 %v76
  %v425 = vunpack.c.h.b16 %v76
  %v426 = vunpack.c.l.b16 %v77
  %v427 = vunpack.c.h.b16 %v77
  %v428 = vunpack.c.l.b16 %v78
  %v429 = vunpack.c.h.b16 %v78
  %v430 = vunpack.c.l.b16 %v79
  %v431 = vunpack.c.h.b16 %v79
  %v432 = vunpack.c.l.b16 %v80
  %v433 = vunpack.c.l.b16 %v81
  %v434 = vunpack.c.h.b16 %v81
  %v435 = vunpack.c.l.b16 %v82
  %v436 = vunpack.c.h.b16 %v82
  %v437 = vunpack.c.l.b16 %v83
  %v438 = vunpack.c.h.b16 %v83
  %v439 = vunpack.c.l.b16 %v84
  %v440 = vunpack.c.h.b16 %v84
  %v441 = vunpack.c.l.b16 %v85
  %v442 = vunpack.c.l.b16 %v86
  %v443 = vunpack.c.h.b16 %v86
  %v444 = vunpack.c.l.b16 %v87
  %v445 = vunpack.c.h.b16 %v87
  %v446 = vunpack.c.l.b16 %v88
  %v447 = vunpack.c.h.b16 %v88
  %v448 = vunpack.c.l.b16 %v89
  %v449 = vunpack.c.h.b16 %v89
  %v450 = vunpack.c.l.b16 %v90
  %v451 = vunpack.c.l.b16 %v91
  %v452 = vunpack.c.h.b16 %v91
  %v453 = vunpack.c.l.b16 %v92
  %v454 = vunpack.c.h.b16 %v92
  %v455 = vunpack.c.l.b16 %v93
  %v456 = vunpack.c.h.b16 %v93
  %v457 = vunpack.c.l.b16 %v94
  %v458 = vunpack.c.h.b16 %v94
  %v459 = vunpack.c.l.b16 %v95
  %v460 = vunpack.c.l.b16 %v96
  %v461 = vunpack.c.h.b16 %v96
  %v462 = vunpack.c.l.b16 %v97
  %v463 = vunpack.c.h.b16 %v97
  %v464 = vunpack.c.l.b16 %v98
  %v465 = vunpack.c.h.b16 %v98
  %v466 = vunpack.c.l.b16 %v99
  %v467 = vunpack.c.h.b16 %v99
  %v468 = vunpack.c.l.b16 %v100
  %v469 = vpack.c.b16 %v334, %v325
  %v470 = vpack.c.b16 %v335, %v326
  %v471 = vpack.c.b16 %v336, %v327
  %v472 = vpack.c.b16 %v337, %v328
  %v473 = vpack.c.b16 %v338, %v329
  %v474 = vpack.c.b16 %v339, %v330
  %v475 = vpack.c.b16 %v340, %v331
  %v476 = vpack.c.b16 %v341, %v332
  %v477 = vpack.c.b16 %v342, %v333
  %v478 = vpack.c.b16 %v352, %v343
  %v479 = vpack.c.b16 %v353, %v344
  %v480 = vpack.c.b16 %v354, %v345
  %v481 = vpack.c.b16 %v355, %v346
  %v482 = vpack.c.b16 %v356, %v347
  %v483 = vpack.c.b16 %v357, %v348
  %v484 = vpack.c.b16 %v358, %v349
  %v485 = vpack.c.b16 %v359, %v350
  %v486 = vpack.c.b16 %v360, %v351
  %v487 = vpack.c.b16 %v370, %v361
  %v488 = vpack.c.b16 %v371, %v362
  %v489 = vpack.c.b16 %v372, %v363
  %v490 = vpack.c.b16 %v373, %v364
  %v491 = vpack.c.b16 %v374, %v365
  %v492 = vpack.c.b16 %v375, %v366
  %v493 = vpack.c.b16 %v376, %v367
  %v494 = vpack.c.b16 %v377, %v368
  %v495 = vpack.c.b16 %v378, %v369
  %v496 = vpack.c.b16 %v388, %v379
  %v497 = vpack.c.b16 %v389, %v380
  %v498 = vpack.c.b16 %v390, %v381
  %v499 = vpack.c.b16 %v391, %v382
  %v500 = vpack.c.b16 %v392, %v383
  %v501 = vpack.c.b16 %v393, %v384
  %v502 = vpack.c.b16 %v394, %v385
  %v503 = vpack.c.b16 %v395, %v386
  %v504 = vpack.c.b16 %v396, %v387
  %v505 = vpack.c.b16 %v406, %v397
  %v506 = vpack.c.b16 %v407, %v398
  %v507 = vpack.c.b16 %v408, %v399
  %v508 = vpack.c.b16 %v409, %v400
  %v509 = vpack.c.b16 %v410, %v401
  %v510 = vpack.c.b16 %v411, %v402
  %v511 = vpack.c.b16 %v412, %v403
  %v512 = vpack.c.b16 %v413, %v404
  %v513 = vpack.c.b16 %v414, %v405
  %v514 = vpack.c.b16 %v424, %v415
  %v515 = vpack.c.b16 %v425, %v416
  %v516 = vpack.c.b16 %v426, %v417
  %v517 = vpack.c.b16 %v427, %v418
  %v518 = vpack.c.b16 %v428, %v419
  %v519 = vpack.c.b16 %v429, %v420
  %v520 = vpack.c.b16 %v430, %v421
  %v521 = vpack.c.b16 %v431, %v422
  %v522 = vpack.c.b16 %v432, %v423
  %v523 = vpack.c.b16 %v442, %v433
  %v524 = vpack.c.b16 %v443, %v434
  %v525 = vpack.c.b16 %v444, %v435
  %v526 = vpack.c.b16 %v445, %v436
  %v527 = vpack.c.b16 %v446, %v437
  %v528 = vpack.c.b16 %v447, %v438
  %v529 = vpack.c.b16 %v448, %v439
  %v530 = vpack.c.b16 %v449, %v440
  %v531 = vpack.c.b16 %v450, %v441
  %v532 = vpack.c.b16 %v460, %v451
  %v533 = vpack.c.b16 %v461, %v452
  %v534 = vpack.c.b16 %v462, %v453
  %v535 = vpack.c.b16 %v463, %v454
  %v536 = vpack.c.b16 %v464, %v455
  %v537 = vpack.c.b16 %v465, %v456
  %v538 = vpack.c.b16 %v466, %v457
  %v539 = vpack.c.b16 %v467, %v458
  %v540 = vpack.c.b16 %v468, %v459
  %v757 = vunpack.c.l.b16 %v101
  %v758 = vunpack.c.l.b16 %v102
  %v759 = vunpack.c.l.b16 %v103
  %v760 = vunpack.c.l.b16 %v104
  %v761 = vunpack.c.l.b16 %v105
  %v762 = vunpack.c.l.b16 %v106
  %v763 = vunpack.c.l.b16 %v107
  %v764 = vunpack.c.l.b16 %v108
  %v765 = vunpack.c.l.b16 %v109
  %v766 = vunpack.c.l.b16 %v110
  %v767 = vunpack.c.l.b16 %v111
  %v768 = vunpack.c.l.b16 %v112
  %v769 = vunpack.c.l.b16 %v113
  %v770 = vunpack.c.l.b16 %v114
  %v771 = vunpack.c.l.b16 %v115
  %v772 = vunpack.c.l.b16 %v116
  %v773 = vunpack.c.l.b16 %v117
  %v774 = vunpack.c.l.b16 %v118
  %v775 = vunpack.c.l.b16 %v119
  %v776 = vunpack.c.l.b16 %v120
  %v777 = vunpack.c.l.b16 %v121
  %v778 = vunpack.c.l.b16 %v122
  %v779 = vunpack.c.l.b16 %v123
  %v780 = vunpack.c.l.b16 %v124
  %v781 = vunpack.c.l.b16 %v125
  %v782 = vunpack.c.l.b16 %v126
  %v783 = vunpack.c.l.b16 %v127
  %v784 = vunpack.c.l.b16 %v128
  %v785 = vunpack.c.l.b16 %v129
  %v786 = vunpack.c.l.b16 %v130
  %v787 = vunpack.c.l.b16 %v131
  %v788 = vunpack.c.l.b16 %v132
  %v789 = vunpack.c.l.b16 %v133
  %v790 = vunpack.c.l.b16 %v134
  %v791 = vunpack.c.l.b16 %v135
  %v792 = vunpack.c.l.b16 %v136
  %v793 = vunpack.c.l.b16 %v137
  %v794 = vunpack.c.l.b16 %v138
  %v795 = vunpack.c.l.b16 %v139
  %v796 = vunpack.c.l.b16 %v140
  %v797 = vunpack.c.l.b16 %v141
  %v798 = vunpack.c.l.b16 %v142
  %v799 = vunpack.c.l.b16 %v143
  %v800 = vunpack.c.l.b16 %v144
  %v801 = vunpack.c.l.b16 %v145
  %v802 = vunpack.c.l.b16 %v146
  %v803 = vunpack.c.l.b16 %v147
  %v804 = vunpack.c.l.b16 %v148
  %v805 = vunpack.c.l.b16 %v149
  %v806 = vunpack.c.l.b16 %v150
  %v807 = vunpack.c.l.b16 %v151
  %v808 = vunpack.c.l.b16 %v152
  %v809 = vunpack.c.l.b16 %v153
  %v810 = vunpack.c.l.b16 %v154
  %v811 = vunpack.c.l.b16 %v155
  %v812 = vunpack.c.l.b16 %v156
  %v813 = vunpack.c.l.b16 %v157
  %v814 = vunpack.c.l.b16 %v158
  %v815 = vunpack.c.l.b16 %v159
  %v816 = vunpack.c.l.b16 %v160
  %v817 = vunpack.c.l.b16 %v161
  %v818 = vunpack.c.l.b16 %v162
  %v819 = vunpack.c.l.b16 %v163
  %v820 = vunpack.c.l.b16 %v164
  %v821 = vunpack.c.l.b16 %v165
  %v822 = vunpack.c.l.b16 %v166
  %v823 = vunpack.c.l.b16 %v167
  %v824 = vunpack.c.l.b16 %v168
  %v825 = vunpack.c.l.b16 %v169
  %v826 = vunpack.c.l.b16 %v170
  %v827 = vunpack.c.l.b16 %v171
  %v828 = vunpack.c.l.b16 %v172
  %v829 = vunpack.c.l.b16 %v173
  %v830 = vunpack.c.l.b16 %v174
  %v831 = vunpack.c.l.b16 %v175
  %v832 = vunpack.c.l.b16 %v176
  %v833 = vunpack.c.l.b16 %v177
  %v834 = vunpack.c.l.b16 %v178
  %v835 = vunpack.c.l.b16 %v179
  %v836 = vunpack.c.l.b16 %v180
  %v837 = vunpack.c.l.b16 %v181
  %v838 = vunpack.c.l.b16 %v182
  %v839 = vunpack.c.l.b16 %v183
  %v840 = vunpack.c.l.b16 %v184
  %v841 = vunpack.c.l.b16 %v185
  %v842 = vunpack.c.l.b16 %v186
  %v843 = vunpack.c.l.b16 %v187
  %v844 = vunpack.c.l.b16 %v188
  %v845 = vunpack.c.l.b16 %v189
  %v846 = vunpack.c.l.b16 %v190
  %v847 = vunpack.c.l.b16 %v191
  %v848 = vunpack.c.l.b16 %v192
  %v849 = vunpack.c.l.b16 %v193
  %v850 = vunpack.c.l.b16 %v194
  %v851 = vunpack.c.l.b16 %v195
  %v852 = vunpack.c.l.b16 %v196
  %v853 = vunpack.c.l.b16 %v197
  %v854 = vunpack.c.l.b16 %v198
  %v855 = vunpack.c.l.b16 %v199
  %v856 = vunpack.c.l.b16 %v200
  %v857 = vunpack.c.l.b16 %v201
  %v858 = vunpack.c.l.b16 %v202
  %v859 = vunpack.c.l.b16 %v203
  %v860 = vunpack.c.l.b16 %v204
  %v861 = vunpack.c.l.b16 %v205
  %v862 = vunpack.c.l.b16 %v206
  %v863 = vunpack.c.l.b16 %v207
  %v864 = vunpack.c.l.b16 %v208
  %v865 = vunpack.c.l.b16 %v209
  %v866 = vunpack.c.l.b16 %v210
  %v867 = vunpack.c.l.b16 %v211
  %v868 = vunpack.c.l.b16 %v212
  %v869 = vunpack.c.l.b16 %v213
  %v870 = vunpack.c.l.b16 %v214
  %v871 = vunpack.c.l.b16 %v215
  %v872 = vunpack.c.l.b16 %v216
  %v873 = vunpack.c.l.b16 %v217
  %v874 = vunpack.c.l.b16 %v218
  %v875 = vunpack.c.l.b16 %v219
  %v876 = vunpack.c.l.b16 %v220
  %v877 = vunpack.c.l.b16 %v221
  %v878 = vunpack.c.l.b16 %v222
  %v879 = vunpack.c.l.b16 %v223
  %v880 = vunpack.c.l.b16 %v224
  %v881 = vunpack.c.l.b16 %v225
  %v882 = vunpack.c.l.b16 %v226
  %v883 = vunpack.c.l.b16 %v227
  %v884 = vunpack.c.l.b16 %v228
  %v885 = vunpack.c.l.b16 %v229
  %v886 = vunpack.c.l.b16 %v230
  %v887 = vunpack.c.l.b16 %v231
  %v888 = vunpack.c.l.b16 %v232
  %v889 = vunpack.c.l.b16 %v233
  %v890 = vunpack.c.l.b16 %v234
  %v891 = vunpack.c.l.b16 %v235
  %v892 = vunpack.c.l.b16 %v236
  %v893 = vunpack.c.l.b16 %v237
  %v894 = vunpack.c.l.b16 %v238
  %v895 = vunpack.c.l.b16 %v239
  %v896 = vunpack.c.l.b16 %v240
  %v897 = vunpack.c.l.b16 %v241
  %v898 = vunpack.c.l.b16 %v242
  %v899 = vunpack.c.l.b16 %v243
  %v900 = vunpack.c.l.b16 %v244
  %v901 = vpack.c.b16 %v758, %v757
  %v902 = vpack.c.b16 %v760, %v759
  %v903 = vpack.c.b16 %v762, %v761
  %v904 = vpack.c.b16 %v764, %v763
  %v905 = vpack.c.b16 %v766, %v765
  %v906 = vpack.c.b16 %v768, %v767
  %v907 = vpack.c.b16 %v770, %v769
  %v908 = vpack.c.b16 %v772, %v771
  %v909 = vpack.c.b16 %v774, %v773
  %v910 = vpack.c.b16 %v776, %v775
  %v911 = vpack.c.b16 %v778, %v777
  %v912 = vpack.c.b16 %v780, %v779
  %v913 = vpack.c.b16 %v782, %v781
  %v914 = vpack.c.b16 %v784, %v783
  %v915 = vpack.c.b16 %v786, %v785
  %v916 = vpack.c.b16 %v788, %v787
  %v917 = vpack.c.b16 %v790, %v789
  %v918 = vpack.c.b16 %v792, %v791
  %v919 = vpack.c.b16 %v794, %v793
  %v920 = vpack.c.b16 %v796, %v795
  %v921 = vpack.c.b16 %v798, %v797
  %v922 = vpack.c.b16 %v800, %v799
  %v923 = vpack.c.b16 %v802, %v801
  %v924 = vpack.c.b16 %v804, %v803
  %v925 = vpack.c.b16 %v806, %v805
  %v926 = vpack.c.b16 %v808, %v807
  %v927 = vpack.c.b16 %v810, %v809
  %v928 = vpack.c.b16 %v812, %v811
  %v929 = vpack.c.b16 %v814, %v813
  %v930 = vpack.c.b16 %v816, %v815
  %v931 = vpack.c.b16 %v818, %v817
  %v932 = vpack.c.b16 %v820, %v819
  %v933 = vpack.c.b16 %v822, %v821
  %v934 = vpack.c.b16 %v824, %v823
  %v935 = vpack.c.b16 %v826, %v825
  %v936 = vpack.c.b16 %v828, %v827
  %v937 = vpack.c.b16 %v830, %v829
  %v938 = vpack.c.b16 %v832, %v831
  %v939 = vpack.c.b16 %v834, %v833
  %v940 = vpack.c.b16 %v836, %v835
  %v941 = vpack.c.b16 %v838, %v837
  %v942 = vpack.c.b16 %v840, %v839
  %v943 = vpack.c.b16 %v842, %v841
  %v944 = vpack.c.b16 %v844, %v843
  %v945 = vpack.c.b16 %v846, %v845
  %v946 = vpack.c.b16 %v848, %v847
  %v947 = vpack.c.b16 %v850, %v849
  %v948 = vpack.c.b16 %v852, %v851
  %v949 = vpack.c.b16 %v854, %v853
  %v950 = vpack.c.b16 %v856, %v855
  %v951 = vpack.c.b16 %v858, %v857
  %v952 = vpack.c.b16 %v860, %v859
  %v953 = vpack.c.b16 %v862, %v861
  %v954 = vpack.c.b16 %v864, %v863
  %v955 = vpack.c.b16 %v866, %v865
  %v956 = vpack.c.b16 %v868, %v867
  %v957 = vpack.c.b16 %v870, %v869
  %v958 = vpack.c.b16 %v872, %v871
  %v959 = vpack.c.b16 %v874, %v873
  %v960 = vpack.c.b16 %v876, %v875
  %v961 = vpack.c.b16 %v878, %v877
  %v962 = vpack.c.b16 %v880, %v879
  %v963 = vpack.c.b16 %v882, %v881
  %v964 = vpack.c.b16 %v884, %v883
  %v965 = vpack.c.b16 %v886, %v885
  %v966 = vpack.c.b16 %v888, %v887
  %v967 = vpack.c.b16 %v890, %v889
  %v968 = vpack.c.b16 %v892, %v891
  %v969 = vpack.c.b16 %v894, %v893
  %v970 = vpack.c.b16 %v896, %v895
  %v971 = vpack.c.b16 %v898, %v897
  %v972 = vpack.c.b16 %v900, %v899
  %1045 = vmatprep.subr.bf16.mxu0 0
  %1046 = vmatpush1.bf16.msra.mxu0 %v901
  %1047 = vmatprep.subr.bf16.mxu0 0
  %1048 = vmatpush1.bf16.msra.mxu0 %v902
  %1049 = vmatprep.subr.bf16.mxu0 0
  %1050 = vmatpush1.bf16.msra.mxu0 %v903
  %1051 = vmatprep.subr.bf16.mxu0 0
  %1052 = vmatpush1.bf16.msra.mxu0 %v904
  %1053 = vmatprep.subr.bf16.mxu0 0
  %1054 = vmatpush1.bf16.msra.mxu0 %v905
  %1055 = vmatprep.subr.bf16.mxu0 0
  %1056 = vmatpush1.bf16.msra.mxu0 %v906
  %1057 = vmatprep.subr.bf16.mxu0 0
  %1058 = vmatpush1.bf16.msra.mxu0 %v907
  %1059 = vmatprep.subr.bf16.mxu0 0
  %1060 = vmatpush1.bf16.msra.mxu0 %v908
  %1061 = vmatprep.subr.bf16.mxu0 0
  %1062 = vmatpush1.bf16.msra.mxu0 %v909
  %1063 = vmatprep.subr.bf16.mxu0 0
  %1064 = vmatpush1.bf16.msra.mxu0 %v910
  %1065 = vmatprep.subr.bf16.mxu0 0
  %1066 = vmatpush1.bf16.msra.mxu0 %v911
  %1067 = vmatprep.subr.bf16.mxu0 0
  %1068 = vmatpush1.bf16.msra.mxu0 %v912
  %1069 = vmatprep.subr.bf16.mxu0 0
  %1070 = vmatpush1.bf16.msra.mxu0 %v913
  %1071 = vmatprep.subr.bf16.mxu0 0
  %1072 = vmatpush1.bf16.msra.mxu0 %v914
  %1073 = vmatprep.subr.bf16.mxu0 0
  %1074 = vmatpush1.bf16.msra.mxu0 %v915
  %1075 = vmatprep.subr.bf16.mxu0 0
  %1076 = vmatpush1.bf16.msra.mxu0 %v916
  %1077 = vmatprep.mubr.bf16.mxu0 %v470
  %1078 = vmatmul.mubr.bf16.gmra.mrb[0].mxu0 %v469
  %v1079 = vpop.f32.mrb[0].mxu0
  %v1080 = vadd.f32 0.0, %v1079
  %v1081 = vpop.f32.mrb[0].mxu0
  %v1082 = vpop.f32.mrb[0].mxu0
  %v1083 = vadd.f32 0.0, %v1082
  %v1084 = vpop.f32.mrb[0].mxu0
  %1085 = vmatprep.mubr.bf16.mxu0 %v479
  %1086 = vmatmul.mubr.bf16.gmra.mrb[0].mxu0 %v478
  %v1087 = vpop.f32.mrb[0].mxu0
  %v1088 = vadd.f32 0.0, %v1087
  %v1089 = vpop.f32.mrb[0].mxu0
  %v1090 = vpop.f32.mrb[0].mxu0
  %v1091 = vadd.f32 0.0, %v1090
  %v1092 = vpop.f32.mrb[0].mxu0
  %1093 = vmatprep.mubr.bf16.mxu0 %v488
  %1094 = vmatmul.mubr.bf16.gmra.mrb[0].mxu0 %v487
  %v1095 = vpop.f32.mrb[0].mxu0
  %v1096 = vadd.f32 0.0, %v1095
  %v1097 = vpop.f32.mrb[0].mxu0
  %v1098 = vpop.f32.mrb[0].mxu0
  %v1099 = vadd.f32 0.0, %v1098
  %v1100 = vpop.f32.mrb[0].mxu0
  %1101 = vmatprep.mubr.bf16.mxu0 %v497
  %1102 = vmatmul.mubr.bf16.gmra.mrb[0].mxu0 %v496
  %v1103 = vpop.f32.mrb[0].mxu0
  %v1104 = vadd.f32 0.0, %v1103
  %v1105 = vpop.f32.mrb[0].mxu0
  %v1106 = vpop.f32.mrb[0].mxu0
  %v1107 = vadd.f32 0.0, %v1106
  %v1108 = vpop.f32.mrb[0].mxu0
  %1109 = vmatprep.mubr.bf16.mxu0 %v506
  %1110 = vmatmul.mubr.bf16.gmra.mrb[0].mxu0 %v505
  %v1111 = vpop.f32.mrb[0].mxu0
  %v1112 = vadd.f32 0.0, %v1111
  %v1113 = vpop.f32.mrb[0].mxu0
  %v1114 = vpop.f32.mrb[0].mxu0
  %v1115 = vadd.f32 0.0, %v1114
  %v1116 = vpop.f32.mrb[0].mxu0
  %1117 = vmatprep.mubr.bf16.mxu0 %v515
  %1118 = vmatmul.mubr.bf16.gmra.mrb[0].mxu0 %v514
  %v1119 = vpop.f32.mrb[0].mxu0
  %v1120 = vadd.f32 0.0, %v1119
  %v1121 = vpop.f32.mrb[0].mxu0
  %v1122 = vpop.f32.mrb[0].mxu0
  %v1123 = vadd.f32 0.0, %v1122
  %v1124 = vpop.f32.mrb[0].mxu0
  %1125 = vmatprep.mubr.bf16.mxu0 %v524
  %1126 = vmatmul.mubr.bf16.gmra.mrb[0].mxu0 %v523
  %v1127 = vpop.f32.mrb[0].mxu0
  %v1128 = vadd.f32 0.0, %v1127
  %v1129 = vpop.f32.mrb[0].mxu0
  %v1130 = vpop.f32.mrb[0].mxu0
  %v1131 = vadd.f32 0.0, %v1130
  %v1132 = vpop.f32.mrb[0].mxu0
  %1133 = vmatprep.mubr.bf16.mxu0 %v533
  %1134 = vmatmul.mubr.bf16.gmra.mrb[0].mxu0 %v532
  %v1135 = vpop.f32.mrb[0].mxu0
  %v1136 = vadd.f32 0.0, %v1135
  %v1137 = vpop.f32.mrb[0].mxu0
  %v1138 = vpop.f32.mrb[0].mxu0
  %v1139 = vadd.f32 0.0, %v1138
  %v1140 = vpop.f32.mrb[0].mxu0
  %1141 = vdwg.mxu0
  %1142 = vmatprep.subr.bf16.mxu0 0
  %1143 = vmatpush1.bf16.msra.mxu0 %v917
  %1144 = vmatprep.subr.bf16.mxu0 0
  %1145 = vmatpush1.bf16.msra.mxu0 %v918
  %1146 = vmatprep.subr.bf16.mxu0 0
  %1147 = vmatpush1.bf16.msra.mxu0 %v919
  %1148 = vmatprep.subr.bf16.mxu0 0
  %1149 = vmatpush1.bf16.msra.mxu0 %v920
  %1150 = vmatprep.subr.bf16.mxu0 0
  %1151 = vmatpush1.bf16.msra.mxu0 %v921
  %1152 = vmatprep.subr.bf16.mxu0 0
  %1153 = vmatpush1.bf16.msra.mxu0 %v922
  %1154 = vmatprep.subr.bf16.mxu0 0
  %1155 = vmatpush1.bf16.msra.mxu0 %v923
  %1156 = vmatprep.subr.bf16.mxu0 0
  %1157 = vmatpush1.bf16.msra.mxu0 %v924
  %1158 = vmatprep.subr.bf16.mxu0 0
  %1159 = vmatpush1.bf16.msra.mxu0 %v925
  %1160 = vmatprep.subr.bf16.mxu0 0
  %1161 = vmatpush1.bf16.msra.mxu0 %v926
  %1162 = vmatprep.subr.bf16.mxu0 0
  %1163 = vmatpush1.bf16.msra.mxu0 %v927
  %1164 = vmatprep.subr.bf16.mxu0 0
  %1165 = vmatpush1.bf16.msra.mxu0 %v928
  %1166 = vmatprep.subr.bf16.mxu0 0
  %1167 = vmatpush1.bf16.msra.mxu0 %v929
  %1168 = vmatprep.subr.bf16.mxu0 0
  %1169 = vmatpush1.bf16.msra.mxu0 %v930
  %1170 = vmatprep.subr.bf16.mxu0 0
  %1171 = vmatpush1.bf16.msra.mxu0 %v931
  %1172 = vmatprep.subr.bf16.mxu0 0
  %1173 = vmatpush1.bf16.msra.mxu0 %v932
  %1174 = vmatprep.mubr.bf16.mxu0 %v472
  %1175 = vmatmul.mubr.bf16.gmra.mrb[0].mxu0 %v471
  %v1176 = vpop.f32.mrb[0].mxu0
  %v1177 = vadd.f32 %v1080, %v1176
  %v1178 = vpop.f32.mrb[0].mxu0
  %v1179 = vpop.f32.mrb[0].mxu0
  %v1180 = vadd.f32 %v1083, %v1179
  %v1181 = vpop.f32.mrb[0].mxu0
  %1182 = vmatprep.mubr.bf16.mxu0 %v481
  %1183 = vmatmul.mubr.bf16.gmra.mrb[0].mxu0 %v480
  %v1184 = vpop.f32.mrb[0].mxu0
  %v1185 = vadd.f32 %v1088, %v1184
  %v1186 = vpop.f32.mrb[0].mxu0
  %v1187 = vpop.f32.mrb[0].mxu0
  %v1188 = vadd.f32 %v1091, %v1187
  %v1189 = vpop.f32.mrb[0].mxu0
  %1190 = vmatprep.mubr.bf16.mxu0 %v490
  %1191 = vmatmul.mubr.bf16.gmra.mrb[0].mxu0 %v489
  %v1192 = vpop.f32.mrb[0].mxu0
  %v1193 = vadd.f32 %v1096, %v1192
  %v1194 = vpop.f32.mrb[0].mxu0
  %v1195 = vpop.f32.mrb[0].mxu0
  %v1196 = vadd.f32 %v1099, %v1195
  %v1197 = vpop.f32.mrb[0].mxu0
  %1198 = vmatprep.mubr.bf16.mxu0 %v499
  %1199 = vmatmul.mubr.bf16.gmra.mrb[0].mxu0 %v498
  %v1200 = vpop.f32.mrb[0].mxu0
  %v1201 = vadd.f32 %v1104, %v1200
  %v1202 = vpop.f32.mrb[0].mxu0
  %v1203 = vpop.f32.mrb[0].mxu0
  %v1204 = vadd.f32 %v1107, %v1203
  %v1205 = vpop.f32.mrb[0].mxu0
  %1206 = vmatprep.mubr.bf16.mxu0 %v508
  %1207 = vmatmul.mubr.bf16.gmra.mrb[0].mxu0 %v507
  %v1208 = vpop.f32.mrb[0].mxu0
  %v1209 = vadd.f32 %v1112, %v1208
  %v1210 = vpop.f32.mrb[0].mxu0
  %v1211 = vpop.f32.mrb[0].mxu0
  %v1212 = vadd.f32 %v1115, %v1211
  %v1213 = vpop.f32.mrb[0].mxu0
  %1214 = vmatprep.mubr.bf16.mxu0 %v517
  %1215 = vmatmul.mubr.bf16.gmra.mrb[0].mxu0 %v516
  %v1216 = vpop.f32.mrb[0].mxu0
  %v1217 = vadd.f32 %v1120, %v1216
  %v1218 = vpop.f32.mrb[0].mxu0
  %v1219 = vpop.f32.mrb[0].mxu0
  %v1220 = vadd.f32 %v1123, %v1219
  %v1221 = vpop.f32.mrb[0].mxu0
  %1222 = vmatprep.mubr.bf16.mxu0 %v526
  %1223 = vmatmul.mubr.bf16.gmra.mrb[0].mxu0 %v525
  %v1224 = vpop.f32.mrb[0].mxu0
  %v1225 = vadd.f32 %v1128, %v1224
  %v1226 = vpop.f32.mrb[0].mxu0
  %v1227 = vpop.f32.mrb[0].mxu0
  %v1228 = vadd.f32 %v1131, %v1227
  %v1229 = vpop.f32.mrb[0].mxu0
  %1230 = vmatprep.mubr.bf16.mxu0 %v535
  %1231 = vmatmul.mubr.bf16.gmra.mrb[0].mxu0 %v534
  %v1232 = vpop.f32.mrb[0].mxu0
  %v1233 = vadd.f32 %v1136, %v1232
  %v1234 = vpop.f32.mrb[0].mxu0
  %v1235 = vpop.f32.mrb[0].mxu0
  %v1236 = vadd.f32 %v1139, %v1235
  %v1237 = vpop.f32.mrb[0].mxu0
  %1238 = vdwg.mxu0
  %1239 = vmatprep.subr.bf16.mxu0 0
  %1240 = vmatpush1.bf16.msra.mxu0 %v933
  %1241 = vmatprep.subr.bf16.mxu0 0
  %1242 = vmatpush1.bf16.msra.mxu0 %v934
  %1243 = vmatprep.subr.bf16.mxu0 0
  %1244 = vmatpush1.bf16.msra.mxu0 %v935
  %1245 = vmatprep.subr.bf16.mxu0 0
  %1246 = vmatpush1.bf16.msra.mxu0 %v936
  %1247 = vmatprep.subr.bf16.mxu0 0
  %1248 = vmatpush1.bf16.msra.mxu0 %v937
  %1249 = vmatprep.subr.bf16.mxu0 0
  %1250 = vmatpush1.bf16.msra.mxu0 %v938
  %1251 = vmatprep.subr.bf16.mxu0 0
  %1252 = vmatpush1.bf16.msra.mxu0 %v939
  %1253 = vmatprep.subr.bf16.mxu0 0
  %1254 = vmatpush1.bf16.msra.mxu0 %v940
  %1255 = vmatprep.subr.bf16.mxu0 0
  %1256 = vmatpush1.bf16.msra.mxu0 %v941
  %1257 = vmatprep.subr.bf16.mxu0 0
  %1258 = vmatpush1.bf16.msra.mxu0 %v942
  %1259 = vmatprep.subr.bf16.mxu0 0
  %1260 = vmatpush1.bf16.msra.mxu0 %v943
  %1261 = vmatprep.subr.bf16.mxu0 0
  %1262 = vmatpush1.bf16.msra.mxu0 %v944
  %1263 = vmatprep.subr.bf16.mxu0 0
  %1264 = vmatpush1.bf16.msra.mxu0 %v945
  %1265 = vmatprep.subr.bf16.mxu0 0
  %1266 = vmatpush1.bf16.msra.mxu0 %v946
  %1267 = vmatprep.subr.bf16.mxu0 0
  %1268 = vmatpush1.bf16.msra.mxu0 %v947
  %1269 = vmatprep.subr.bf16.mxu0 0
  %1270 = vmatpush1.bf16.msra.mxu0 %v948
  %1271 = vmatprep.mubr.bf16.mxu0 %v474
  %1272 = vmatmul.mubr.bf16.gmra.mrb[0].mxu0 %v473
  %v1273 = vpop.f32.mrb[0].mxu0
  %v1274 = vadd.f32 %v1177, %v1273
  %v1275 = vpop.f32.mrb[0].mxu0
  %v1276 = vpop.f32.mrb[0].mxu0
  %v1277 = vadd.f32 %v1180, %v1276
  %v1278 = vpop.f32.mrb[0].mxu0
  %1279 = vmatprep.mubr.bf16.mxu0 %v483
  %1280 = vmatmul.mubr.bf16.gmra.mrb[0].mxu0 %v482
  %v1281 = vpop.f32.mrb[0].mxu0
  %v1282 = vadd.f32 %v1185, %v1281
  %v1283 = vpop.f32.mrb[0].mxu0
  %v1284 = vpop.f32.mrb[0].mxu0
  %v1285 = vadd.f32 %v1188, %v1284
  %v1286 = vpop.f32.mrb[0].mxu0
  %1287 = vmatprep.mubr.bf16.mxu0 %v492
  %1288 = vmatmul.mubr.bf16.gmra.mrb[0].mxu0 %v491
  %v1289 = vpop.f32.mrb[0].mxu0
  %v1290 = vadd.f32 %v1193, %v1289
  %v1291 = vpop.f32.mrb[0].mxu0
  %v1292 = vpop.f32.mrb[0].mxu0
  %v1293 = vadd.f32 %v1196, %v1292
  %v1294 = vpop.f32.mrb[0].mxu0
  %1295 = vmatprep.mubr.bf16.mxu0 %v501
  %1296 = vmatmul.mubr.bf16.gmra.mrb[0].mxu0 %v500
  %v1297 = vpop.f32.mrb[0].mxu0
  %v1298 = vadd.f32 %v1201, %v1297
  %v1299 = vpop.f32.mrb[0].mxu0
  %v1300 = vpop.f32.mrb[0].mxu0
  %v1301 = vadd.f32 %v1204, %v1300
  %v1302 = vpop.f32.mrb[0].mxu0
  %1303 = vmatprep.mubr.bf16.mxu0 %v510
  %1304 = vmatmul.mubr.bf16.gmra.mrb[0].mxu0 %v509
  %v1305 = vpop.f32.mrb[0].mxu0
  %v1306 = vadd.f32 %v1209, %v1305
  %v1307 = vpop.f32.mrb[0].mxu0
  %v1308 = vpop.f32.mrb[0].mxu0
  %v1309 = vadd.f32 %v1212, %v1308
  %v1310 = vpop.f32.mrb[0].mxu0
  %1311 = vmatprep.mubr.bf16.mxu0 %v519
  %1312 = vmatmul.mubr.bf16.gmra.mrb[0].mxu0 %v518
  %v1313 = vpop.f32.mrb[0].mxu0
  %v1314 = vadd.f32 %v1217, %v1313
  %v1315 = vpop.f32.mrb[0].mxu0
  %v1316 = vpop.f32.mrb[0].mxu0
  %v1317 = vadd.f32 %v1220, %v1316
  %v1318 = vpop.f32.mrb[0].mxu0
  %1319 = vmatprep.mubr.bf16.mxu0 %v528
  %1320 = vmatmul.mubr.bf16.gmra.mrb[0].mxu0 %v527
  %v1321 = vpop.f32.mrb[0].mxu0
  %v1322 = vadd.f32 %v1225, %v1321
  %v1323 = vpop.f32.mrb[0].mxu0
  %v1324 = vpop.f32.mrb[0].mxu0
  %v1325 = vadd.f32 %v1228, %v1324
  %v1326 = vpop.f32.mrb[0].mxu0
  %1327 = vmatprep.mubr.bf16.mxu0 %v537
  %1328 = vmatmul.mubr.bf16.gmra.mrb[0].mxu0 %v536
  %v1329 = vpop.f32.mrb[0].mxu0
  %v1330 = vadd.f32 %v1233, %v1329
  %v1331 = vpop.f32.mrb[0].mxu0
  %v1332 = vpop.f32.mrb[0].mxu0
  %v1333 = vadd.f32 %v1236, %v1332
  %v1334 = vpop.f32.mrb[0].mxu0
  %1335 = vdwg.mxu0
  %1336 = vmatprep.subr.bf16.mxu0 0
  %1337 = vmatpush1.bf16.msra.mxu0 %v949
  %1338 = vmatprep.subr.bf16.mxu0 0
  %1339 = vmatpush1.bf16.msra.mxu0 %v950
  %1340 = vmatprep.subr.bf16.mxu0 0
  %1341 = vmatpush1.bf16.msra.mxu0 %v951
  %1342 = vmatprep.subr.bf16.mxu0 0
  %1343 = vmatpush1.bf16.msra.mxu0 %v952
  %1344 = vmatprep.subr.bf16.mxu0 0
  %1345 = vmatpush1.bf16.msra.mxu0 %v953
  %1346 = vmatprep.subr.bf16.mxu0 0
  %1347 = vmatpush1.bf16.msra.mxu0 %v954
  %1348 = vmatprep.subr.bf16.mxu0 0
  %1349 = vmatpush1.bf16.msra.mxu0 %v955
  %1350 = vmatprep.subr.bf16.mxu0 0
  %1351 = vmatpush1.bf16.msra.mxu0 %v956
  %1352 = vmatprep.subr.bf16.mxu0 0
  %1353 = vmatpush1.bf16.msra.mxu0 %v957
  %1354 = vmatprep.subr.bf16.mxu0 0
  %1355 = vmatpush1.bf16.msra.mxu0 %v958
  %1356 = vmatprep.subr.bf16.mxu0 0
  %1357 = vmatpush1.bf16.msra.mxu0 %v959
  %1358 = vmatprep.subr.bf16.mxu0 0
  %1359 = vmatpush1.bf16.msra.mxu0 %v960
  %1360 = vmatprep.subr.bf16.mxu0 0
  %1361 = vmatpush1.bf16.msra.mxu0 %v961
  %1362 = vmatprep.subr.bf16.mxu0 0
  %1363 = vmatpush1.bf16.msra.mxu0 %v962
  %1364 = vmatprep.subr.bf16.mxu0 0
  %1365 = vmatpush1.bf16.msra.mxu0 %v963
  %1366 = vmatprep.subr.bf16.mxu0 0
  %1367 = vmatpush1.bf16.msra.mxu0 %v964
  %1368 = vmatprep.mubr.bf16.mxu0 %v476
  %1369 = vmatmul.mubr.bf16.gmra.mrb[0].mxu0 %v475
  %v1370 = vpop.f32.mrb[0].mxu0
  %v1371 = vadd.f32 %v1274, %v1370
  %v1372 = vpop.f32.mrb[0].mxu0
  %v1373 = vpop.f32.mrb[0].mxu0
  %v1374 = vadd.f32 %v1277, %v1373
  %v1375 = vpop.f32.mrb[0].mxu0
  %1376 = vmatprep.mubr.bf16.mxu0 %v485
  %1377 = vmatmul.mubr.bf16.gmra.mrb[0].mxu0 %v484
  %v1378 = vpop.f32.mrb[0].mxu0
  %v1379 = vadd.f32 %v1282, %v1378
  %v1380 = vpop.f32.mrb[0].mxu0
  %v1381 = vpop.f32.mrb[0].mxu0
  %v1382 = vadd.f32 %v1285, %v1381
  %v1383 = vpop.f32.mrb[0].mxu0
  %1384 = vmatprep.mubr.bf16.mxu0 %v494
  %1385 = vmatmul.mubr.bf16.gmra.mrb[0].mxu0 %v493
  %v1386 = vpop.f32.mrb[0].mxu0
  %v1387 = vadd.f32 %v1290, %v1386
  %v1388 = vpop.f32.mrb[0].mxu0
  %v1389 = vpop.f32.mrb[0].mxu0
  %v1390 = vadd.f32 %v1293, %v1389
  %v1391 = vpop.f32.mrb[0].mxu0
  %1392 = vmatprep.mubr.bf16.mxu0 %v503
  %1393 = vmatmul.mubr.bf16.gmra.mrb[0].mxu0 %v502
  %v1394 = vpop.f32.mrb[0].mxu0
  %v1395 = vadd.f32 %v1298, %v1394
  %v1396 = vpop.f32.mrb[0].mxu0
  %v1397 = vpop.f32.mrb[0].mxu0
  %v1398 = vadd.f32 %v1301, %v1397
  %v1399 = vpop.f32.mrb[0].mxu0
  %1400 = vmatprep.mubr.bf16.mxu0 %v512
  %1401 = vmatmul.mubr.bf16.gmra.mrb[0].mxu0 %v511
  %v1402 = vpop.f32.mrb[0].mxu0
  %v1403 = vadd.f32 %v1306, %v1402
  %v1404 = vpop.f32.mrb[0].mxu0
  %v1405 = vpop.f32.mrb[0].mxu0
  %v1406 = vadd.f32 %v1309, %v1405
  %v1407 = vpop.f32.mrb[0].mxu0
  %1408 = vmatprep.mubr.bf16.mxu0 %v521
  %1409 = vmatmul.mubr.bf16.gmra.mrb[0].mxu0 %v520
  %v1410 = vpop.f32.mrb[0].mxu0
  %v1411 = vadd.f32 %v1314, %v1410
  %v1412 = vpop.f32.mrb[0].mxu0
  %v1413 = vpop.f32.mrb[0].mxu0
  %v1414 = vadd.f32 %v1317, %v1413
  %v1415 = vpop.f32.mrb[0].mxu0
  %1416 = vmatprep.mubr.bf16.mxu0 %v530
  %1417 = vmatmul.mubr.bf16.gmra.mrb[0].mxu0 %v529
  %v1418 = vpop.f32.mrb[0].mxu0
  %v1419 = vadd.f32 %v1322, %v1418
  %v1420 = vpop.f32.mrb[0].mxu0
  %v1421 = vpop.f32.mrb[0].mxu0
  %v1422 = vadd.f32 %v1325, %v1421
  %v1423 = vpop.f32.mrb[0].mxu0
  %1424 = vmatprep.mubr.bf16.mxu0 %v539
  %1425 = vmatmul.mubr.bf16.gmra.mrb[0].mxu0 %v538
  %v1426 = vpop.f32.mrb[0].mxu0
  %v1427 = vadd.f32 %v1330, %v1426
  %v1428 = vpop.f32.mrb[0].mxu0
  %v1429 = vpop.f32.mrb[0].mxu0
  %v1430 = vadd.f32 %v1333, %v1429
  %v1431 = vpop.f32.mrb[0].mxu0
  %1432 = vdwg.mxu0
  %1433 = vmatprep.subr.bf16.mxu0 0
  %1434 = vmatpush1.bf16.msra.mxu0 %v965
  %1435 = vmatprep.subr.bf16.mxu0 0
  %1436 = vmatpush1.bf16.msra.mxu0 %v966
  %1437 = vmatprep.subr.bf16.mxu0 0
  %1438 = vmatpush1.bf16.msra.mxu0 %v967
  %1439 = vmatprep.subr.bf16.mxu0 0
  %1440 = vmatpush1.bf16.msra.mxu0 %v968
  %1441 = vmatprep.subr.bf16.mxu0 0
  %1442 = vmatpush1.bf16.msra.mxu0 %v969
  %1443 = vmatprep.subr.bf16.mxu0 0
  %1444 = vmatpush1.bf16.msra.mxu0 %v970
  %1445 = vmatprep.subr.bf16.mxu0 0
  %1446 = vmatpush1.bf16.msra.mxu0 %v971
  %1447 = vmatprep.subr.bf16.mxu0 0
  %1448 = vmatpush1.bf16.msra.mxu0 %v972
  %1449 = vmatprep.subr.bf16.mxu0 0
  %1450 = vmatpush1.bf16.msra.mxu0 0
  %1451 = vmatprep.subr.bf16.mxu0 0
  %1452 = vmatpush1.bf16.msra.mxu0 0
  %1453 = vmatprep.subr.bf16.mxu0 0
  %1454 = vmatpush1.bf16.msra.mxu0 0
  %1455 = vmatprep.subr.bf16.mxu0 0
  %1456 = vmatpush1.bf16.msra.mxu0 0
  %1457 = vmatprep.subr.bf16.mxu0 0
  %1458 = vmatpush1.bf16.msra.mxu0 0
  %1459 = vmatprep.subr.bf16.mxu0 0
  %1460 = vmatpush1.bf16.msra.mxu0 0
  %1461 = vmatprep.subr.bf16.mxu0 0
  %1462 = vmatpush1.bf16.msra.mxu0 0
  %1463 = vmatprep.subr.bf16.mxu0 0
  %1464 = vmatpush1.bf16.msra.mxu0 0
  %1465 = vmatprep.mubr.bf16.mxu0 0
  %1466 = vmatmul.mubr.bf16.gmra.mrb[0].mxu0 %v477
  %v1467 = vpop.f32.mrb[0].mxu0
  %v1468 = vadd.f32 %v1371, %v1467
  %v1469 = vpop.f32.mrb[0].mxu0
  %v1470 = vpop.f32.mrb[0].mxu0
  %v1471 = vadd.f32 %v1374, %v1470
  %v1472 = vpop.f32.mrb[0].mxu0
  %1473 = vmatprep.mubr.bf16.mxu0 0
  %1474 = vmatmul.mubr.bf16.gmra.mrb[0].mxu0 %v486
  %v1475 = vpop.f32.mrb[0].mxu0
  %v1476 = vadd.f32 %v1379, %v1475
  %v1477 = vpop.f32.mrb[0].mxu0
  %v1478 = vpop.f32.mrb[0].mxu0
  %v1479 = vadd.f32 %v1382, %v1478
  %v1480 = vpop.f32.mrb[0].mxu0
  %1481 = vmatprep.mubr.bf16.mxu0 0
  %1482 = vmatmul.mubr.bf16.gmra.mrb[0].mxu0 %v495
  %v1483 = vpop.f32.mrb[0].mxu0
  %v1484 = vadd.f32 %v1387, %v1483
  %v1485 = vpop.f32.mrb[0].mxu0
  %v1486 = vpop.f32.mrb[0].mxu0
  %v1487 = vadd.f32 %v1390, %v1486
  %v1488 = vpop.f32.mrb[0].mxu0
  %1489 = vmatprep.mubr.bf16.mxu0 0
  %1490 = vmatmul.mubr.bf16.gmra.mrb[0].mxu0 %v504
  %v1491 = vpop.f32.mrb[0].mxu0
  %v1492 = vadd.f32 %v1395, %v1491
  %v1493 = vpop.f32.mrb[0].mxu0
  %v1494 = vpop.f32.mrb[0].mxu0
  %v1495 = vadd.f32 %v1398, %v1494
  %v1496 = vpop.f32.mrb[0].mxu0
  %1497 = vmatprep.mubr.bf16.mxu0 0
  %1498 = vmatmul.mubr.bf16.gmra.mrb[0].mxu0 %v513
  %v1499 = vpop.f32.mrb[0].mxu0
  %v1500 = vadd.f32 %v1403, %v1499
  %v1501 = vpop.f32.mrb[0].mxu0
  %v1502 = vpop.f32.mrb[0].mxu0
  %v1503 = vadd.f32 %v1406, %v1502
  %v1504 = vpop.f32.mrb[0].mxu0
  %1505 = vmatprep.mubr.bf16.mxu0 0
  %1506 = vmatmul.mubr.bf16.gmra.mrb[0].mxu0 %v522
  %v1507 = vpop.f32.mrb[0].mxu0
  %v1508 = vadd.f32 %v1411, %v1507
  %v1509 = vpop.f32.mrb[0].mxu0
  %v1510 = vpop.f32.mrb[0].mxu0
  %v1511 = vadd.f32 %v1414, %v1510
  %v1512 = vpop.f32.mrb[0].mxu0
  %1513 = vmatprep.mubr.bf16.mxu0 0
  %1514 = vmatmul.mubr.bf16.gmra.mrb[0].mxu0 %v531
  %v1515 = vpop.f32.mrb[0].mxu0
  %v1516 = vadd.f32 %v1419, %v1515
  %v1517 = vpop.f32.mrb[0].mxu0
  %v1518 = vpop.f32.mrb[0].mxu0
  %v1519 = vadd.f32 %v1422, %v1518
  %v1520 = vpop.f32.mrb[0].mxu0
  %1521 = vmatprep.mubr.bf16.mxu0 0
  %1522 = vmatmul.mubr.bf16.gmra.mrb[0].mxu0 %v540
  %v1523 = vpop.f32.mrb[0].mxu0
  %v1524 = vadd.f32 %v1427, %v1523
  %v1525 = vpop.f32.mrb[0].mxu0
  %v1526 = vpop.f32.mrb[0].mxu0
  %v1527 = vadd.f32 %v1430, %v1526
  %v1528 = vpop.f32.mrb[0].mxu0
  %1529 = vdwg.mxu0
  %v1530 = vld [vmem:[%s2] sm:$0x1]
  %v1532 = vlaneseq
  %v1533 = vshrl.u32 %v1532, 7
  %v1534 = vsub.s32 0, %v1533
  %v1535 = vrot.slane %v1530, %v1534
  %v1537 = vmul.f32 %v1468, %v1535
  %v1538 = vmul.f32 %v1471, %v1535
  %v1539 = vmul.f32 %v1476, %v1535
  %v1540 = vmul.f32 %v1479, %v1535
  %v1541 = vmul.f32 %v1484, %v1535
  %v1542 = vmul.f32 %v1487, %v1535
  %v1543 = vmul.f32 %v1492, %v1535
  %v1544 = vmul.f32 %v1495, %v1535
  %v1545 = vmul.f32 %v1500, %v1535
  %v1546 = vmul.f32 %v1503, %v1535
  %v1547 = vmul.f32 %v1508, %v1535
  %v1548 = vmul.f32 %v1511, %v1535
  %v1549 = vmul.f32 %v1516, %v1535
  %v1550 = vmul.f32 %v1519, %v1535
  %v1551 = vmul.f32 %v1524, %v1535
  %v1552 = vmul.f32 %v1527, %v1535
  %v1553 = vld [vmem:[%s3] sm:$0x1]
  %v1555 = vlaneseq
  %v1556 = vshrl.u32 %v1555, 7
  %v1557 = vsub.s32 0, %v1556
  %v1558 = vrot.slane %v1553, %v1557
  %v1560 = vadd.f32 %v1537, %v1558
  %v1561 = vadd.f32 %v1538, %v1558
  %v1562 = vadd.f32 %v1539, %v1558
  %v1563 = vadd.f32 %v1540, %v1558
  %v1564 = vadd.f32 %v1541, %v1558
  %v1565 = vadd.f32 %v1542, %v1558
  %v1566 = vadd.f32 %v1543, %v1558
  %v1567 = vadd.f32 %v1544, %v1558
  %v1568 = vadd.f32 %v1545, %v1558
  %v1569 = vadd.f32 %v1546, %v1558
  %v1570 = vadd.f32 %v1547, %v1558
  %v1571 = vadd.f32 %v1548, %v1558
  %v1572 = vadd.f32 %v1549, %v1558
  %v1573 = vadd.f32 %v1550, %v1558
  %v1574 = vadd.f32 %v1551, %v1558
  %v1575 = vadd.f32 %v1552, %v1558
  %v1576 = vld [vmem:[%s4] sm:$0xf]
  %v1577 = vld [vmem:[%s4 + $0x4] sm:$0xf]
  %v1578 = vld [vmem:[%s4 + $0x8] sm:$0xf]
  %v1579 = vld [vmem:[%s4 + $0xc] sm:$0xf]
  %v1580 = vld [vmem:[%s4 + $0x10] sm:$0xf]
  %v1581 = vld [vmem:[%s4 + $0x14] sm:$0xf]
  %v1582 = vld [vmem:[%s4 + $0x18] sm:$0xf]
  %v1583 = vld [vmem:[%s4 + $0x1c] sm:$0xf]
  %v1584 = vld [vmem:[%s4 + $0x20] sm:$0xf]
  %v1585 = vld [vmem:[%s4 + $0x24] sm:$0xf]
  %v1586 = vld [vmem:[%s4 + $0x28] sm:$0xf]
  %v1587 = vld [vmem:[%s4 + $0x2c] sm:$0xf]
  %v1588 = vld [vmem:[%s4 + $0x30] sm:$0xf]
  %v1589 = vld [vmem:[%s4 + $0x34] sm:$0xf]
  %v1590 = vld [vmem:[%s4 + $0x38] sm:$0xf]
  %v1591 = vld [vmem:[%s4 + $0x3c] sm:$0xf]
  %v1592 = vunpack.c.l.bf16 %v1576
  %v1593 = vunpack.c.l.bf16 %v1577
  %v1594 = vunpack.c.l.bf16 %v1578
  %v1595 = vunpack.c.l.bf16 %v1579
  %v1596 = vunpack.c.l.bf16 %v1580
  %v1597 = vunpack.c.l.bf16 %v1581
  %v1598 = vunpack.c.l.bf16 %v1582
  %v1599 = vunpack.c.l.bf16 %v1583
  %v1600 = vunpack.c.l.bf16 %v1584
  %v1601 = vunpack.c.l.bf16 %v1585
  %v1602 = vunpack.c.l.bf16 %v1586
  %v1603 = vunpack.c.l.bf16 %v1587
  %v1604 = vunpack.c.l.bf16 %v1588
  %v1605 = vunpack.c.l.bf16 %v1589
  %v1606 = vunpack.c.l.bf16 %v1590
  %v1607 = vunpack.c.l.bf16 %v1591
  %v1608 = vadd.f32 %v1560, %v1592
  %v1609 = vadd.f32 %v1561, %v1593
  %v1610 = vadd.f32 %v1562, %v1594
  %v1611 = vadd.f32 %v1563, %v1595
  %v1612 = vadd.f32 %v1564, %v1596
  %v1613 = vadd.f32 %v1565, %v1597
  %v1614 = vadd.f32 %v1566, %v1598
  %v1615 = vadd.f32 %v1567, %v1599
  %v1616 = vadd.f32 %v1568, %v1600
  %v1617 = vadd.f32 %v1569, %v1601
  %v1618 = vadd.f32 %v1570, %v1602
  %v1619 = vadd.f32 %v1571, %v1603
  %v1620 = vadd.f32 %v1572, %v1604
  %v1621 = vadd.f32 %v1573, %v1605
  %v1622 = vadd.f32 %v1574, %v1606
  %v1623 = vadd.f32 %v1575, %v1607
  %v1624 = vmax.f32 %v1608, 0.0
  %v1625 = vmax.f32 %v1609, 0.0
  %v1626 = vmax.f32 %v1610, 0.0
  %v1627 = vmax.f32 %v1611, 0.0
  %v1628 = vmax.f32 %v1612, 0.0
  %v1629 = vmax.f32 %v1613, 0.0
  %v1630 = vmax.f32 %v1614, 0.0
  %v1631 = vmax.f32 %v1615, 0.0
  %v1632 = vmax.f32 %v1616, 0.0
  %v1633 = vmax.f32 %v1617, 0.0
  %v1634 = vmax.f32 %v1618, 0.0
  %v1635 = vmax.f32 %v1619, 0.0
  %v1636 = vmax.f32 %v1620, 0.0
  %v1637 = vmax.f32 %v1621, 0.0
  %v1638 = vmax.f32 %v1622, 0.0
  %v1639 = vmax.f32 %v1623, 0.0
  %1640 = vst [vmem:[%s5] sm:$0xff] %v1624
  %1641 = vst [vmem:[%s5 + $0x8] sm:$0xff] %v1625
  %1642 = vst [vmem:[%s5 + $0x10] sm:$0xff] %v1626
  %1643 = vst [vmem:[%s5 + $0x18] sm:$0xff] %v1627
  %1644 = vst [vmem:[%s5 + $0x20] sm:$0xff] %v1628
  %1645 = vst [vmem:[%s5 + $0x28] sm:$0xff] %v1629
  %1646 = vst [vmem:[%s5 + $0x30] sm:$0xff] %v1630
  %1647 = vst [vmem:[%s5 + $0x38] sm:$0xff] %v1631
  %1648 = vst [vmem:[%s5 + $0x40] sm:$0xff] %v1632
  %1649 = vst [vmem:[%s5 + $0x48] sm:$0xff] %v1633
  %1650 = vst [vmem:[%s5 + $0x50] sm:$0xff] %v1634
  %1651 = vst [vmem:[%s5 + $0x58] sm:$0xff] %v1635
  %1652 = vst [vmem:[%s5 + $0x60] sm:$0xff] %v1636
  %1653 = vst [vmem:[%s5 + $0x68] sm:$0xff] %v1637
  %1654 = vst [vmem:[%s5 + $0x70] sm:$0xff] %v1638
  %1655 = vst [vmem:[%s5 + $0x78] sm:$0xff] %v1639
  // Predicated region
  $region22: #{_lambda_.5} parent=0 // pred_check
    _
  $region23: #{_lambda_.5} parent=0 // pred_check_branch
    %1657 = sbr.rel (0) target = $region25
  $region24: #{_lambda_.5} parent=0 // pred_region
    _
  $region25: #{_lambda_.5} parent=0 // pred_fallthru
    _
  // Predicated region
  $region26: #{_lambda_.5} parent=0 // pred_check
    _
  $region27: #{_lambda_.5} parent=0 // pred_check_branch
    %1659 = sbr.rel (0) target = $region29
  $region28: #{_lambda_.5} parent=0 // pred_region
    _
  $region29: #{_lambda_.5} parent=0 // pred_fallthru
    _

</llo_original>
